<compile_context>
chip_gen: v7x
topology: tpu7x:2x2x1
jax: 0.10.0
libtpu: 0.0.40
codegen_flags: <defaults>
</compile_context>

<pallas_src>
import jax
import jax.numpy as jnp
from jax import lax
from jax.experimental import pallas as pl
from jax.experimental.pallas import tpu as pltpu

# ---- architecture sizes (small, consistent with a Genome_NN instance) ----
B = 8          # batch
SZ_I = 16
SZ_H1 = 32
SZ_H2 = 32
SZ_O = 8

LANES = 128    # packed slab lane width (one vreg row)
# lane layout of the packed state slab (results land where the next stage
# consumes them -> no lane rotations needed)
H1_OFF = 0                    # lanes [ 0, 32): H1 recurrent state
O_OFF = SZ_H1                 # lanes [32, 40): O  recurrent state
# lanes [40, 128): always zero

CHUNK = 8                     # timesteps per grid iteration (fully unrolled)


def nn_custom_rollout_kernel(x_ref, init_ref, w_ref, wx_ref, b_ref,
                             out_ref, state_ref):
    """CHUNK recurrent steps per grid iteration; state kept in VMEM scratch."""
    f32 = jnp.float32
    tc = x_ref.shape[0]       # timesteps in this chunk (static)

    @pl.when(pl.program_id(0) == 0)
    def _():
        state_ref[...] = init_ref[...]          # [prev_h1 | prev_o | 0...]

    # ---- loop-invariant values, hoisted out of the unrolled timestep loop ----
    lane = lax.broadcasted_iota(jnp.int32, (B, LANES), 1)
    h1_mask = lane < SZ_H1
    o_mask = (lane >= O_OFF) & (lane < O_OFF + SZ_O)
    b1 = jnp.broadcast_to(b_ref[0:1, :], (B, LANES))   # b_h1 in lanes 0:32
    b2 = jnp.broadcast_to(b_ref[1:2, :], (B, LANES))   # b_h2 in lanes 0:32
    b3 = jnp.broadcast_to(b_ref[2:3, :], (B, LANES))   # b_o  in lanes 32:40
    w0 = w_ref[0]
    w1 = w_ref[1]
    w2 = w_ref[2]
    wx = wx_ref[...]

    # ---- state-independent x contribution (+ b_h1) for the whole chunk ----
    # These tc small matmuls have no serial dependence on the recurrence, so
    # the scheduler can overlap them with the recurrent chain below.
    xc = [jnp.dot(x_ref[t], wx, preferred_element_type=f32) + b1
          for t in range(tc)]

    # ---- recurrent rollout over the chunk (fully unrolled, static indices) ----
    state = state_ref[...]
    for t in range(tc):
        # stage 1: one matmul produces the H1 pre-activation (lanes 0:32) AND
        # the O self-feedback term prev_o @ w_oo (lanes 32:40) simultaneously.
        pre1 = jnp.dot(state, w0, preferred_element_type=f32) + xc[t]
        h1_full = jnp.maximum(pre1, 0.0)                 # lanes 0:32 = relu(h1)
        # (lanes 32:40 hold relu(o_fb) garbage; killed by zero rows of w1/w2)

        # stage 2: H1 -> H2 inter-hidden forward
        h2_full = jnp.maximum(
            jnp.dot(h1_full, w1, preferred_element_type=f32) + b2, 0.0)

        # stage 3: H2 -> O forward; w2 writes into lanes 32:40 so it adds
        # directly onto the o_fb term already sitting in pre1 lanes 32:40.
        pre3 = jnp.dot(h2_full, w2, preferred_element_type=f32)
        o_full = jnp.tanh(pre3 + pre1 + b3)              # lanes 32:40 = o output

        # new recurrent state slab: [h1 | o | 0...]
        state = jnp.where(h1_mask, h1_full, jnp.where(o_mask, o_full, 0.0))
        out_ref[t] = state                               # lane-dense per-step output
    state_ref[...] = state                               # carry into next chunk


def _pack_weights(params):
    """Pack the 6 live weight matrices + 3 biases into lane-aligned slabs."""
    (w_h1h1, w_oh1, _w_h2h2_dead, w_oo, w_ih1, w_h1h2, w_h2o,
     b_h1, b_h2, b_o) = params
    f32 = jnp.float32

    # stage-1 weight: rows follow the state-slab lane layout, cols 0:32 -> h1
    # pre-activation, cols 32:40 -> o self-feedback (prev_o @ w_oo).
    w0 = jnp.zeros((LANES, LANES), f32)
    w0 = w0.at[H1_OFF:H1_OFF + SZ_H1, 0:SZ_H1].set(w_h1h1)
    w0 = w0.at[O_OFF:O_OFF + SZ_O, 0:SZ_H1].set(w_oh1)
    w0 = w0.at[O_OFF:O_OFF + SZ_O, O_OFF:O_OFF + SZ_O].set(w_oo)

    # stage-2 weight: H1 (lanes 0:32) -> H2 (cols 0:32); rows >=32 stay zero.
    w1 = jnp.zeros((LANES, LANES), f32).at[0:SZ_H1, 0:SZ_H2].set(w_h1h2)

    # stage-3 weight: H2 (lanes 0:32) -> O, written into cols 32:40 so it
    # aligns with the o_fb lanes of pre1; rows >=32 stay zero.
    w2 = jnp.zeros((LANES, LANES), f32).at[0:SZ_H2, O_OFF:O_OFF + SZ_O].set(w_h2o)

    w_slab = jnp.stack([w0, w1, w2])                     # [3, 128, 128]

    # input weight: x (16 lanes) -> h1 pre-activation (cols 0:32)
    wx_slab = jnp.zeros((SZ_I, LANES), f32).at[:, 0:SZ_H1].set(w_ih1)

    b_slab = jnp.zeros((8, LANES), f32)
    b_slab = b_slab.at[0, 0:SZ_H1].set(b_h1[0])
    b_slab = b_slab.at[1, 0:SZ_H2].set(b_h2[0])
    b_slab = b_slab.at[2, O_OFF:O_OFF + SZ_O].set(b_o[0])
    return w_slab, wx_slab, b_slab


def nn_custom_rollout(x_seq, prev_h1, prev_o, params, chunk=CHUNK):
    """Run T recurrent steps of NN_Custom_torch (no layer norm) in one pallas_call.

    Returns (o_seq [T,B,8], final_h1 [B,32], final_o [B,8])."""
    f32 = jnp.float32
    T = x_seq.shape[0]
    n_chunks = max(1, -(-T // chunk))
    T_pad = n_chunks * chunk

    w_slab, wx_slab, b_slab = _pack_weights(params)

    # x kept narrow ([*,B,16], full-extent last dim): 8x less HBM read traffic
    # than a 128-lane padded slab.  Padded steps (x=0) run after step T-1 and
    # are discarded, so they cannot affect returned outputs / final state.
    x_pad = jnp.zeros((T_pad, B, SZ_I), f32).at[:T].set(x_seq.astype(f32))
    init_state = jnp.zeros((B, LANES), f32)
    init_state = init_state.at[:, H1_OFF:H1_OFF + SZ_H1].set(prev_h1.astype(f32))
    init_state = init_state.at[:, O_OFF:O_OFF + SZ_O].set(prev_o.astype(f32))

    out = pl.pallas_call(
        nn_custom_rollout_kernel,
        out_shape=jax.ShapeDtypeStruct((T_pad, B, LANES), f32),
        grid_spec=pltpu.PrefetchScalarGridSpec(
            num_scalar_prefetch=0,
            grid=(n_chunks,),
            in_specs=[
                pl.BlockSpec((chunk, B, SZ_I), lambda c: (c, 0, 0)),   # x chunk
                pl.BlockSpec((B, LANES), lambda c: (0, 0)),            # init state
                pl.BlockSpec((3, LANES, LANES), lambda c: (0, 0, 0)),  # weights (resident)
                pl.BlockSpec((SZ_I, LANES), lambda c: (0, 0)),         # x weights (resident)
                pl.BlockSpec((8, LANES), lambda c: (0, 0)),            # biases  (resident)
            ],
            out_specs=pl.BlockSpec((chunk, B, LANES), lambda c: (c, 0, 0)),
            scratch_shapes=[pltpu.VMEM((B, LANES), f32)],              # recurrent state
        ),
        compiler_params=pltpu.CompilerParams(
            dimension_semantics=("arbitrary",)),   # sequential recurrence over chunks
    )(x_pad, init_state, w_slab, wx_slab, b_slab)

    # TODO(synk): for very large T, pack per-step O outputs (8 lanes) 16-to-a-row
    #             to cut HBM writeback ~16x; full-state writeback kept for clarity.
    o_seq = out[:T, :, O_OFF:O_OFF + SZ_O]
    final_h1 = out[T - 1, :, H1_OFF:H1_OFF + SZ_H1]
    final_o = out[T - 1, :, O_OFF:O_OFF + SZ_O]
    return o_seq, final_h1, final_o


def nn_custom_forward(x, prev_h1, prev_o, params):
    """Single forward step (matches torch forward_no_layer_norm return value)."""
    o_seq, _, _ = nn_custom_rollout(x[None], prev_h1, prev_o, params)
    return o_seq[0]


# ----------------------- reference & test harness -----------------------

def init_params(key):
    """Parameter init mimicking nn.Linear default U(-1/sqrt(in), 1/sqrt(in)).

    Weights in [in, out] layout (transposed relative to torch)."""
    def linear_w(k, fan_in, fan_out):
        bound = 1.0 / jnp.sqrt(float(fan_in))
        return jax.random.uniform(k, (fan_in, fan_out), jnp.float32, -bound, bound)

    ks = jax.random.split(key, 10)
    w_h1h1 = linear_w(ks[0], SZ_H1, SZ_H1)   # H1->H1 feedback
    w_oh1 = linear_w(ks[1], SZ_O, SZ_H1)     # O->H1 feedback
    w_h2h2 = linear_w(ks[2], SZ_H2, SZ_H2)   # H2->H2 feedback (dead in forward)
    w_oo = linear_w(ks[3], SZ_O, SZ_O)       # O->O feedback
    w_ih1 = linear_w(ks[4], SZ_I, SZ_H1)     # I->H1 forward
    w_h1h2 = linear_w(ks[5], SZ_H1, SZ_H2)   # H1->H2 inter-hidden forward
    w_h2o = linear_w(ks[6], SZ_H2, SZ_O)     # H2->O forward
    b_h1 = 0.1 * jax.random.normal(ks[7], (1, SZ_H1), jnp.float32)
    b_h2 = 0.1 * jax.random.normal(ks[8], (1, SZ_H2), jnp.float32)
    b_o = 0.1 * jax.random.normal(ks[9], (1, SZ_O), jnp.float32)
    return (w_h1h1, w_oh1, w_h2h2, w_oo, w_ih1, w_h1h2, w_h2o, b_h1, b_h2, b_o)


def reference_step(x, prev_h1, prev_o, params):
    """Pure-JAX mirror of one forward_no_layer_norm call for this architecture."""
    (w_h1h1, w_oh1, _w_h2h2, w_oo, w_ih1, w_h1h2, w_h2o, b_h1, b_h2, b_o) = params
    h1 = jax.nn.relu(x @ w_ih1 + prev_h1 @ w_h1h1 + prev_o @ w_oh1 + b_h1)
    # torch computes relu(prev_h2 @ w_h2h2 + b_h2) here, then discards it.
    h2 = jax.nn.relu(h1 @ w_h1h2 + b_h2)
    o = jnp.tanh(prev_o @ w_oo + h2 @ w_h2o + b_o)
    return h1, h2, o


def reference_rollout(x_seq, prev_h1, prev_o, params):
    outs = []
    h1, o = prev_h1, prev_o
    for t in range(x_seq.shape[0]):
        h1, _h2, o = reference_step(x_seq[t], h1, o, params)
        outs.append(o)
    return jnp.stack(outs), h1, o


if __name__ == "__main__":
    key = jax.random.PRNGKey(0)
    k_x, k_h1, k_o, k_par = jax.random.split(key, 4)

    T = 20   # not a multiple of CHUNK: exercises padding + multi-chunk state carry
    x_seq = jax.random.normal(k_x, (T, B, SZ_I), jnp.float32)
    prev_h1 = jax.random.normal(k_h1, (B, SZ_H1), jnp.float32)
    prev_o = jax.random.normal(k_o, (B, SZ_O), jnp.float32)
    params = init_params(k_par)

    # multi-step rollout (state carried in VMEM inside one pallas_call)
    o_seq, h1_fin, o_fin = nn_custom_rollout(x_seq, prev_h1, prev_o, params)
    o_seq = jax.block_until_ready(o_seq)

    ref_seq, ref_h1, ref_o = reference_rollout(x_seq, prev_h1, prev_o, params)
    assert o_seq.shape == (T, B, SZ_O)
    assert jnp.allclose(o_seq, ref_seq, atol=1e-5, rtol=1e-5)
    assert jnp.allclose(h1_fin, ref_h1, atol=1e-5, rtol=1e-5)
    assert jnp.allclose(o_fin, ref_o, atol=1e-5, rtol=1e-5)

    # single-step path (same semantics as torch forward)
    o1 = jax.block_until_ready(nn_custom_forward(x_seq[0], prev_h1, prev_o, params))
    r_h1, _r_h2, r_o = reference_step(x_seq[0], prev_h1, prev_o, params)
    assert jnp.allclose(o1, r_o, atol=1e-5, rtol=1e-5)

    print("KERNEL_OK")
</pallas_src>

<mosaic_0001>
module attributes {stable_mosaic.version = 11 : i64} {
  func.func @nn_custom_rollout_kernel(%arg0: i32, %arg1: memref<8x8x16xf32, #tpu.memory_space<vmem>>, %arg2: memref<8x128xf32, #tpu.memory_space<vmem>>, %arg3: memref<3x128x128xf32, #tpu.memory_space<vmem>>, %arg4: memref<16x128xf32, #tpu.memory_space<vmem>>, %arg5: memref<8x128xf32, #tpu.memory_space<vmem>>, %arg6: memref<8x8x128xf32, #tpu.memory_space<vmem>>, %arg7: memref<8x128xf32, #tpu.memory_space<vmem>>) attributes {dimension_semantics = [#tpu.dimension_semantics<arbitrary>], iteration_bounds = array<i64: 3>, scalar_prefetch = 0 : i64, scratch_operands = 1 : i64, tpu.core_type = #tpu.core_type<tc>, window_params = [{transform_indices = @transform_0, window_bounds = array<i64: 8, 8, 16>}, {pipeline_mode = #tpu.pipeline_mode<synchronous>, transform_indices = @transform_1, window_bounds = array<i64: 8, 128>}, {pipeline_mode = #tpu.pipeline_mode<synchronous>, transform_indices = @transform_2, window_bounds = array<i64: 3, 128, 128>}, {pipeline_mode = #tpu.pipeline_mode<synchronous>, transform_indices = @transform_3, window_bounds = array<i64: 16, 128>}, {pipeline_mode = #tpu.pipeline_mode<synchronous>, transform_indices = @transform_4, window_bounds = array<i64: 8, 128>}, {transform_indices = @transform_5, window_bounds = array<i64: 8, 8, 128>}]} {
    %c0_i32 = arith.constant 0 : i32
    %0 = arith.cmpi eq, %arg0, %c0_i32 : i32
    %1 = arith.extui %0 : i1 to i32
    %c0_i32_0 = arith.constant 0 : i32
    %2 = arith.cmpi ne, %1, %c0_i32_0 : i32
    scf.if %2 {
      %c0_118 = arith.constant 0 : index
      %c0_119 = arith.constant 0 : index
      %205 = vector.load %arg2[%c0_118, %c0_119] : memref<8x128xf32, #tpu.memory_space<vmem>>, vector<8x128xf32>
      %c0_120 = arith.constant 0 : index
      %c0_121 = arith.constant 0 : index
      %206 = vector.load %arg7[%c0_120, %c0_121] : memref<8x128xf32, #tpu.memory_space<vmem>>, vector<8x128xf32>
      tpu.vector_store %arg7[%c0_120, %c0_121], %205 {strides = array<i32>} : memref<8x128xf32, #tpu.memory_space<vmem>>, vector<8x128xf32>,
    } else {
    }
    %3 = tpu.iota {dimensions = array<i32: 1>} : vector<8x128xi32>
    %c32_i32 = arith.constant 32 : i32
    %4 = vector.broadcast %c32_i32 : i32 to vector<8x128xi32>
    %5 = arith.cmpi slt, %3, %4 : vector<8x128xi32>
    %c32_i32_1 = arith.constant 32 : i32
    %6 = vector.broadcast %c32_i32_1 : i32 to vector<8x128xi32>
    %7 = arith.cmpi sge, %3, %6 : vector<8x128xi32>
    %c40_i32 = arith.constant 40 : i32
    %8 = vector.broadcast %c40_i32 : i32 to vector<8x128xi32>
    %9 = arith.cmpi slt, %3, %8 : vector<8x128xi32>
    %10 = arith.andi %7, %9 : vector<8x128xi1>
    %c0 = arith.constant 0 : index
    %c0_2 = arith.constant 0 : index
    %11 = vector.load %arg5[%c0, %c0_2] : memref<8x128xf32, #tpu.memory_space<vmem>>, vector<1x128xf32>
    %12 = vector.shape_cast %11 : vector<1x128xf32> to vector<1x128xf32>
    %13 = vector.broadcast %12 : vector<1x128xf32> to vector<8x128xf32>
    %c1 = arith.constant 1 : index
    %c0_3 = arith.constant 0 : index
    %14 = vector.load %arg5[%c1, %c0_3] : memref<8x128xf32, #tpu.memory_space<vmem>>, vector<1x128xf32>
    %15 = vector.shape_cast %14 : vector<1x128xf32> to vector<1x128xf32>
    %16 = vector.broadcast %15 : vector<1x128xf32> to vector<8x128xf32>
    %c2 = arith.constant 2 : index
    %c0_4 = arith.constant 0 : index
    %17 = vector.load %arg5[%c2, %c0_4] : memref<8x128xf32, #tpu.memory_space<vmem>>, vector<1x128xf32>
    %18 = vector.shape_cast %17 : vector<1x128xf32> to vector<1x128xf32>
    %19 = vector.broadcast %18 : vector<1x128xf32> to vector<8x128xf32>
    %c0_5 = arith.constant 0 : index
    %c0_6 = arith.constant 0 : index
    %c0_7 = arith.constant 0 : index
    %20 = vector.load %arg3[%c0_5, %c0_6, %c0_7] : memref<3x128x128xf32, #tpu.memory_space<vmem>>, vector<1x128x128xf32>
    %21 = vector.shape_cast %20 : vector<1x128x128xf32> to vector<128x128xf32>
    %c1_8 = arith.constant 1 : index
    %c0_9 = arith.constant 0 : index
    %c0_10 = arith.constant 0 : index
    %22 = vector.load %arg3[%c1_8, %c0_9, %c0_10] : memref<3x128x128xf32, #tpu.memory_space<vmem>>, vector<1x128x128xf32>
    %23 = vector.shape_cast %22 : vector<1x128x128xf32> to vector<128x128xf32>
    %c2_11 = arith.constant 2 : index
    %c0_12 = arith.constant 0 : index
    %c0_13 = arith.constant 0 : index
    %24 = vector.load %arg3[%c2_11, %c0_12, %c0_13] : memref<3x128x128xf32, #tpu.memory_space<vmem>>, vector<1x128x128xf32>
    %25 = vector.shape_cast %24 : vector<1x128x128xf32> to vector<128x128xf32>
    %c0_14 = arith.constant 0 : index
    %c0_15 = arith.constant 0 : index
    %26 = vector.load %arg4[%c0_14, %c0_15] : memref<16x128xf32, #tpu.memory_space<vmem>>, vector<16x128xf32>
    %c0_16 = arith.constant 0 : index
    %c0_17 = arith.constant 0 : index
    %c0_18 = arith.constant 0 : index
    %27 = vector.load %arg1[%c0_16, %c0_17, %c0_18] : memref<8x8x16xf32, #tpu.memory_space<vmem>>, vector<1x8x16xf32>
    %28 = vector.shape_cast %27 : vector<1x8x16xf32> to vector<8x16xf32>
    %cst = arith.constant dense<0.000000e+00> : vector<8x128xf32>
    %29 = tpu.matmul %28, %26, %cst {dimension_numbers = #tpu.dot_dimension_numbers<[1], [0], [0], [1], [0, 0, 1, 1], [], []>} : vector<8x16xf32>, vector<16x128xf32>, vector<8x128xf32> -> vector<8x128xf32>
    %30 = arith.addf %29, %13 : vector<8x128xf32>
    %c1_19 = arith.constant 1 : index
    %c0_20 = arith.constant 0 : index
    %c0_21 = arith.constant 0 : index
    %31 = vector.load %arg1[%c1_19, %c0_20, %c0_21] : memref<8x8x16xf32, #tpu.memory_space<vmem>>, vector<1x8x16xf32>
    %32 = vector.shape_cast %31 : vector<1x8x16xf32> to vector<8x16xf32>
    %cst_22 = arith.constant dense<0.000000e+00> : vector<8x128xf32>
    %33 = tpu.matmul %32, %26, %cst_22 {dimension_numbers = #tpu.dot_dimension_numbers<[1], [0], [0], [1], [0, 0, 1, 1], [], []>} : vector<8x16xf32>, vector<16x128xf32>, vector<8x128xf32> -> vector<8x128xf32>
    %34 = arith.addf %33, %13 : vector<8x128xf32>
    %c2_23 = arith.constant 2 : index
    %c0_24 = arith.constant 0 : index
    %c0_25 = arith.constant 0 : index
    %35 = vector.load %arg1[%c2_23, %c0_24, %c0_25] : memref<8x8x16xf32, #tpu.memory_space<vmem>>, vector<1x8x16xf32>
    %36 = vector.shape_cast %35 : vector<1x8x16xf32> to vector<8x16xf32>
    %cst_26 = arith.constant dense<0.000000e+00> : vector<8x128xf32>
    %37 = tpu.matmul %36, %26, %cst_26 {dimension_numbers = #tpu.dot_dimension_numbers<[1], [0], [0], [1], [0, 0, 1, 1], [], []>} : vector<8x16xf32>, vector<16x128xf32>, vector<8x128xf32> -> vector<8x128xf32>
    %38 = arith.addf %37, %13 : vector<8x128xf32>
    %c3 = arith.constant 3 : index
    %c0_27 = arith.constant 0 : index
    %c0_28 = arith.constant 0 : index
    %39 = vector.load %arg1[%c3, %c0_27, %c0_28] : memref<8x8x16xf32, #tpu.memory_space<vmem>>, vector<1x8x16xf32>
    %40 = vector.shape_cast %39 : vector<1x8x16xf32> to vector<8x16xf32>
    %cst_29 = arith.constant dense<0.000000e+00> : vector<8x128xf32>
    %41 = tpu.matmul %40, %26, %cst_29 {dimension_numbers = #tpu.dot_dimension_numbers<[1], [0], [0], [1], [0, 0, 1, 1], [], []>} : vector<8x16xf32>, vector<16x128xf32>, vector<8x128xf32> -> vector<8x128xf32>
    %42 = arith.addf %41, %13 : vector<8x128xf32>
    %c4 = arith.constant 4 : index
    %c0_30 = arith.constant 0 : index
    %c0_31 = arith.constant 0 : index
    %43 = vector.load %arg1[%c4, %c0_30, %c0_31] : memref<8x8x16xf32, #tpu.memory_space<vmem>>, vector<1x8x16xf32>
    %44 = vector.shape_cast %43 : vector<1x8x16xf32> to vector<8x16xf32>
    %cst_32 = arith.constant dense<0.000000e+00> : vector<8x128xf32>
    %45 = tpu.matmul %44, %26, %cst_32 {dimension_numbers = #tpu.dot_dimension_numbers<[1], [0], [0], [1], [0, 0, 1, 1], [], []>} : vector<8x16xf32>, vector<16x128xf32>, vector<8x128xf32> -> vector<8x128xf32>
    %46 = arith.addf %45, %13 : vector<8x128xf32>
    %c5 = arith.constant 5 : index
    %c0_33 = arith.constant 0 : index
    %c0_34 = arith.constant 0 : index
    %47 = vector.load %arg1[%c5, %c0_33, %c0_34] : memref<8x8x16xf32, #tpu.memory_space<vmem>>, vector<1x8x16xf32>
    %48 = vector.shape_cast %47 : vector<1x8x16xf32> to vector<8x16xf32>
    %cst_35 = arith.constant dense<0.000000e+00> : vector<8x128xf32>
    %49 = tpu.matmul %48, %26, %cst_35 {dimension_numbers = #tpu.dot_dimension_numbers<[1], [0], [0], [1], [0, 0, 1, 1], [], []>} : vector<8x16xf32>, vector<16x128xf32>, vector<8x128xf32> -> vector<8x128xf32>
    %50 = arith.addf %49, %13 : vector<8x128xf32>
    %c6 = arith.constant 6 : index
    %c0_36 = arith.constant 0 : index
    %c0_37 = arith.constant 0 : index
    %51 = vector.load %arg1[%c6, %c0_36, %c0_37] : memref<8x8x16xf32, #tpu.memory_space<vmem>>, vector<1x8x16xf32>
    %52 = vector.shape_cast %51 : vector<1x8x16xf32> to vector<8x16xf32>
    %cst_38 = arith.constant dense<0.000000e+00> : vector<8x128xf32>
    %53 = tpu.matmul %52, %26, %cst_38 {dimension_numbers = #tpu.dot_dimension_numbers<[1], [0], [0], [1], [0, 0, 1, 1], [], []>} : vector<8x16xf32>, vector<16x128xf32>, vector<8x128xf32> -> vector<8x128xf32>
    %54 = arith.addf %53, %13 : vector<8x128xf32>
    %c7 = arith.constant 7 : index
    %c0_39 = arith.constant 0 : index
    %c0_40 = arith.constant 0 : index
    %55 = vector.load %arg1[%c7, %c0_39, %c0_40] : memref<8x8x16xf32, #tpu.memory_space<vmem>>, vector<1x8x16xf32>
    %56 = vector.shape_cast %55 : vector<1x8x16xf32> to vector<8x16xf32>
    %cst_41 = arith.constant dense<0.000000e+00> : vector<8x128xf32>
    %57 = tpu.matmul %56, %26, %cst_41 {dimension_numbers = #tpu.dot_dimension_numbers<[1], [0], [0], [1], [0, 0, 1, 1], [], []>} : vector<8x16xf32>, vector<16x128xf32>, vector<8x128xf32> -> vector<8x128xf32>
    %58 = arith.addf %57, %13 : vector<8x128xf32>
    %c0_42 = arith.constant 0 : index
    %c0_43 = arith.constant 0 : index
    %59 = vector.load %arg7[%c0_42, %c0_43] : memref<8x128xf32, #tpu.memory_space<vmem>>, vector<8x128xf32>
    %cst_44 = arith.constant dense<0.000000e+00> : vector<8x128xf32>
    %60 = tpu.matmul %59, %21, %cst_44 {dimension_numbers = #tpu.dot_dimension_numbers<[1], [0], [0], [1], [0, 0, 1, 1], [], []>} : vector<8x128xf32>, vector<128x128xf32>, vector<8x128xf32> -> vector<8x128xf32>
    %61 = arith.addf %60, %30 : vector<8x128xf32>
    %cst_45 = arith.constant 0.000000e+00 : f32
    %62 = vector.broadcast %cst_45 : f32 to vector<8x128xf32>
    %63 = arith.maximumf %61, %62 : vector<8x128xf32>
    %cst_46 = arith.constant dense<0.000000e+00> : vector<8x128xf32>
    %64 = tpu.matmul %63, %23, %cst_46 {dimension_numbers = #tpu.dot_dimension_numbers<[1], [0], [0], [1], [0, 0, 1, 1], [], []>} : vector<8x128xf32>, vector<128x128xf32>, vector<8x128xf32> -> vector<8x128xf32>
    %65 = arith.addf %64, %16 : vector<8x128xf32>
    %cst_47 = arith.constant 0.000000e+00 : f32
    %66 = vector.broadcast %cst_47 : f32 to vector<8x128xf32>
    %67 = arith.maximumf %65, %66 : vector<8x128xf32>
    %cst_48 = arith.constant dense<0.000000e+00> : vector<8x128xf32>
    %68 = tpu.matmul %67, %25, %cst_48 {dimension_numbers = #tpu.dot_dimension_numbers<[1], [0], [0], [1], [0, 0, 1, 1], [], []>} : vector<8x128xf32>, vector<128x128xf32>, vector<8x128xf32> -> vector<8x128xf32>
    %69 = arith.addf %68, %61 : vector<8x128xf32>
    %70 = arith.addf %69, %19 : vector<8x128xf32>
    %71 = math.tanh %70 : vector<8x128xf32>
    %cst_49 = arith.constant 0.000000e+00 : f32
    %72 = vector.broadcast %cst_49 : f32 to vector<8x128xf32>
    %73 = arith.select %10, %71, %72 : vector<8x128xi1>, vector<8x128xf32>
    %74 = arith.select %5, %63, %73 : vector<8x128xi1>, vector<8x128xf32>
    %c0_50 = arith.constant 0 : index
    %c0_51 = arith.constant 0 : index
    %c0_52 = arith.constant 0 : index
    %75 = vector.load %arg6[%c0_50, %c0_51, %c0_52] : memref<8x8x128xf32, #tpu.memory_space<vmem>>, vector<1x8x128xf32>
    %76 = vector.shape_cast %75 : vector<1x8x128xf32> to vector<8x128xf32>
    %77 = vector.shape_cast %74 : vector<8x128xf32> to vector<1x8x128xf32>
    tpu.vector_store %arg6[%c0_50, %c0_51, %c0_52], %77 {strides = array<i32>} : memref<8x8x128xf32, #tpu.memory_space<vmem>>, vector<1x8x128xf32>,
    %cst_53 = arith.constant dense<0.000000e+00> : vector<8x128xf32>
    %78 = tpu.matmul %74, %21, %cst_53 {dimension_numbers = #tpu.dot_dimension_numbers<[1], [0], [0], [1], [0, 0, 1, 1], [], []>} : vector<8x128xf32>, vector<128x128xf32>, vector<8x128xf32> -> vector<8x128xf32>
    %79 = arith.addf %78, %34 : vector<8x128xf32>
    %cst_54 = arith.constant 0.000000e+00 : f32
    %80 = vector.broadcast %cst_54 : f32 to vector<8x128xf32>
    %81 = arith.maximumf %79, %80 : vector<8x128xf32>
    %cst_55 = arith.constant dense<0.000000e+00> : vector<8x128xf32>
    %82 = tpu.matmul %81, %23, %cst_55 {dimension_numbers = #tpu.dot_dimension_numbers<[1], [0], [0], [1], [0, 0, 1, 1], [], []>} : vector<8x128xf32>, vector<128x128xf32>, vector<8x128xf32> -> vector<8x128xf32>
    %83 = arith.addf %82, %16 : vector<8x128xf32>
    %cst_56 = arith.constant 0.000000e+00 : f32
    %84 = vector.broadcast %cst_56 : f32 to vector<8x128xf32>
    %85 = arith.maximumf %83, %84 : vector<8x128xf32>
    %cst_57 = arith.constant dense<0.000000e+00> : vector<8x128xf32>
    %86 = tpu.matmul %85, %25, %cst_57 {dimension_numbers = #tpu.dot_dimension_numbers<[1], [0], [0], [1], [0, 0, 1, 1], [], []>} : vector<8x128xf32>, vector<128x128xf32>, vector<8x128xf32> -> vector<8x128xf32>
    %87 = arith.addf %86, %79 : vector<8x128xf32>
    %88 = arith.addf %87, %19 : vector<8x128xf32>
    %89 = math.tanh %88 : vector<8x128xf32>
    %cst_58 = arith.constant 0.000000e+00 : f32
    %90 = vector.broadcast %cst_58 : f32 to vector<8x128xf32>
    %91 = arith.select %10, %89, %90 : vector<8x128xi1>, vector<8x128xf32>
    %92 = arith.select %5, %81, %91 : vector<8x128xi1>, vector<8x128xf32>
    %c1_59 = arith.constant 1 : index
    %c0_60 = arith.constant 0 : index
    %c0_61 = arith.constant 0 : index
    %93 = vector.load %arg6[%c1_59, %c0_60, %c0_61] : memref<8x8x128xf32, #tpu.memory_space<vmem>>, vector<1x8x128xf32>
    %94 = vector.shape_cast %93 : vector<1x8x128xf32> to vector<8x128xf32>
    %95 = vector.shape_cast %92 : vector<8x128xf32> to vector<1x8x128xf32>
    tpu.vector_store %arg6[%c1_59, %c0_60, %c0_61], %95 {strides = array<i32>} : memref<8x8x128xf32, #tpu.memory_space<vmem>>, vector<1x8x128xf32>,
    %cst_62 = arith.constant dense<0.000000e+00> : vector<8x128xf32>
    %96 = tpu.matmul %92, %21, %cst_62 {dimension_numbers = #tpu.dot_dimension_numbers<[1], [0], [0], [1], [0, 0, 1, 1], [], []>} : vector<8x128xf32>, vector<128x128xf32>, vector<8x128xf32> -> vector<8x128xf32>
    %97 = arith.addf %96, %38 : vector<8x128xf32>
    %cst_63 = arith.constant 0.000000e+00 : f32
    %98 = vector.broadcast %cst_63 : f32 to vector<8x128xf32>
    %99 = arith.maximumf %97, %98 : vector<8x128xf32>
    %cst_64 = arith.constant dense<0.000000e+00> : vector<8x128xf32>
    %100 = tpu.matmul %99, %23, %cst_64 {dimension_numbers = #tpu.dot_dimension_numbers<[1], [0], [0], [1], [0, 0, 1, 1], [], []>} : vector<8x128xf32>, vector<128x128xf32>, vector<8x128xf32> -> vector<8x128xf32>
    %101 = arith.addf %100, %16 : vector<8x128xf32>
    %cst_65 = arith.constant 0.000000e+00 : f32
    %102 = vector.broadcast %cst_65 : f32 to vector<8x128xf32>
    %103 = arith.maximumf %101, %102 : vector<8x128xf32>
    %cst_66 = arith.constant dense<0.000000e+00> : vector<8x128xf32>
    %104 = tpu.matmul %103, %25, %cst_66 {dimension_numbers = #tpu.dot_dimension_numbers<[1], [0], [0], [1], [0, 0, 1, 1], [], []>} : vector<8x128xf32>, vector<128x128xf32>, vector<8x128xf32> -> vector<8x128xf32>
    %105 = arith.addf %104, %97 : vector<8x128xf32>
    %106 = arith.addf %105, %19 : vector<8x128xf32>
    %107 = math.tanh %106 : vector<8x128xf32>
    %cst_67 = arith.constant 0.000000e+00 : f32
    %108 = vector.broadcast %cst_67 : f32 to vector<8x128xf32>
    %109 = arith.select %10, %107, %108 : vector<8x128xi1>, vector<8x128xf32>
    %110 = arith.select %5, %99, %109 : vector<8x128xi1>, vector<8x128xf32>
    %c2_68 = arith.constant 2 : index
    %c0_69 = arith.constant 0 : index
    %c0_70 = arith.constant 0 : index
    %111 = vector.load %arg6[%c2_68, %c0_69, %c0_70] : memref<8x8x128xf32, #tpu.memory_space<vmem>>, vector<1x8x128xf32>
    %112 = vector.shape_cast %111 : vector<1x8x128xf32> to vector<8x128xf32>
    %113 = vector.shape_cast %110 : vector<8x128xf32> to vector<1x8x128xf32>
    tpu.vector_store %arg6[%c2_68, %c0_69, %c0_70], %113 {strides = array<i32>} : memref<8x8x128xf32, #tpu.memory_space<vmem>>, vector<1x8x128xf32>,
    %cst_71 = arith.constant dense<0.000000e+00> : vector<8x128xf32>
    %114 = tpu.matmul %110, %21, %cst_71 {dimension_numbers = #tpu.dot_dimension_numbers<[1], [0], [0], [1], [0, 0, 1, 1], [], []>} : vector<8x128xf32>, vector<128x128xf32>, vector<8x128xf32> -> vector<8x128xf32>
    %115 = arith.addf %114, %42 : vector<8x128xf32>
    %cst_72 = arith.constant 0.000000e+00 : f32
    %116 = vector.broadcast %cst_72 : f32 to vector<8x128xf32>
    %117 = arith.maximumf %115, %116 : vector<8x128xf32>
    %cst_73 = arith.constant dense<0.000000e+00> : vector<8x128xf32>
    %118 = tpu.matmul %117, %23, %cst_73 {dimension_numbers = #tpu.dot_dimension_numbers<[1], [0], [0], [1], [0, 0, 1, 1], [], []>} : vector<8x128xf32>, vector<128x128xf32>, vector<8x128xf32> -> vector<8x128xf32>
    %119 = arith.addf %118, %16 : vector<8x128xf32>
    %cst_74 = arith.constant 0.000000e+00 : f32
    %120 = vector.broadcast %cst_74 : f32 to vector<8x128xf32>
    %121 = arith.maximumf %119, %120 : vector<8x128xf32>
    %cst_75 = arith.constant dense<0.000000e+00> : vector<8x128xf32>
    %122 = tpu.matmul %121, %25, %cst_75 {dimension_numbers = #tpu.dot_dimension_numbers<[1], [0], [0], [1], [0, 0, 1, 1], [], []>} : vector<8x128xf32>, vector<128x128xf32>, vector<8x128xf32> -> vector<8x128xf32>
    %123 = arith.addf %122, %115 : vector<8x128xf32>
    %124 = arith.addf %123, %19 : vector<8x128xf32>
    %125 = math.tanh %124 : vector<8x128xf32>
    %cst_76 = arith.constant 0.000000e+00 : f32
    %126 = vector.broadcast %cst_76 : f32 to vector<8x128xf32>
    %127 = arith.select %10, %125, %126 : vector<8x128xi1>, vector<8x128xf32>
    %128 = arith.select %5, %117, %127 : vector<8x128xi1>, vector<8x128xf32>
    %c3_77 = arith.constant 3 : index
    %c0_78 = arith.constant 0 : index
    %c0_79 = arith.constant 0 : index
    %129 = vector.load %arg6[%c3_77, %c0_78, %c0_79] : memref<8x8x128xf32, #tpu.memory_space<vmem>>, vector<1x8x128xf32>
    %130 = vector.shape_cast %129 : vector<1x8x128xf32> to vector<8x128xf32>
    %131 = vector.shape_cast %128 : vector<8x128xf32> to vector<1x8x128xf32>
    tpu.vector_store %arg6[%c3_77, %c0_78, %c0_79], %131 {strides = array<i32>} : memref<8x8x128xf32, #tpu.memory_space<vmem>>, vector<1x8x128xf32>,
    %cst_80 = arith.constant dense<0.000000e+00> : vector<8x128xf32>
    %132 = tpu.matmul %128, %21, %cst_80 {dimension_numbers = #tpu.dot_dimension_numbers<[1], [0], [0], [1], [0, 0, 1, 1], [], []>} : vector<8x128xf32>, vector<128x128xf32>, vector<8x128xf32> -> vector<8x128xf32>
    %133 = arith.addf %132, %46 : vector<8x128xf32>
    %cst_81 = arith.constant 0.000000e+00 : f32
    %134 = vector.broadcast %cst_81 : f32 to vector<8x128xf32>
    %135 = arith.maximumf %133, %134 : vector<8x128xf32>
    %cst_82 = arith.constant dense<0.000000e+00> : vector<8x128xf32>
    %136 = tpu.matmul %135, %23, %cst_82 {dimension_numbers = #tpu.dot_dimension_numbers<[1], [0], [0], [1], [0, 0, 1, 1], [], []>} : vector<8x128xf32>, vector<128x128xf32>, vector<8x128xf32> -> vector<8x128xf32>
    %137 = arith.addf %136, %16 : vector<8x128xf32>
    %cst_83 = arith.constant 0.000000e+00 : f32
    %138 = vector.broadcast %cst_83 : f32 to vector<8x128xf32>
    %139 = arith.maximumf %137, %138 : vector<8x128xf32>
    %cst_84 = arith.constant dense<0.000000e+00> : vector<8x128xf32>
    %140 = tpu.matmul %139, %25, %cst_84 {dimension_numbers = #tpu.dot_dimension_numbers<[1], [0], [0], [1], [0, 0, 1, 1], [], []>} : vector<8x128xf32>, vector<128x128xf32>, vector<8x128xf32> -> vector<8x128xf32>
    %141 = arith.addf %140, %133 : vector<8x128xf32>
    %142 = arith.addf %141, %19 : vector<8x128xf32>
    %143 = math.tanh %142 : vector<8x128xf32>
    %cst_85 = arith.constant 0.000000e+00 : f32
    %144 = vector.broadcast %cst_85 : f32 to vector<8x128xf32>
    %145 = arith.select %10, %143, %144 : vector<8x128xi1>, vector<8x128xf32>
    %146 = arith.select %5, %135, %145 : vector<8x128xi1>, vector<8x128xf32>
    %c4_86 = arith.constant 4 : index
    %c0_87 = arith.constant 0 : index
    %c0_88 = arith.constant 0 : index
    %147 = vector.load %arg6[%c4_86, %c0_87, %c0_88] : memref<8x8x128xf32, #tpu.memory_space<vmem>>, vector<1x8x128xf32>
    %148 = vector.shape_cast %147 : vector<1x8x128xf32> to vector<8x128xf32>
    %149 = vector.shape_cast %146 : vector<8x128xf32> to vector<1x8x128xf32>
    tpu.vector_store %arg6[%c4_86, %c0_87, %c0_88], %149 {strides = array<i32>} : memref<8x8x128xf32, #tpu.memory_space<vmem>>, vector<1x8x128xf32>,
    %cst_89 = arith.constant dense<0.000000e+00> : vector<8x128xf32>
    %150 = tpu.matmul %146, %21, %cst_89 {dimension_numbers = #tpu.dot_dimension_numbers<[1], [0], [0], [1], [0, 0, 1, 1], [], []>} : vector<8x128xf32>, vector<128x128xf32>, vector<8x128xf32> -> vector<8x128xf32>
    %151 = arith.addf %150, %50 : vector<8x128xf32>
    %cst_90 = arith.constant 0.000000e+00 : f32
    %152 = vector.broadcast %cst_90 : f32 to vector<8x128xf32>
    %153 = arith.maximumf %151, %152 : vector<8x128xf32>
    %cst_91 = arith.constant dense<0.000000e+00> : vector<8x128xf32>
    %154 = tpu.matmul %153, %23, %cst_91 {dimension_numbers = #tpu.dot_dimension_numbers<[1], [0], [0], [1], [0, 0, 1, 1], [], []>} : vector<8x128xf32>, vector<128x128xf32>, vector<8x128xf32> -> vector<8x128xf32>
    %155 = arith.addf %154, %16 : vector<8x128xf32>
    %cst_92 = arith.constant 0.000000e+00 : f32
    %156 = vector.broadcast %cst_92 : f32 to vector<8x128xf32>
    %157 = arith.maximumf %155, %156 : vector<8x128xf32>
    %cst_93 = arith.constant dense<0.000000e+00> : vector<8x128xf32>
    %158 = tpu.matmul %157, %25, %cst_93 {dimension_numbers = #tpu.dot_dimension_numbers<[1], [0], [0], [1], [0, 0, 1, 1], [], []>} : vector<8x128xf32>, vector<128x128xf32>, vector<8x128xf32> -> vector<8x128xf32>
    %159 = arith.addf %158, %151 : vector<8x128xf32>
    %160 = arith.addf %159, %19 : vector<8x128xf32>
    %161 = math.tanh %160 : vector<8x128xf32>
    %cst_94 = arith.constant 0.000000e+00 : f32
    %162 = vector.broadcast %cst_94 : f32 to vector<8x128xf32>
    %163 = arith.select %10, %161, %162 : vector<8x128xi1>, vector<8x128xf32>
    %164 = arith.select %5, %153, %163 : vector<8x128xi1>, vector<8x128xf32>
    %c5_95 = arith.constant 5 : index
    %c0_96 = arith.constant 0 : index
    %c0_97 = arith.constant 0 : index
    %165 = vector.load %arg6[%c5_95, %c0_96, %c0_97] : memref<8x8x128xf32, #tpu.memory_space<vmem>>, vector<1x8x128xf32>
    %166 = vector.shape_cast %165 : vector<1x8x128xf32> to vector<8x128xf32>
    %167 = vector.shape_cast %164 : vector<8x128xf32> to vector<1x8x128xf32>
    tpu.vector_store %arg6[%c5_95, %c0_96, %c0_97], %167 {strides = array<i32>} : memref<8x8x128xf32, #tpu.memory_space<vmem>>, vector<1x8x128xf32>,
    %cst_98 = arith.constant dense<0.000000e+00> : vector<8x128xf32>
    %168 = tpu.matmul %164, %21, %cst_98 {dimension_numbers = #tpu.dot_dimension_numbers<[1], [0], [0], [1], [0, 0, 1, 1], [], []>} : vector<8x128xf32>, vector<128x128xf32>, vector<8x128xf32> -> vector<8x128xf32>
    %169 = arith.addf %168, %54 : vector<8x128xf32>
    %cst_99 = arith.constant 0.000000e+00 : f32
    %170 = vector.broadcast %cst_99 : f32 to vector<8x128xf32>
    %171 = arith.maximumf %169, %170 : vector<8x128xf32>
    %cst_100 = arith.constant dense<0.000000e+00> : vector<8x128xf32>
    %172 = tpu.matmul %171, %23, %cst_100 {dimension_numbers = #tpu.dot_dimension_numbers<[1], [0], [0], [1], [0, 0, 1, 1], [], []>} : vector<8x128xf32>, vector<128x128xf32>, vector<8x128xf32> -> vector<8x128xf32>
    %173 = arith.addf %172, %16 : vector<8x128xf32>
    %cst_101 = arith.constant 0.000000e+00 : f32
    %174 = vector.broadcast %cst_101 : f32 to vector<8x128xf32>
    %175 = arith.maximumf %173, %174 : vector<8x128xf32>
    %cst_102 = arith.constant dense<0.000000e+00> : vector<8x128xf32>
    %176 = tpu.matmul %175, %25, %cst_102 {dimension_numbers = #tpu.dot_dimension_numbers<[1], [0], [0], [1], [0, 0, 1, 1], [], []>} : vector<8x128xf32>, vector<128x128xf32>, vector<8x128xf32> -> vector<8x128xf32>
    %177 = arith.addf %176, %169 : vector<8x128xf32>
    %178 = arith.addf %177, %19 : vector<8x128xf32>
    %179 = math.tanh %178 : vector<8x128xf32>
    %cst_103 = arith.constant 0.000000e+00 : f32
    %180 = vector.broadcast %cst_103 : f32 to vector<8x128xf32>
    %181 = arith.select %10, %179, %180 : vector<8x128xi1>, vector<8x128xf32>
    %182 = arith.select %5, %171, %181 : vector<8x128xi1>, vector<8x128xf32>
    %c6_104 = arith.constant 6 : index
    %c0_105 = arith.constant 0 : index
    %c0_106 = arith.constant 0 : index
    %183 = vector.load %arg6[%c6_104, %c0_105, %c0_106] : memref<8x8x128xf32, #tpu.memory_space<vmem>>, vector<1x8x128xf32>
    %184 = vector.shape_cast %183 : vector<1x8x128xf32> to vector<8x128xf32>
    %185 = vector.shape_cast %182 : vector<8x128xf32> to vector<1x8x128xf32>
    tpu.vector_store %arg6[%c6_104, %c0_105, %c0_106], %185 {strides = array<i32>} : memref<8x8x128xf32, #tpu.memory_space<vmem>>, vector<1x8x128xf32>,
    %cst_107 = arith.constant dense<0.000000e+00> : vector<8x128xf32>
    %186 = tpu.matmul %182, %21, %cst_107 {dimension_numbers = #tpu.dot_dimension_numbers<[1], [0], [0], [1], [0, 0, 1, 1], [], []>} : vector<8x128xf32>, vector<128x128xf32>, vector<8x128xf32> -> vector<8x128xf32>
    %187 = arith.addf %186, %58 : vector<8x128xf32>
    %cst_108 = arith.constant 0.000000e+00 : f32
    %188 = vector.broadcast %cst_108 : f32 to vector<8x128xf32>
    %189 = arith.maximumf %187, %188 : vector<8x128xf32>
    %cst_109 = arith.constant dense<0.000000e+00> : vector<8x128xf32>
    %190 = tpu.matmul %189, %23, %cst_109 {dimension_numbers = #tpu.dot_dimension_numbers<[1], [0], [0], [1], [0, 0, 1, 1], [], []>} : vector<8x128xf32>, vector<128x128xf32>, vector<8x128xf32> -> vector<8x128xf32>
    %191 = arith.addf %190, %16 : vector<8x128xf32>
    %cst_110 = arith.constant 0.000000e+00 : f32
    %192 = vector.broadcast %cst_110 : f32 to vector<8x128xf32>
    %193 = arith.maximumf %191, %192 : vector<8x128xf32>
    %cst_111 = arith.constant dense<0.000000e+00> : vector<8x128xf32>
    %194 = tpu.matmul %193, %25, %cst_111 {dimension_numbers = #tpu.dot_dimension_numbers<[1], [0], [0], [1], [0, 0, 1, 1], [], []>} : vector<8x128xf32>, vector<128x128xf32>, vector<8x128xf32> -> vector<8x128xf32>
    %195 = arith.addf %194, %187 : vector<8x128xf32>
    %196 = arith.addf %195, %19 : vector<8x128xf32>
    %197 = math.tanh %196 : vector<8x128xf32>
    %cst_112 = arith.constant 0.000000e+00 : f32
    %198 = vector.broadcast %cst_112 : f32 to vector<8x128xf32>
    %199 = arith.select %10, %197, %198 : vector<8x128xi1>, vector<8x128xf32>
    %200 = arith.select %5, %189, %199 : vector<8x128xi1>, vector<8x128xf32>
    %c7_113 = arith.constant 7 : index
    %c0_114 = arith.constant 0 : index
    %c0_115 = arith.constant 0 : index
    %201 = vector.load %arg6[%c7_113, %c0_114, %c0_115] : memref<8x8x128xf32, #tpu.memory_space<vmem>>, vector<1x8x128xf32>
    %202 = vector.shape_cast %201 : vector<1x8x128xf32> to vector<8x128xf32>
    %203 = vector.shape_cast %200 : vector<8x128xf32> to vector<1x8x128xf32>
    tpu.vector_store %arg6[%c7_113, %c0_114, %c0_115], %203 {strides = array<i32>} : memref<8x8x128xf32, #tpu.memory_space<vmem>>, vector<1x8x128xf32>,
    %c0_116 = arith.constant 0 : index
    %c0_117 = arith.constant 0 : index
    %204 = vector.load %arg7[%c0_116, %c0_117] : memref<8x128xf32, #tpu.memory_space<vmem>>, vector<8x128xf32>
    tpu.vector_store %arg7[%c0_116, %c0_117], %200 {strides = array<i32>} : memref<8x128xf32, #tpu.memory_space<vmem>>, vector<8x128xf32>,
    return
  }
  func.func @transform_0(%arg0: i32) -> (i32, i32, i32) {
    %c0_i32 = arith.constant 0 : i32
    %c0_i32_0 = arith.constant 0 : i32
    %c0_i32_1 = arith.constant 0 : i32
    return %arg0, %c0_i32, %c0_i32_0 : i32, i32, i32
  }
  func.func @transform_1(%arg0: i32) -> (i32, i32) {
    %c0_i32 = arith.constant 0 : i32
    %c0_i32_0 = arith.constant 0 : i32
    %c0_i32_1 = arith.constant 0 : i32
    return %c0_i32, %c0_i32_0 : i32, i32
  }
  func.func @transform_2(%arg0: i32) -> (i32, i32, i32) {
    %c0_i32 = arith.constant 0 : i32
    %c0_i32_0 = arith.constant 0 : i32
    %c0_i32_1 = arith.constant 0 : i32
    %c0_i32_2 = arith.constant 0 : i32
    return %c0_i32, %c0_i32_0, %c0_i32_1 : i32, i32, i32
  }
  func.func @transform_3(%arg0: i32) -> (i32, i32) {
    %c0_i32 = arith.constant 0 : i32
    %c0_i32_0 = arith.constant 0 : i32
    %c0_i32_1 = arith.constant 0 : i32
    return %c0_i32, %c0_i32_0 : i32, i32
  }
  func.func @transform_4(%arg0: i32) -> (i32, i32) {
    %c0_i32 = arith.constant 0 : i32
    %c0_i32_0 = arith.constant 0 : i32
    %c0_i32_1 = arith.constant 0 : i32
    return %c0_i32, %c0_i32_0 : i32, i32
  }
  func.func @transform_5(%arg0: i32) -> (i32, i32, i32) {
    %c0_i32 = arith.constant 0 : i32
    %c0_i32_0 = arith.constant 0 : i32
    %c0_i32_1 = arith.constant 0 : i32
    return %arg0, %c0_i32, %c0_i32_0 : i32, i32, i32
  }
}

</mosaic_0001>

<llo_original>
// kernel: tpu_custom_call.1
$region0: #{tpu_custom_call.1}
  #allocation0 [shape = 'u32[]', space=smem, size = 0x4, offset = 0x4, fixed_abs, tag = 'smem constant byte address 0x4 - core index']
  #allocation1 [shape = 'u32[144,128]{1,0:T(1,128)}', space=vmem, size = 0x12000, scoped, tag = 'internal scratch']
  #allocation2 [shape = 'f32[8,128]{1,0:T(8,128)}', space=vmem, size = 0x1000, scoped, tag = 'scratch operand']
  %s0 = inlined_call_operand.vmem [shape: f32[24,8,16], index: 0, kind: input, shape index: {}]
  %s1 = inlined_call_operand.vmem [shape: f32[8,128], index: 1, kind: input, shape index: {}]
  %s2 = inlined_call_operand.hbm [shape: f32[3,128,128], index: 2, kind: input, shape index: {}]
  %s3 = inlined_call_operand.vmem [shape: f32[16,128], index: 3, kind: input, shape index: {}]
  %s4 = inlined_call_operand.vmem [shape: f32[8,128], index: 4, kind: input, shape index: {}]
  %s5 = inlined_call_operand.hbm [shape: f32[24,8,128], index: 5, kind: output, shape index: {}]
  %s6 = sld [smem:[#allocation0]]
  $region61: #{tpu_custom_call.1} parent=0
    _
  %s8 = ssub.s32 1, %s6
  %s9 = scalar_select 0, %s8, %s6
  $region1: #{tpu_custom_call.1} parent=0
    #allocation3 [shape = 'u8[196608]{0}', space=vmem, size = 0x30000, scoped, tag = 'input window, operand 2, single buffered']
    #allocation4 [shape = 's32[2]{0}', space=sflag, size = 0x8, scoped, tag = 'scoped memory for tpu_custom_call.1']
    #allocation5 [shape = 's32[2]{0}', space=sflag, size = 0x8, scoped, tag = 'scoped memory for tpu_custom_call.1']
    #allocation6 [shape = 'u8[65536]{0}', space=vmem, size = 0x10000, scoped, tag = 'output window, operand 0']
    %10 = vsyncpa [#allocation4], 0
    %11 = vsyncpa [#allocation5], 0
    %s12 = scalar_lea.sflag [#allocation5], 1
    %13 = vsyncpa %s12, 0
    loop: start=0, step=1, limit=5
    $region2: #{tpu_custom_call.1} parent=1 // loop_pre_header
      _
    $region3: #{tpu_custom_call.1} parent=1 // loop_header
      %s15 = sphi 0, %s19
      %p16 = scmp.ge.s32.totalorder %s15, 5
      %s25 = sphi 0, %s27
      %s28 = sphi 0, %s25
      %s29 = sphi 0, %s28
      %s45 = sphi 0, %s29
      %s49 = sphi 0, %s49
      %s51 = sphi 0, %s49
      %s52 = sphi 0, %s51
      %s66 = sphi 0, %s52
      %s70 = sphi 0, %s70
      %s72 = sphi 0, %s70
      %s73 = sphi 0, %s72
      %s87 = sphi 0, %s73
      %s91 = sphi 0, %s91
      %s93 = sphi 0, %s91
      %s94 = sphi 0, %s93
      %s108 = sphi 0, %s94
      %s112 = sphi 0, %s112
      %s114 = sphi 0, %s112
      %s115 = sphi 0, %s114
      %s129 = sphi 0, %s115
      %s135 = sphi 0, %s137
      %s138 = sphi 0, %s135
      %s139 = sphi 0, %s138
      %s155 = sphi 0, %s139
    $region4: #{tpu_custom_call.1} parent=1 // loop_header_branch
      %18 = sbr.rel (%p16) target = $region8
    $region5: #{tpu_custom_call.1} parent=1 // loop_body
      %s20 = ssub.s32 %s15, 1
      %s21 = ssub.s32 %s15, 2
      %s22 = sadd.s32 %s15, 1
      %s23 = ssub.s32 %s15, %s22
      %p24 = scmp.eq.s32.totalorder %s23, 0
      %s26 = sadd.s32 %s25, 1
      %s27 = scalar_select %p24, %s25, %s26
      %p30 = pneg %p24
      %p31 = scmp.eq.s32.totalorder %s15, 2
      %p32 = por %p30, %p31
      %p33 = scmp.ne.s32.totalorder %s25, %s28
      %p34 = scmp.eq.s32.totalorder %s15, 0
      %p35 = por %p33, %p34
      %p36 = scmp.ne.s32.totalorder %s25, %s28
      %p37 = scmp.eq.s32.totalorder %s20, 2
      %p38 = por %p36, %p37
      %p39 = scmp.ne.s32.totalorder %s28, %s29
      %p40 = scmp.eq.s32.totalorder %s20, 0
      %p41 = por %p39, %p40
      %p42 = scmp.ne.s32.totalorder %s28, %s29
      %p43 = scmp.eq.s32.totalorder %s21, 2
      %p44 = por %p42, %p43
      %p46 = scmp.ne.s32.totalorder %s29, %s45
      %p47 = scmp.eq.s32.totalorder %s21, 0
      %p48 = por %p46, %p47
      %s50 = sadd.s32 %s49, 1
      %p53 = scmp.eq.s32.totalorder %s15, 2
      %p54 = scmp.ne.s32.totalorder %s49, %s51
      %p55 = scmp.eq.s32.totalorder %s15, 0
      %p56 = por %p54, %p55
      %p57 = scmp.ne.s32.totalorder %s49, %s51
      %p58 = scmp.eq.s32.totalorder %s20, 2
      %p59 = por %p57, %p58
      %p60 = scmp.ne.s32.totalorder %s51, %s52
      %p61 = scmp.eq.s32.totalorder %s20, 0
      %p62 = por %p60, %p61
      %p63 = scmp.ne.s32.totalorder %s51, %s52
      %p64 = scmp.eq.s32.totalorder %s21, 2
      %p65 = por %p63, %p64
      %p67 = scmp.ne.s32.totalorder %s52, %s66
      %p68 = scmp.eq.s32.totalorder %s21, 0
      %p69 = por %p67, %p68
      %s71 = sadd.s32 %s70, 1
      %p74 = scmp.eq.s32.totalorder %s15, 2
      %p75 = scmp.ne.s32.totalorder %s70, %s72
      %p76 = scmp.eq.s32.totalorder %s15, 0
      %p77 = por %p75, %p76
      %p78 = scmp.ne.s32.totalorder %s70, %s72
      %p79 = scmp.eq.s32.totalorder %s20, 2
      %p80 = por %p78, %p79
      %p81 = scmp.ne.s32.totalorder %s72, %s73
      %p82 = scmp.eq.s32.totalorder %s20, 0
      %p83 = por %p81, %p82
      %p84 = scmp.ne.s32.totalorder %s72, %s73
      %p85 = scmp.eq.s32.totalorder %s21, 2
      %p86 = por %p84, %p85
      %p88 = scmp.ne.s32.totalorder %s73, %s87
      %p89 = scmp.eq.s32.totalorder %s21, 0
      %p90 = por %p88, %p89
      %s92 = sadd.s32 %s91, 1
      %p95 = scmp.eq.s32.totalorder %s15, 2
      %p96 = scmp.ne.s32.totalorder %s91, %s93
      %p97 = scmp.eq.s32.totalorder %s15, 0
      %p98 = por %p96, %p97
      %p99 = scmp.ne.s32.totalorder %s91, %s93
      %p100 = scmp.eq.s32.totalorder %s20, 2
      %p101 = por %p99, %p100
      %p102 = scmp.ne.s32.totalorder %s93, %s94
      %p103 = scmp.eq.s32.totalorder %s20, 0
      %p104 = por %p102, %p103
      %p105 = scmp.ne.s32.totalorder %s93, %s94
      %p106 = scmp.eq.s32.totalorder %s21, 2
      %p107 = por %p105, %p106
      %p109 = scmp.ne.s32.totalorder %s94, %s108
      %p110 = scmp.eq.s32.totalorder %s21, 0
      %p111 = por %p109, %p110
      %s113 = sadd.s32 %s112, 1
      %p116 = scmp.eq.s32.totalorder %s15, 2
      %p117 = scmp.ne.s32.totalorder %s112, %s114
      %p118 = scmp.eq.s32.totalorder %s15, 0
      %p119 = por %p117, %p118
      %p120 = scmp.ne.s32.totalorder %s112, %s114
      %p121 = scmp.eq.s32.totalorder %s20, 2
      %p122 = por %p120, %p121
      %p123 = scmp.ne.s32.totalorder %s114, %s115
      %p124 = scmp.eq.s32.totalorder %s20, 0
      %p125 = por %p123, %p124
      %p126 = scmp.ne.s32.totalorder %s114, %s115
      %p127 = scmp.eq.s32.totalorder %s21, 2
      %p128 = por %p126, %p127
      %p130 = scmp.ne.s32.totalorder %s115, %s129
      %p131 = scmp.eq.s32.totalorder %s21, 0
      %p132 = por %p130, %p131
      %s133 = ssub.s32 %s15, %s22
      %p134 = scmp.eq.s32.totalorder %s133, 0
      %s136 = sadd.s32 %s135, 1
      %s137 = scalar_select %p134, %s135, %s136
      %p140 = pneg %p134
      %p141 = scmp.eq.s32.totalorder %s15, 2
      %p142 = por %p140, %p141
      %p143 = scmp.ne.s32.totalorder %s135, %s138
      %p144 = scmp.eq.s32.totalorder %s15, 0
      %p145 = por %p143, %p144
      %p146 = scmp.ne.s32.totalorder %s135, %s138
      %p147 = scmp.eq.s32.totalorder %s20, 2
      %p148 = por %p146, %p147
      %p149 = scmp.ne.s32.totalorder %s138, %s139
      %p150 = scmp.eq.s32.totalorder %s20, 0
      %p151 = por %p149, %p150
      %p152 = scmp.ne.s32.totalorder %s138, %s139
      %p153 = scmp.eq.s32.totalorder %s21, 2
      %p154 = por %p152, %p153
      %p156 = scmp.ne.s32.totalorder %s139, %s155
      %p157 = scmp.eq.s32.totalorder %s21, 0
      %p158 = por %p156, %p157
      %p159 = scmp.le.s32.totalorder 1, %s15
      %p160 = scmp.lt.s32.totalorder %s15, 4
      %p161 = pnand %p159, %p160
      %p162 = pneg %p161
      // Predicated region
      $region9: #{tpu_custom_call.1} parent=5 // pred_check
        _
      $region10: #{tpu_custom_call.1} parent=5 // pred_check_branch
        %164 = sbr.rel (%p161) target = $region12
      $region11: #{tpu_custom_call.1} parent=5 // pred_region
        %s165 = ssub.s32 %s15, 1
        // Predicated region
        $region13: #{tpu_custom_call.1} parent=11 // pred_check
          %p166 = pneg %p62
        $region14: #{tpu_custom_call.1} parent=11 // pred_check_branch
          %168 = sbr.rel (%p166) target = $region16
        $region15: #{tpu_custom_call.1} parent=11 // pred_region
          _
        $region16: #{tpu_custom_call.1} parent=11 // pred_fallthru
          _
        // Predicated region
        $region17: #{tpu_custom_call.1} parent=11 // pred_check
          %p169 = pneg %p83
        $region18: #{tpu_custom_call.1} parent=11 // pred_check_branch
          %171 = sbr.rel (%p169) target = $region20
        $region19: #{tpu_custom_call.1} parent=11 // pred_region
          %s173 = ssub.s32 6144, 6144
          %174 = vsyncadd [#allocation4], %s173
          %s175 = sshll.u32 [#allocation3], 4
          %s176 = int_to_ptr.vmem [resolvable:$true] %s175
          %181 = dma.hbm_to_vmem [thread:$0]  %s2, 6144, %s176, [#allocation4], 128, 128, 8
        $region20: #{tpu_custom_call.1} parent=11 // pred_fallthru
          _
        // Predicated region
        $region21: #{tpu_custom_call.1} parent=11 // pred_check
          %p182 = pneg %p104
        $region22: #{tpu_custom_call.1} parent=11 // pred_check_branch
          %184 = sbr.rel (%p182) target = $region24
        $region23: #{tpu_custom_call.1} parent=11 // pred_region
          _
        $region24: #{tpu_custom_call.1} parent=11 // pred_fallthru
          _
        // Predicated region
        $region25: #{tpu_custom_call.1} parent=11 // pred_check
          %p185 = pneg %p125
        $region26: #{tpu_custom_call.1} parent=11 // pred_check_branch
          %187 = sbr.rel (%p185) target = $region28
        $region27: #{tpu_custom_call.1} parent=11 // pred_region
          _
        $region28: #{tpu_custom_call.1} parent=11 // pred_fallthru
          _
      $region12: #{tpu_custom_call.1} parent=5 // pred_fallthru
        _
      %p188 = scmp.lt.s32.totalorder %s15, 3
      // Predicated region
      $region29: #{tpu_custom_call.1} parent=5 // pred_check
        %p189 = pneg %p188
      $region30: #{tpu_custom_call.1} parent=5 // pred_check_branch
        %191 = sbr.rel (%p189) target = $region32
      $region31: #{tpu_custom_call.1} parent=5 // pred_region
        // Predicated region
        $region33: #{tpu_custom_call.1} parent=31 // pred_check
          %p192 = pneg %p35
        $region34: #{tpu_custom_call.1} parent=31 // pred_check_branch
          %194 = sbr.rel (%p192) target = $region36
        $region35: #{tpu_custom_call.1} parent=31 // pred_region
          %s195 = smul.u32 8, %s15
          %p196 = scmp.lt.s32.totalorder %s195, 23
          %s197 = scalar_select %p196, %s195, 23
          %s198 = smul.addr %s197, 8
          %s199 = scalar_lea.vmem %s0, %s198
          %s200 = smul.u32 8, %s15
        $region36: #{tpu_custom_call.1} parent=31 // pred_fallthru
          _
      $region32: #{tpu_custom_call.1} parent=5 // pred_fallthru
        _
      %p201 = scmp.le.s32.totalorder 1, %s15
      %p202 = scmp.lt.s32.totalorder %s15, 4
      %p203 = pnand %p201, %p202
      %p204 = pneg %p203
      // Predicated region
      $region37: #{tpu_custom_call.1} parent=5 // pred_check
        _
      $region38: #{tpu_custom_call.1} parent=5 // pred_check_branch
        %206 = sbr.rel (%p203) target = $region40
      $region39: #{tpu_custom_call.1} parent=5 // pred_region
        %s207 = ssub.s32 %s15, 1
        // Predicated region
        $region41: #{tpu_custom_call.1} parent=39 // pred_check
          %p208 = pneg %p83
        $region42: #{tpu_custom_call.1} parent=39 // pred_check_branch
          %210 = sbr.rel (%p208) target = $region44
        $region43: #{tpu_custom_call.1} parent=39 // pred_region
          %211 = dma.done [#allocation4], 6144
        $region44: #{tpu_custom_call.1} parent=39 // pred_fallthru
          _
        %s212 = smul.u32 8, %s20
        %p213 = scmp.lt.s32.totalorder %s212, 23
        %s214 = scalar_select %p213, %s212, 23
        %s215 = smul.addr %s214, 8
        %s216 = scalar_lea.vmem %s0, %s215
        %p217 = pneg %p41
        %p218 = pneg %p38
        %p219 = pneg %p62
        %p220 = pneg %p59
        %p221 = pneg %p83
        %p222 = pneg %p80
        %p223 = pneg %p104
        %p224 = pneg %p101
        %p225 = pneg %p125
        %p226 = pneg %p122
        %p227 = pneg %p151
        %p228 = pneg %p148
        %s229 = sand.u32 %s138, 1
        %s230 = scalar_lea.sflag [#allocation5], %s229
        %s231 = sand.u32 %s138, 1
        %s232 = smul.addr %s231, 64
        %s233 = scalar_lea.vmem [#allocation6], %s232
        %s234 = smul.u32 8, %s20
        %p235 = scmp.lt.s32.totalorder %s234, 23
        %s236 = scalar_select %p235, %s234, 23
        %s237 = smul.addr %s236, 8
        %s238 = scalar_lea.vmem %s0, %s237
        %s239 = smul.u32 8, %s20
        %s240 = smul.u32 8, %s20
        %p241 = scmp.eq.s32.totalorder %s20, 0
        // Predicated region
        $region45: #{tpu_custom_call.1} parent=39 // pred_check
          %p242 = pneg %p241
        $region46: #{tpu_custom_call.1} parent=39 // pred_check_branch
          %244 = sbr.rel (%p242) target = $region48
        $region47: #{tpu_custom_call.1} parent=39 // pred_region
          %v245 = vld [vmem:[%s1] sm:$0xff]
          %246 = vst [vmem:[#allocation2] sm:$0xff] %v245
        $region48: #{tpu_custom_call.1} parent=39 // pred_fallthru
          _
        %v247 = vlaneseq
        %v248 = vand.u32 %v247, 127
        %vm249 = vcmp.lt.s32.totalorder %v248, 32
        %vm250 = vcmp.ge.s32.totalorder %v248, 32
        %vm251 = vcmp.lt.s32.totalorder %v248, 40
        %vm252 = vmand %vm250, %vm251
        %v253 = vld [vmem:[%s4] sm:$0x1]
        %v254 = vlaneseq
        %v255 = vshrl.u32 %v254, 7
        %v256 = vsub.s32 0, %v255
        %v257 = vrot.slane %v253, %v256
        %v258 = vld [vmem:[%s4 + $0x1] sm:$0x1]
        %v259 = vlaneseq
        %v260 = vshrl.u32 %v259, 7
        %v261 = vsub.s32 0, %v260
        %v262 = vrot.slane %v258, %v261
        %v263 = vld [vmem:[%s4 + $0x2] sm:$0x1]
        %v264 = vlaneseq
        %v265 = vshrl.u32 %v264, 7
        %v266 = vsub.s32 0, %v265
        %v267 = vrot.slane %v263, %v266
        %v268 = vld [vmem:[#allocation3] sm:$0xff]
        %v269 = vld [vmem:[#allocation3 + $0x8] sm:$0xff]
        %v270 = vld [vmem:[#allocation3 + $0x10] sm:$0xff]
        %v271 = vld [vmem:[#allocation3 + $0x18] sm:$0xff]
        %v272 = vld [vmem:[#allocation3 + $0x20] sm:$0xff]
        %v273 = vld [vmem:[#allocation3 + $0x28] sm:$0xff]
        %v274 = vld [vmem:[#allocation3 + $0x30] sm:$0xff]
        %v275 = vld [vmem:[#allocation3 + $0x38] sm:$0xff]
        %v276 = vld [vmem:[#allocation3 + $0x40] sm:$0xff]
        %v277 = vld [vmem:[#allocation3 + $0x48] sm:$0xff]
        %v278 = vld [vmem:[#allocation3 + $0x50] sm:$0xff]
        %v279 = vld [vmem:[#allocation3 + $0x58] sm:$0xff]
        %v280 = vld [vmem:[#allocation3 + $0x60] sm:$0xff]
        %v281 = vld [vmem:[#allocation3 + $0x68] sm:$0xff]
        %v282 = vld [vmem:[#allocation3 + $0x70] sm:$0xff]
        %v283 = vld [vmem:[#allocation3 + $0x78] sm:$0xff]
        %s284 = scalar_lea.vmem [#allocation3], 128
        %v285 = vld [vmem:[%s284] sm:$0xff]
        %v286 = vld [vmem:[%s284 + $0x8] sm:$0xff]
        %v287 = vld [vmem:[%s284 + $0x10] sm:$0xff]
        %v288 = vld [vmem:[%s284 + $0x18] sm:$0xff]
        %v289 = vld [vmem:[%s284 + $0x20] sm:$0xff]
        %v290 = vld [vmem:[%s284 + $0x28] sm:$0xff]
        %v291 = vld [vmem:[%s284 + $0x30] sm:$0xff]
        %v292 = vld [vmem:[%s284 + $0x38] sm:$0xff]
        %v293 = vld [vmem:[%s284 + $0x40] sm:$0xff]
        %v294 = vld [vmem:[%s284 + $0x48] sm:$0xff]
        %v295 = vld [vmem:[%s284 + $0x50] sm:$0xff]
        %v296 = vld [vmem:[%s284 + $0x58] sm:$0xff]
        %v297 = vld [vmem:[%s284 + $0x60] sm:$0xff]
        %v298 = vld [vmem:[%s284 + $0x68] sm:$0xff]
        %v299 = vld [vmem:[%s284 + $0x70] sm:$0xff]
        %v300 = vld [vmem:[%s284 + $0x78] sm:$0xff]
        %s301 = scalar_lea.vmem [#allocation3], 256
        %v302 = vld [vmem:[%s301] sm:$0xff]
        %v303 = vld [vmem:[%s301 + $0x8] sm:$0xff]
        %v304 = vld [vmem:[%s301 + $0x10] sm:$0xff]
        %v305 = vld [vmem:[%s301 + $0x18] sm:$0xff]
        %v306 = vld [vmem:[%s301 + $0x20] sm:$0xff]
        %v307 = vld [vmem:[%s301 + $0x28] sm:$0xff]
        %v308 = vld [vmem:[%s301 + $0x30] sm:$0xff]
        %v309 = vld [vmem:[%s301 + $0x38] sm:$0xff]
        %v310 = vld [vmem:[%s301 + $0x40] sm:$0xff]
        %v311 = vld [vmem:[%s301 + $0x48] sm:$0xff]
        %v312 = vld [vmem:[%s301 + $0x50] sm:$0xff]
        %v313 = vld [vmem:[%s301 + $0x58] sm:$0xff]
        %v314 = vld [vmem:[%s301 + $0x60] sm:$0xff]
        %v315 = vld [vmem:[%s301 + $0x68] sm:$0xff]
        %v316 = vld [vmem:[%s301 + $0x70] sm:$0xff]
        %v317 = vld [vmem:[%s301 + $0x78] sm:$0xff]
        %v318 = vld [vmem:[%s3] sm:$0xff]
        %v319 = vld [vmem:[%s3 + $0x8] sm:$0xff]
        %v320 = vld [vmem:[%s238] sm:$0xff]
        %vm321 = vcmask 130048
        %v323 = vsel %vm321, %v320, 0
        %325 = vmatprep.subr.mxu0 0.0
        %326 = vmatpush1.msra.mxu0 %v318
        %327 = vmatprep.subr.mxu0 0.0
        %328 = vmatpush1.msra.mxu0 %v319
        %329 = vmatprep.subr.mxu0 0.0
        %330 = vmatpush1.msra.mxu0 0.0
        %331 = vmatprep.subr.mxu0 0.0
        %332 = vmatpush1.msra.mxu0 0.0
        %333 = vmatprep.subr.mxu0 0.0
        %334 = vmatpush1.msra.mxu0 0.0
        %335 = vmatprep.subr.mxu0 0.0
        %336 = vmatpush1.msra.mxu0 0.0
        %337 = vmatprep.subr.mxu0 0.0
        %338 = vmatpush1.msra.mxu0 0.0
        %339 = vmatprep.subr.mxu0 0.0
        %340 = vmatpush1.msra.mxu0 0.0
        %341 = vmatprep.subr.mxu0 0.0
        %342 = vmatpush1.msra.mxu0 0.0
        %343 = vmatprep.subr.mxu0 0.0
        %344 = vmatpush1.msra.mxu0 0.0
        %345 = vmatprep.subr.mxu0 0.0
        %346 = vmatpush1.msra.mxu0 0.0
        %347 = vmatprep.subr.mxu0 0.0
        %348 = vmatpush1.msra.mxu0 0.0
        %349 = vmatprep.subr.mxu0 0.0
        %350 = vmatpush1.msra.mxu0 0.0
        %351 = vmatprep.subr.mxu0 0.0
        %352 = vmatpush1.msra.mxu0 0.0
        %353 = vmatprep.subr.mxu0 0.0
        %354 = vmatpush1.msra.mxu0 0.0
        %355 = vmatprep.subr.mxu0 0.0
        %356 = vmatpush1.msra.mxu0 0.0
        %357 = vmatprep.subr.mxu0 0.0
        %358 = vmatpush1.msra.mxu0 0.0
        %359 = vmatprep.subr.mxu0 0.0
        %360 = vmatpush1.msra.mxu0 0.0
        %361 = vmatprep.subr.mxu0 0.0
        %362 = vmatpush1.msra.mxu0 0.0
        %363 = vmatprep.subr.mxu0 0.0
        %364 = vmatpush1.msra.mxu0 0.0
        %365 = vmatprep.subr.mxu0 0.0
        %366 = vmatpush1.msra.mxu0 0.0
        %367 = vmatprep.subr.mxu0 0.0
        %368 = vmatpush1.msra.mxu0 0.0
        %369 = vmatprep.subr.mxu0 0.0
        %370 = vmatpush1.msra.mxu0 0.0
        %371 = vmatprep.subr.mxu0 0.0
        %372 = vmatpush1.msra.mxu0 0.0
        %373 = vmatprep.subr.mxu0 0.0
        %374 = vmatpush1.msra.mxu0 0.0
        %375 = vmatprep.subr.mxu0 0.0
        %376 = vmatpush1.msra.mxu0 0.0
        %377 = vmatprep.subr.mxu0 0.0
        %378 = vmatpush1.msra.mxu0 0.0
        %379 = vmatprep.subr.mxu0 0.0
        %380 = vmatpush1.msra.mxu0 0.0
        %381 = vmatprep.subr.mxu0 0.0
        %382 = vmatpush1.msra.mxu0 0.0
        %383 = vmatprep.subr.mxu0 0.0
        %384 = vmatpush1.msra.mxu0 0.0
        %385 = vmatprep.subr.mxu0 0.0
        %386 = vmatpush1.msra.mxu0 0.0
        %387 = vmatprep.subr.mxu0 0.0
        %388 = vmatpush1.msra.mxu0 0.0
        %389 = vmatprep.mubr.f32.mxu0 0.0
        %390 = vmatmul.mubr.f32.gmra.mrb[0].mxu0 %v323
        %v391 = vpop.f32.mrb[0].mxu0
        %v392 = vadd.f32 %v257, %v391
        %v393 = vpop.f32.mrb[0].mxu0
        %394 = vdwg.mxu0
        %s395 = scalar_lea.vmem %s238, 8
        %v396 = vld [vmem:[%s395] sm:$0xff]
        %v398 = vsel %vm321, %v396, 0
        %400 = vmatprep.subr.mxu0 0.0
        %401 = vmatpush1.msra.mxu0 %v318
        %402 = vmatprep.subr.mxu0 0.0
        %403 = vmatpush1.msra.mxu0 %v319
        %404 = vmatprep.subr.mxu0 0.0
        %405 = vmatpush1.msra.mxu0 0.0
        %406 = vmatprep.subr.mxu0 0.0
        %407 = vmatpush1.msra.mxu0 0.0
        %408 = vmatprep.subr.mxu0 0.0
        %409 = vmatpush1.msra.mxu0 0.0
        %410 = vmatprep.subr.mxu0 0.0
        %411 = vmatpush1.msra.mxu0 0.0
        %412 = vmatprep.subr.mxu0 0.0
        %413 = vmatpush1.msra.mxu0 0.0
        %414 = vmatprep.subr.mxu0 0.0
        %415 = vmatpush1.msra.mxu0 0.0
        %416 = vmatprep.subr.mxu0 0.0
        %417 = vmatpush1.msra.mxu0 0.0
        %418 = vmatprep.subr.mxu0 0.0
        %419 = vmatpush1.msra.mxu0 0.0
        %420 = vmatprep.subr.mxu0 0.0
        %421 = vmatpush1.msra.mxu0 0.0
        %422 = vmatprep.subr.mxu0 0.0
        %423 = vmatpush1.msra.mxu0 0.0
        %424 = vmatprep.subr.mxu0 0.0
        %425 = vmatpush1.msra.mxu0 0.0
        %426 = vmatprep.subr.mxu0 0.0
        %427 = vmatpush1.msra.mxu0 0.0
        %428 = vmatprep.subr.mxu0 0.0
        %429 = vmatpush1.msra.mxu0 0.0
        %430 = vmatprep.subr.mxu0 0.0
        %431 = vmatpush1.msra.mxu0 0.0
        %432 = vmatprep.subr.mxu0 0.0
        %433 = vmatpush1.msra.mxu0 0.0
        %434 = vmatprep.subr.mxu0 0.0
        %435 = vmatpush1.msra.mxu0 0.0
        %436 = vmatprep.subr.mxu0 0.0
        %437 = vmatpush1.msra.mxu0 0.0
        %438 = vmatprep.subr.mxu0 0.0
        %439 = vmatpush1.msra.mxu0 0.0
        %440 = vmatprep.subr.mxu0 0.0
        %441 = vmatpush1.msra.mxu0 0.0
        %442 = vmatprep.subr.mxu0 0.0
        %443 = vmatpush1.msra.mxu0 0.0
        %444 = vmatprep.subr.mxu0 0.0
        %445 = vmatpush1.msra.mxu0 0.0
        %446 = vmatprep.subr.mxu0 0.0
        %447 = vmatpush1.msra.mxu0 0.0
        %448 = vmatprep.subr.mxu0 0.0
        %449 = vmatpush1.msra.mxu0 0.0
        %450 = vmatprep.subr.mxu0 0.0
        %451 = vmatpush1.msra.mxu0 0.0
        %452 = vmatprep.subr.mxu0 0.0
        %453 = vmatpush1.msra.mxu0 0.0
        %454 = vmatprep.subr.mxu0 0.0
        %455 = vmatpush1.msra.mxu0 0.0
        %456 = vmatprep.subr.mxu0 0.0
        %457 = vmatpush1.msra.mxu0 0.0
        %458 = vmatprep.subr.mxu0 0.0
        %459 = vmatpush1.msra.mxu0 0.0
        %460 = vmatprep.subr.mxu0 0.0
        %461 = vmatpush1.msra.mxu0 0.0
        %462 = vmatprep.subr.mxu0 0.0
        %463 = vmatpush1.msra.mxu0 0.0
        %464 = vmatprep.mubr.f32.mxu0 0.0
        %465 = vmatmul.mubr.f32.gmra.mrb[0].mxu0 %v398
        %v466 = vpop.f32.mrb[0].mxu0
        %v467 = vadd.f32 %v257, %v466
        %v468 = vpop.f32.mrb[0].mxu0
        %469 = vdwg.mxu0
        %s470 = scalar_lea.vmem %s238, 16
        %v471 = vld [vmem:[%s470] sm:$0xff]
        %v473 = vsel %vm321, %v471, 0
        %475 = vmatprep.subr.mxu0 0.0
        %476 = vmatpush1.msra.mxu0 %v318
        %477 = vmatprep.subr.mxu0 0.0
        %478 = vmatpush1.msra.mxu0 %v319
        %479 = vmatprep.subr.mxu0 0.0
        %480 = vmatpush1.msra.mxu0 0.0
        %481 = vmatprep.subr.mxu0 0.0
        %482 = vmatpush1.msra.mxu0 0.0
        %483 = vmatprep.subr.mxu0 0.0
        %484 = vmatpush1.msra.mxu0 0.0
        %485 = vmatprep.subr.mxu0 0.0
        %486 = vmatpush1.msra.mxu0 0.0
        %487 = vmatprep.subr.mxu0 0.0
        %488 = vmatpush1.msra.mxu0 0.0
        %489 = vmatprep.subr.mxu0 0.0
        %490 = vmatpush1.msra.mxu0 0.0
        %491 = vmatprep.subr.mxu0 0.0
        %492 = vmatpush1.msra.mxu0 0.0
        %493 = vmatprep.subr.mxu0 0.0
        %494 = vmatpush1.msra.mxu0 0.0
        %495 = vmatprep.subr.mxu0 0.0
        %496 = vmatpush1.msra.mxu0 0.0
        %497 = vmatprep.subr.mxu0 0.0
        %498 = vmatpush1.msra.mxu0 0.0
        %499 = vmatprep.subr.mxu0 0.0
        %500 = vmatpush1.msra.mxu0 0.0
        %501 = vmatprep.subr.mxu0 0.0
        %502 = vmatpush1.msra.mxu0 0.0
        %503 = vmatprep.subr.mxu0 0.0
        %504 = vmatpush1.msra.mxu0 0.0
        %505 = vmatprep.subr.mxu0 0.0
        %506 = vmatpush1.msra.mxu0 0.0
        %507 = vmatprep.subr.mxu0 0.0
        %508 = vmatpush1.msra.mxu0 0.0
        %509 = vmatprep.subr.mxu0 0.0
        %510 = vmatpush1.msra.mxu0 0.0
        %511 = vmatprep.subr.mxu0 0.0
        %512 = vmatpush1.msra.mxu0 0.0
        %513 = vmatprep.subr.mxu0 0.0
        %514 = vmatpush1.msra.mxu0 0.0
        %515 = vmatprep.subr.mxu0 0.0
        %516 = vmatpush1.msra.mxu0 0.0
        %517 = vmatprep.subr.mxu0 0.0
        %518 = vmatpush1.msra.mxu0 0.0
        %519 = vmatprep.subr.mxu0 0.0
        %520 = vmatpush1.msra.mxu0 0.0
        %521 = vmatprep.subr.mxu0 0.0
        %522 = vmatpush1.msra.mxu0 0.0
        %523 = vmatprep.subr.mxu0 0.0
        %524 = vmatpush1.msra.mxu0 0.0
        %525 = vmatprep.subr.mxu0 0.0
        %526 = vmatpush1.msra.mxu0 0.0
        %527 = vmatprep.subr.mxu0 0.0
        %528 = vmatpush1.msra.mxu0 0.0
        %529 = vmatprep.subr.mxu0 0.0
        %530 = vmatpush1.msra.mxu0 0.0
        %531 = vmatprep.subr.mxu0 0.0
        %532 = vmatpush1.msra.mxu0 0.0
        %533 = vmatprep.subr.mxu0 0.0
        %534 = vmatpush1.msra.mxu0 0.0
        %535 = vmatprep.subr.mxu0 0.0
        %536 = vmatpush1.msra.mxu0 0.0
        %537 = vmatprep.subr.mxu0 0.0
        %538 = vmatpush1.msra.mxu0 0.0
        %539 = vmatprep.mubr.f32.mxu0 0.0
        %540 = vmatmul.mubr.f32.gmra.mrb[0].mxu0 %v473
        %v541 = vpop.f32.mrb[0].mxu0
        %v542 = vadd.f32 %v257, %v541
        %v543 = vpop.f32.mrb[0].mxu0
        %544 = vdwg.mxu0
        %s545 = scalar_lea.vmem %s238, 24
        %v546 = vld [vmem:[%s545] sm:$0xff]
        %v548 = vsel %vm321, %v546, 0
        %550 = vmatprep.subr.mxu0 0.0
        %551 = vmatpush1.msra.mxu0 %v318
        %552 = vmatprep.subr.mxu0 0.0
        %553 = vmatpush1.msra.mxu0 %v319
        %554 = vmatprep.subr.mxu0 0.0
        %555 = vmatpush1.msra.mxu0 0.0
        %556 = vmatprep.subr.mxu0 0.0
        %557 = vmatpush1.msra.mxu0 0.0
        %558 = vmatprep.subr.mxu0 0.0
        %559 = vmatpush1.msra.mxu0 0.0
        %560 = vmatprep.subr.mxu0 0.0
        %561 = vmatpush1.msra.mxu0 0.0
        %562 = vmatprep.subr.mxu0 0.0
        %563 = vmatpush1.msra.mxu0 0.0
        %564 = vmatprep.subr.mxu0 0.0
        %565 = vmatpush1.msra.mxu0 0.0
        %566 = vmatprep.subr.mxu0 0.0
        %567 = vmatpush1.msra.mxu0 0.0
        %568 = vmatprep.subr.mxu0 0.0
        %569 = vmatpush1.msra.mxu0 0.0
        %570 = vmatprep.subr.mxu0 0.0
        %571 = vmatpush1.msra.mxu0 0.0
        %572 = vmatprep.subr.mxu0 0.0
        %573 = vmatpush1.msra.mxu0 0.0
        %574 = vmatprep.subr.mxu0 0.0
        %575 = vmatpush1.msra.mxu0 0.0
        %576 = vmatprep.subr.mxu0 0.0
        %577 = vmatpush1.msra.mxu0 0.0
        %578 = vmatprep.subr.mxu0 0.0
        %579 = vmatpush1.msra.mxu0 0.0
        %580 = vmatprep.subr.mxu0 0.0
        %581 = vmatpush1.msra.mxu0 0.0
        %582 = vmatprep.subr.mxu0 0.0
        %583 = vmatpush1.msra.mxu0 0.0
        %584 = vmatprep.subr.mxu0 0.0
        %585 = vmatpush1.msra.mxu0 0.0
        %586 = vmatprep.subr.mxu0 0.0
        %587 = vmatpush1.msra.mxu0 0.0
        %588 = vmatprep.subr.mxu0 0.0
        %589 = vmatpush1.msra.mxu0 0.0
        %590 = vmatprep.subr.mxu0 0.0
        %591 = vmatpush1.msra.mxu0 0.0
        %592 = vmatprep.subr.mxu0 0.0
        %593 = vmatpush1.msra.mxu0 0.0
        %594 = vmatprep.subr.mxu0 0.0
        %595 = vmatpush1.msra.mxu0 0.0
        %596 = vmatprep.subr.mxu0 0.0
        %597 = vmatpush1.msra.mxu0 0.0
        %598 = vmatprep.subr.mxu0 0.0
        %599 = vmatpush1.msra.mxu0 0.0
        %600 = vmatprep.subr.mxu0 0.0
        %601 = vmatpush1.msra.mxu0 0.0
        %602 = vmatprep.subr.mxu0 0.0
        %603 = vmatpush1.msra.mxu0 0.0
        %604 = vmatprep.subr.mxu0 0.0
        %605 = vmatpush1.msra.mxu0 0.0
        %606 = vmatprep.subr.mxu0 0.0
        %607 = vmatpush1.msra.mxu0 0.0
        %608 = vmatprep.subr.mxu0 0.0
        %609 = vmatpush1.msra.mxu0 0.0
        %610 = vmatprep.subr.mxu0 0.0
        %611 = vmatpush1.msra.mxu0 0.0
        %612 = vmatprep.subr.mxu0 0.0
        %613 = vmatpush1.msra.mxu0 0.0
        %614 = vmatprep.mubr.f32.mxu0 0.0
        %615 = vmatmul.mubr.f32.gmra.mrb[0].mxu0 %v548
        %v616 = vpop.f32.mrb[0].mxu0
        %v617 = vadd.f32 %v257, %v616
        %v618 = vpop.f32.mrb[0].mxu0
        %619 = vdwg.mxu0
        %s620 = scalar_lea.vmem %s238, 32
        %v621 = vld [vmem:[%s620] sm:$0xff]
        %v623 = vsel %vm321, %v621, 0
        %625 = vmatprep.subr.mxu0 0.0
        %626 = vmatpush1.msra.mxu0 %v318
        %627 = vmatprep.subr.mxu0 0.0
        %628 = vmatpush1.msra.mxu0 %v319
        %629 = vmatprep.subr.mxu0 0.0
        %630 = vmatpush1.msra.mxu0 0.0
        %631 = vmatprep.subr.mxu0 0.0
        %632 = vmatpush1.msra.mxu0 0.0
        %633 = vmatprep.subr.mxu0 0.0
        %634 = vmatpush1.msra.mxu0 0.0
        %635 = vmatprep.subr.mxu0 0.0
        %636 = vmatpush1.msra.mxu0 0.0
        %637 = vmatprep.subr.mxu0 0.0
        %638 = vmatpush1.msra.mxu0 0.0
        %639 = vmatprep.subr.mxu0 0.0
        %640 = vmatpush1.msra.mxu0 0.0
        %641 = vmatprep.subr.mxu0 0.0
        %642 = vmatpush1.msra.mxu0 0.0
        %643 = vmatprep.subr.mxu0 0.0
        %644 = vmatpush1.msra.mxu0 0.0
        %645 = vmatprep.subr.mxu0 0.0
        %646 = vmatpush1.msra.mxu0 0.0
        %647 = vmatprep.subr.mxu0 0.0
        %648 = vmatpush1.msra.mxu0 0.0
        %649 = vmatprep.subr.mxu0 0.0
        %650 = vmatpush1.msra.mxu0 0.0
        %651 = vmatprep.subr.mxu0 0.0
        %652 = vmatpush1.msra.mxu0 0.0
        %653 = vmatprep.subr.mxu0 0.0
        %654 = vmatpush1.msra.mxu0 0.0
        %655 = vmatprep.subr.mxu0 0.0
        %656 = vmatpush1.msra.mxu0 0.0
        %657 = vmatprep.subr.mxu0 0.0
        %658 = vmatpush1.msra.mxu0 0.0
        %659 = vmatprep.subr.mxu0 0.0
        %660 = vmatpush1.msra.mxu0 0.0
        %661 = vmatprep.subr.mxu0 0.0
        %662 = vmatpush1.msra.mxu0 0.0
        %663 = vmatprep.subr.mxu0 0.0
        %664 = vmatpush1.msra.mxu0 0.0
        %665 = vmatprep.subr.mxu0 0.0
        %666 = vmatpush1.msra.mxu0 0.0
        %667 = vmatprep.subr.mxu0 0.0
        %668 = vmatpush1.msra.mxu0 0.0
        %669 = vmatprep.subr.mxu0 0.0
        %670 = vmatpush1.msra.mxu0 0.0
        %671 = vmatprep.subr.mxu0 0.0
        %672 = vmatpush1.msra.mxu0 0.0
        %673 = vmatprep.subr.mxu0 0.0
        %674 = vmatpush1.msra.mxu0 0.0
        %675 = vmatprep.subr.mxu0 0.0
        %676 = vmatpush1.msra.mxu0 0.0
        %677 = vmatprep.subr.mxu0 0.0
        %678 = vmatpush1.msra.mxu0 0.0
        %679 = vmatprep.subr.mxu0 0.0
        %680 = vmatpush1.msra.mxu0 0.0
        %681 = vmatprep.subr.mxu0 0.0
        %682 = vmatpush1.msra.mxu0 0.0
        %683 = vmatprep.subr.mxu0 0.0
        %684 = vmatpush1.msra.mxu0 0.0
        %685 = vmatprep.subr.mxu0 0.0
        %686 = vmatpush1.msra.mxu0 0.0
        %687 = vmatprep.subr.mxu0 0.0
        %688 = vmatpush1.msra.mxu0 0.0
        %689 = vmatprep.mubr.f32.mxu0 0.0
        %690 = vmatmul.mubr.f32.gmra.mrb[0].mxu0 %v623
        %v691 = vpop.f32.mrb[0].mxu0
        %v692 = vadd.f32 %v257, %v691
        %v693 = vpop.f32.mrb[0].mxu0
        %694 = vdwg.mxu0
        %s695 = scalar_lea.vmem %s238, 40
        %v696 = vld [vmem:[%s695] sm:$0xff]
        %v698 = vsel %vm321, %v696, 0
        %700 = vmatprep.subr.mxu0 0.0
        %701 = vmatpush1.msra.mxu0 %v318
        %702 = vmatprep.subr.mxu0 0.0
        %703 = vmatpush1.msra.mxu0 %v319
        %704 = vmatprep.subr.mxu0 0.0
        %705 = vmatpush1.msra.mxu0 0.0
        %706 = vmatprep.subr.mxu0 0.0
        %707 = vmatpush1.msra.mxu0 0.0
        %708 = vmatprep.subr.mxu0 0.0
        %709 = vmatpush1.msra.mxu0 0.0
        %710 = vmatprep.subr.mxu0 0.0
        %711 = vmatpush1.msra.mxu0 0.0
        %712 = vmatprep.subr.mxu0 0.0
        %713 = vmatpush1.msra.mxu0 0.0
        %714 = vmatprep.subr.mxu0 0.0
        %715 = vmatpush1.msra.mxu0 0.0
        %716 = vmatprep.subr.mxu0 0.0
        %717 = vmatpush1.msra.mxu0 0.0
        %718 = vmatprep.subr.mxu0 0.0
        %719 = vmatpush1.msra.mxu0 0.0
        %720 = vmatprep.subr.mxu0 0.0
        %721 = vmatpush1.msra.mxu0 0.0
        %722 = vmatprep.subr.mxu0 0.0
        %723 = vmatpush1.msra.mxu0 0.0
        %724 = vmatprep.subr.mxu0 0.0
        %725 = vmatpush1.msra.mxu0 0.0
        %726 = vmatprep.subr.mxu0 0.0
        %727 = vmatpush1.msra.mxu0 0.0
        %728 = vmatprep.subr.mxu0 0.0
        %729 = vmatpush1.msra.mxu0 0.0
        %730 = vmatprep.subr.mxu0 0.0
        %731 = vmatpush1.msra.mxu0 0.0
        %732 = vmatprep.subr.mxu0 0.0
        %733 = vmatpush1.msra.mxu0 0.0
        %734 = vmatprep.subr.mxu0 0.0
        %735 = vmatpush1.msra.mxu0 0.0
        %736 = vmatprep.subr.mxu0 0.0
        %737 = vmatpush1.msra.mxu0 0.0
        %738 = vmatprep.subr.mxu0 0.0
        %739 = vmatpush1.msra.mxu0 0.0
        %740 = vmatprep.subr.mxu0 0.0
        %741 = vmatpush1.msra.mxu0 0.0
        %742 = vmatprep.subr.mxu0 0.0
        %743 = vmatpush1.msra.mxu0 0.0
        %744 = vmatprep.subr.mxu0 0.0
        %745 = vmatpush1.msra.mxu0 0.0
        %746 = vmatprep.subr.mxu0 0.0
        %747 = vmatpush1.msra.mxu0 0.0
        %748 = vmatprep.subr.mxu0 0.0
        %749 = vmatpush1.msra.mxu0 0.0
        %750 = vmatprep.subr.mxu0 0.0
        %751 = vmatpush1.msra.mxu0 0.0
        %752 = vmatprep.subr.mxu0 0.0
        %753 = vmatpush1.msra.mxu0 0.0
        %754 = vmatprep.subr.mxu0 0.0
        %755 = vmatpush1.msra.mxu0 0.0
        %756 = vmatprep.subr.mxu0 0.0
        %757 = vmatpush1.msra.mxu0 0.0
        %758 = vmatprep.subr.mxu0 0.0
        %759 = vmatpush1.msra.mxu0 0.0
        %760 = vmatprep.subr.mxu0 0.0
        %761 = vmatpush1.msra.mxu0 0.0
        %762 = vmatprep.subr.mxu0 0.0
        %763 = vmatpush1.msra.mxu0 0.0
        %764 = vmatprep.mubr.f32.mxu0 0.0
        %765 = vmatmul.mubr.f32.gmra.mrb[0].mxu0 %v698
        %v766 = vpop.f32.mrb[0].mxu0
        %v767 = vadd.f32 %v257, %v766
        %v768 = vpop.f32.mrb[0].mxu0
        %769 = vdwg.mxu0
        %s770 = scalar_lea.vmem %s238, 48
        %v771 = vld [vmem:[%s770] sm:$0xff]
        %v773 = vsel %vm321, %v771, 0
        %775 = vmatprep.subr.mxu0 0.0
        %776 = vmatpush1.msra.mxu0 %v318
        %777 = vmatprep.subr.mxu0 0.0
        %778 = vmatpush1.msra.mxu0 %v319
        %779 = vmatprep.subr.mxu0 0.0
        %780 = vmatpush1.msra.mxu0 0.0
        %781 = vmatprep.subr.mxu0 0.0
        %782 = vmatpush1.msra.mxu0 0.0
        %783 = vmatprep.subr.mxu0 0.0
        %784 = vmatpush1.msra.mxu0 0.0
        %785 = vmatprep.subr.mxu0 0.0
        %786 = vmatpush1.msra.mxu0 0.0
        %787 = vmatprep.subr.mxu0 0.0
        %788 = vmatpush1.msra.mxu0 0.0
        %789 = vmatprep.subr.mxu0 0.0
        %790 = vmatpush1.msra.mxu0 0.0
        %791 = vmatprep.subr.mxu0 0.0
        %792 = vmatpush1.msra.mxu0 0.0
        %793 = vmatprep.subr.mxu0 0.0
        %794 = vmatpush1.msra.mxu0 0.0
        %795 = vmatprep.subr.mxu0 0.0
        %796 = vmatpush1.msra.mxu0 0.0
        %797 = vmatprep.subr.mxu0 0.0
        %798 = vmatpush1.msra.mxu0 0.0
        %799 = vmatprep.subr.mxu0 0.0
        %800 = vmatpush1.msra.mxu0 0.0
        %801 = vmatprep.subr.mxu0 0.0
        %802 = vmatpush1.msra.mxu0 0.0
        %803 = vmatprep.subr.mxu0 0.0
        %804 = vmatpush1.msra.mxu0 0.0
        %805 = vmatprep.subr.mxu0 0.0
        %806 = vmatpush1.msra.mxu0 0.0
        %807 = vmatprep.subr.mxu0 0.0
        %808 = vmatpush1.msra.mxu0 0.0
        %809 = vmatprep.subr.mxu0 0.0
        %810 = vmatpush1.msra.mxu0 0.0
        %811 = vmatprep.subr.mxu0 0.0
        %812 = vmatpush1.msra.mxu0 0.0
        %813 = vmatprep.subr.mxu0 0.0
        %814 = vmatpush1.msra.mxu0 0.0
        %815 = vmatprep.subr.mxu0 0.0
        %816 = vmatpush1.msra.mxu0 0.0
        %817 = vmatprep.subr.mxu0 0.0
        %818 = vmatpush1.msra.mxu0 0.0
        %819 = vmatprep.subr.mxu0 0.0
        %820 = vmatpush1.msra.mxu0 0.0
        %821 = vmatprep.subr.mxu0 0.0
        %822 = vmatpush1.msra.mxu0 0.0
        %823 = vmatprep.subr.mxu0 0.0
        %824 = vmatpush1.msra.mxu0 0.0
        %825 = vmatprep.subr.mxu0 0.0
        %826 = vmatpush1.msra.mxu0 0.0
        %827 = vmatprep.subr.mxu0 0.0
        %828 = vmatpush1.msra.mxu0 0.0
        %829 = vmatprep.subr.mxu0 0.0
        %830 = vmatpush1.msra.mxu0 0.0
        %831 = vmatprep.subr.mxu0 0.0
        %832 = vmatpush1.msra.mxu0 0.0
        %833 = vmatprep.subr.mxu0 0.0
        %834 = vmatpush1.msra.mxu0 0.0
        %835 = vmatprep.subr.mxu0 0.0
        %836 = vmatpush1.msra.mxu0 0.0
        %837 = vmatprep.subr.mxu0 0.0
        %838 = vmatpush1.msra.mxu0 0.0
        %839 = vmatprep.mubr.f32.mxu0 0.0
        %840 = vmatmul.mubr.f32.gmra.mrb[0].mxu0 %v773
        %v841 = vpop.f32.mrb[0].mxu0
        %v842 = vadd.f32 %v257, %v841
        %v843 = vpop.f32.mrb[0].mxu0
        %844 = vdwg.mxu0
        %s845 = scalar_lea.vmem %s238, 56
        %v846 = vld [vmem:[%s845] sm:$0xff]
        %v848 = vsel %vm321, %v846, 0
        %850 = vmatprep.subr.mxu0 0.0
        %851 = vmatpush1.msra.mxu0 %v318
        %852 = vmatprep.subr.mxu0 0.0
        %853 = vmatpush1.msra.mxu0 %v319
        %854 = vmatprep.subr.mxu0 0.0
        %855 = vmatpush1.msra.mxu0 0.0
        %856 = vmatprep.subr.mxu0 0.0
        %857 = vmatpush1.msra.mxu0 0.0
        %858 = vmatprep.subr.mxu0 0.0
        %859 = vmatpush1.msra.mxu0 0.0
        %860 = vmatprep.subr.mxu0 0.0
        %861 = vmatpush1.msra.mxu0 0.0
        %862 = vmatprep.subr.mxu0 0.0
        %863 = vmatpush1.msra.mxu0 0.0
        %864 = vmatprep.subr.mxu0 0.0
        %865 = vmatpush1.msra.mxu0 0.0
        %866 = vmatprep.subr.mxu0 0.0
        %867 = vmatpush1.msra.mxu0 0.0
        %868 = vmatprep.subr.mxu0 0.0
        %869 = vmatpush1.msra.mxu0 0.0
        %870 = vmatprep.subr.mxu0 0.0
        %871 = vmatpush1.msra.mxu0 0.0
        %872 = vmatprep.subr.mxu0 0.0
        %873 = vmatpush1.msra.mxu0 0.0
        %874 = vmatprep.subr.mxu0 0.0
        %875 = vmatpush1.msra.mxu0 0.0
        %876 = vmatprep.subr.mxu0 0.0
        %877 = vmatpush1.msra.mxu0 0.0
        %878 = vmatprep.subr.mxu0 0.0
        %879 = vmatpush1.msra.mxu0 0.0
        %880 = vmatprep.subr.mxu0 0.0
        %881 = vmatpush1.msra.mxu0 0.0
        %882 = vmatprep.subr.mxu0 0.0
        %883 = vmatpush1.msra.mxu0 0.0
        %884 = vmatprep.subr.mxu0 0.0
        %885 = vmatpush1.msra.mxu0 0.0
        %886 = vmatprep.subr.mxu0 0.0
        %887 = vmatpush1.msra.mxu0 0.0
        %888 = vmatprep.subr.mxu0 0.0
        %889 = vmatpush1.msra.mxu0 0.0
        %890 = vmatprep.subr.mxu0 0.0
        %891 = vmatpush1.msra.mxu0 0.0
        %892 = vmatprep.subr.mxu0 0.0
        %893 = vmatpush1.msra.mxu0 0.0
        %894 = vmatprep.subr.mxu0 0.0
        %895 = vmatpush1.msra.mxu0 0.0
        %896 = vmatprep.subr.mxu0 0.0
        %897 = vmatpush1.msra.mxu0 0.0
        %898 = vmatprep.subr.mxu0 0.0
        %899 = vmatpush1.msra.mxu0 0.0
        %900 = vmatprep.subr.mxu0 0.0
        %901 = vmatpush1.msra.mxu0 0.0
        %902 = vmatprep.subr.mxu0 0.0
        %903 = vmatpush1.msra.mxu0 0.0
        %904 = vmatprep.subr.mxu0 0.0
        %905 = vmatpush1.msra.mxu0 0.0
        %906 = vmatprep.subr.mxu0 0.0
        %907 = vmatpush1.msra.mxu0 0.0
        %908 = vmatprep.subr.mxu0 0.0
        %909 = vmatpush1.msra.mxu0 0.0
        %910 = vmatprep.subr.mxu0 0.0
        %911 = vmatpush1.msra.mxu0 0.0
        %912 = vmatprep.subr.mxu0 0.0
        %913 = vmatpush1.msra.mxu0 0.0
        %914 = vmatprep.mubr.f32.mxu0 0.0
        %915 = vmatmul.mubr.f32.gmra.mrb[0].mxu0 %v848
        %v916 = vpop.f32.mrb[0].mxu0
        %v917 = vadd.f32 %v257, %v916
        %v918 = vpop.f32.mrb[0].mxu0
        %919 = vdwg.mxu0
        %v920 = vld [vmem:[#allocation2] sm:$0xff]
        %921 = vmatprep.subr.mxu0 0.0
        %922 = vmatpush1.msra.mxu0 %v268
        %923 = vmatprep.subr.mxu0 0.0
        %924 = vmatpush1.msra.mxu0 %v269
        %925 = vmatprep.subr.mxu0 0.0
        %926 = vmatpush1.msra.mxu0 %v270
        %927 = vmatprep.subr.mxu0 0.0
        %928 = vmatpush1.msra.mxu0 %v271
        %929 = vmatprep.subr.mxu0 0.0
        %930 = vmatpush1.msra.mxu0 %v272
        %931 = vmatprep.subr.mxu0 0.0
        %932 = vmatpush1.msra.mxu0 %v273
        %933 = vmatprep.subr.mxu0 0.0
        %934 = vmatpush1.msra.mxu0 %v274
        %935 = vmatprep.subr.mxu0 0.0
        %936 = vmatpush1.msra.mxu0 %v275
        %937 = vmatprep.subr.mxu0 0.0
        %938 = vmatpush1.msra.mxu0 %v276
        %939 = vmatprep.subr.mxu0 0.0
        %940 = vmatpush1.msra.mxu0 %v277
        %941 = vmatprep.subr.mxu0 0.0
        %942 = vmatpush1.msra.mxu0 %v278
        %943 = vmatprep.subr.mxu0 0.0
        %944 = vmatpush1.msra.mxu0 %v279
        %945 = vmatprep.subr.mxu0 0.0
        %946 = vmatpush1.msra.mxu0 %v280
        %947 = vmatprep.subr.mxu0 0.0
        %948 = vmatpush1.msra.mxu0 %v281
        %949 = vmatprep.subr.mxu0 0.0
        %950 = vmatpush1.msra.mxu0 %v282
        %951 = vmatprep.subr.mxu0 0.0
        %952 = vmatpush1.msra.mxu0 %v283
        %953 = vmatprep.subr.mxu0 0.0
        %954 = vmatpush1.msra.mxu0 0.0
        %955 = vmatprep.subr.mxu0 0.0
        %956 = vmatpush1.msra.mxu0 0.0
        %957 = vmatprep.subr.mxu0 0.0
        %958 = vmatpush1.msra.mxu0 0.0
        %959 = vmatprep.subr.mxu0 0.0
        %960 = vmatpush1.msra.mxu0 0.0
        %961 = vmatprep.subr.mxu0 0.0
        %962 = vmatpush1.msra.mxu0 0.0
        %963 = vmatprep.subr.mxu0 0.0
        %964 = vmatpush1.msra.mxu0 0.0
        %965 = vmatprep.subr.mxu0 0.0
        %966 = vmatpush1.msra.mxu0 0.0
        %967 = vmatprep.subr.mxu0 0.0
        %968 = vmatpush1.msra.mxu0 0.0
        %969 = vmatprep.subr.mxu0 0.0
        %970 = vmatpush1.msra.mxu0 0.0
        %971 = vmatprep.subr.mxu0 0.0
        %972 = vmatpush1.msra.mxu0 0.0
        %973 = vmatprep.subr.mxu0 0.0
        %974 = vmatpush1.msra.mxu0 0.0
        %975 = vmatprep.subr.mxu0 0.0
        %976 = vmatpush1.msra.mxu0 0.0
        %977 = vmatprep.subr.mxu0 0.0
        %978 = vmatpush1.msra.mxu0 0.0
        %979 = vmatprep.subr.mxu0 0.0
        %980 = vmatpush1.msra.mxu0 0.0
        %981 = vmatprep.subr.mxu0 0.0
        %982 = vmatpush1.msra.mxu0 0.0
        %983 = vmatprep.subr.mxu0 0.0
        %984 = vmatpush1.msra.mxu0 0.0
        %985 = vmatprep.mubr.f32.mxu0 0.0
        %986 = vmatmul.mubr.f32.gmra.mrb[0].mxu0 %v920
        %v987 = vpop.f32.mrb[0].mxu0
        %v988 = vadd.f32 %v392, %v987
        %v989 = vpop.f32.mrb[0].mxu0
        %990 = vdwg.mxu0
        %v991 = vmax.f32 %v988, 0.0
        %992 = vmatprep.subr.mxu0 0.0
        %993 = vmatpush1.msra.mxu0 %v285
        %994 = vmatprep.subr.mxu0 0.0
        %995 = vmatpush1.msra.mxu0 %v286
        %996 = vmatprep.subr.mxu0 0.0
        %997 = vmatpush1.msra.mxu0 %v287
        %998 = vmatprep.subr.mxu0 0.0
        %999 = vmatpush1.msra.mxu0 %v288
        %1000 = vmatprep.subr.mxu0 0.0
        %1001 = vmatpush1.msra.mxu0 %v289
        %1002 = vmatprep.subr.mxu0 0.0
        %1003 = vmatpush1.msra.mxu0 %v290
        %1004 = vmatprep.subr.mxu0 0.0
        %1005 = vmatpush1.msra.mxu0 %v291
        %1006 = vmatprep.subr.mxu0 0.0
        %1007 = vmatpush1.msra.mxu0 %v292
        %1008 = vmatprep.subr.mxu0 0.0
        %1009 = vmatpush1.msra.mxu0 %v293
        %1010 = vmatprep.subr.mxu0 0.0
        %1011 = vmatpush1.msra.mxu0 %v294
        %1012 = vmatprep.subr.mxu0 0.0
        %1013 = vmatpush1.msra.mxu0 %v295
        %1014 = vmatprep.subr.mxu0 0.0
        %1015 = vmatpush1.msra.mxu0 %v296
        %1016 = vmatprep.subr.mxu0 0.0
        %1017 = vmatpush1.msra.mxu0 %v297
        %1018 = vmatprep.subr.mxu0 0.0
        %1019 = vmatpush1.msra.mxu0 %v298
        %1020 = vmatprep.subr.mxu0 0.0
        %1021 = vmatpush1.msra.mxu0 %v299
        %1022 = vmatprep.subr.mxu0 0.0
        %1023 = vmatpush1.msra.mxu0 %v300
        %1024 = vmatprep.subr.mxu0 0.0
        %1025 = vmatpush1.msra.mxu0 0.0
        %1026 = vmatprep.subr.mxu0 0.0
        %1027 = vmatpush1.msra.mxu0 0.0
        %1028 = vmatprep.subr.mxu0 0.0
        %1029 = vmatpush1.msra.mxu0 0.0
        %1030 = vmatprep.subr.mxu0 0.0
        %1031 = vmatpush1.msra.mxu0 0.0
        %1032 = vmatprep.subr.mxu0 0.0
        %1033 = vmatpush1.msra.mxu0 0.0
        %1034 = vmatprep.subr.mxu0 0.0
        %1035 = vmatpush1.msra.mxu0 0.0
        %1036 = vmatprep.subr.mxu0 0.0
        %1037 = vmatpush1.msra.mxu0 0.0
        %1038 = vmatprep.subr.mxu0 0.0
        %1039 = vmatpush1.msra.mxu0 0.0
        %1040 = vmatprep.subr.mxu0 0.0
        %1041 = vmatpush1.msra.mxu0 0.0
        %1042 = vmatprep.subr.mxu0 0.0
        %1043 = vmatpush1.msra.mxu0 0.0
        %1044 = vmatprep.subr.mxu0 0.0
        %1045 = vmatpush1.msra.mxu0 0.0
        %1046 = vmatprep.subr.mxu0 0.0
        %1047 = vmatpush1.msra.mxu0 0.0
        %1048 = vmatprep.subr.mxu0 0.0
        %1049 = vmatpush1.msra.mxu0 0.0
        %1050 = vmatprep.subr.mxu0 0.0
        %1051 = vmatpush1.msra.mxu0 0.0
        %1052 = vmatprep.subr.mxu0 0.0
        %1053 = vmatpush1.msra.mxu0 0.0
        %1054 = vmatprep.subr.mxu0 0.0
        %1055 = vmatpush1.msra.mxu0 0.0
        %1056 = vmatprep.mubr.f32.mxu0 0.0
        %1057 = vmatmul.mubr.f32.gmra.mrb[0].mxu0 %v991
        %v1058 = vpop.f32.mrb[0].mxu0
        %v1059 = vadd.f32 %v262, %v1058
        %v1060 = vpop.f32.mrb[0].mxu0
        %1061 = vdwg.mxu0
        %v1062 = vmax.f32 %v1059, 0.0
        %1063 = vmatprep.subr.mxu0 0.0
        %1064 = vmatpush1.msra.mxu0 %v302
        %1065 = vmatprep.subr.mxu0 0.0
        %1066 = vmatpush1.msra.mxu0 %v303
        %1067 = vmatprep.subr.mxu0 0.0
        %1068 = vmatpush1.msra.mxu0 %v304
        %1069 = vmatprep.subr.mxu0 0.0
        %1070 = vmatpush1.msra.mxu0 %v305
        %1071 = vmatprep.subr.mxu0 0.0
        %1072 = vmatpush1.msra.mxu0 %v306
        %1073 = vmatprep.subr.mxu0 0.0
        %1074 = vmatpush1.msra.mxu0 %v307
        %1075 = vmatprep.subr.mxu0 0.0
        %1076 = vmatpush1.msra.mxu0 %v308
        %1077 = vmatprep.subr.mxu0 0.0
        %1078 = vmatpush1.msra.mxu0 %v309
        %1079 = vmatprep.subr.mxu0 0.0
        %1080 = vmatpush1.msra.mxu0 %v310
        %1081 = vmatprep.subr.mxu0 0.0
        %1082 = vmatpush1.msra.mxu0 %v311
        %1083 = vmatprep.subr.mxu0 0.0
        %1084 = vmatpush1.msra.mxu0 %v312
        %1085 = vmatprep.subr.mxu0 0.0
        %1086 = vmatpush1.msra.mxu0 %v313
        %1087 = vmatprep.subr.mxu0 0.0
        %1088 = vmatpush1.msra.mxu0 %v314
        %1089 = vmatprep.subr.mxu0 0.0
        %1090 = vmatpush1.msra.mxu0 %v315
        %1091 = vmatprep.subr.mxu0 0.0
        %1092 = vmatpush1.msra.mxu0 %v316
        %1093 = vmatprep.subr.mxu0 0.0
        %1094 = vmatpush1.msra.mxu0 %v317
        %1095 = vmatprep.subr.mxu0 0.0
        %1096 = vmatpush1.msra.mxu0 0.0
        %1097 = vmatprep.subr.mxu0 0.0
        %1098 = vmatpush1.msra.mxu0 0.0
        %1099 = vmatprep.subr.mxu0 0.0
        %1100 = vmatpush1.msra.mxu0 0.0
        %1101 = vmatprep.subr.mxu0 0.0
        %1102 = vmatpush1.msra.mxu0 0.0
        %1103 = vmatprep.subr.mxu0 0.0
        %1104 = vmatpush1.msra.mxu0 0.0
        %1105 = vmatprep.subr.mxu0 0.0
        %1106 = vmatpush1.msra.mxu0 0.0
        %1107 = vmatprep.subr.mxu0 0.0
        %1108 = vmatpush1.msra.mxu0 0.0
        %1109 = vmatprep.subr.mxu0 0.0
        %1110 = vmatpush1.msra.mxu0 0.0
        %1111 = vmatprep.subr.mxu0 0.0
        %1112 = vmatpush1.msra.mxu0 0.0
        %1113 = vmatprep.subr.mxu0 0.0
        %1114 = vmatpush1.msra.mxu0 0.0
        %1115 = vmatprep.subr.mxu0 0.0
        %1116 = vmatpush1.msra.mxu0 0.0
        %1117 = vmatprep.subr.mxu0 0.0
        %1118 = vmatpush1.msra.mxu0 0.0
        %1119 = vmatprep.subr.mxu0 0.0
        %1120 = vmatpush1.msra.mxu0 0.0
        %1121 = vmatprep.subr.mxu0 0.0
        %1122 = vmatpush1.msra.mxu0 0.0
        %1123 = vmatprep.subr.mxu0 0.0
        %1124 = vmatpush1.msra.mxu0 0.0
        %1125 = vmatprep.subr.mxu0 0.0
        %1126 = vmatpush1.msra.mxu0 0.0
        %1127 = vmatprep.mubr.f32.mxu0 0.0
        %1128 = vmatmul.mubr.f32.gmra.mrb[0].mxu0 %v1062
        %v1129 = vpop.f32.mrb[0].mxu0
        %v1130 = vadd.f32 %v988, %v1129
        %v1131 = vpop.f32.mrb[0].mxu0
        %1132 = vdwg.mxu0
        %v1133 = vadd.f32 %v1130, %v267
        %v1134 = vtanh.pop %v1133
        %v1135 = vsel %vm252, %v1134, 0.0
        %v1136 = vsel %vm249, %v991, %v1135
        %1137 = vst [vmem:[%s233] sm:$0xff] %v1136
        %1138 = vmatprep.subr.mxu0 0.0
        %1139 = vmatpush1.msra.mxu0 %v268
        %1140 = vmatprep.subr.mxu0 0.0
        %1141 = vmatpush1.msra.mxu0 %v269
        %1142 = vmatprep.subr.mxu0 0.0
        %1143 = vmatpush1.msra.mxu0 %v270
        %1144 = vmatprep.subr.mxu0 0.0
        %1145 = vmatpush1.msra.mxu0 %v271
        %1146 = vmatprep.subr.mxu0 0.0
        %1147 = vmatpush1.msra.mxu0 %v272
        %1148 = vmatprep.subr.mxu0 0.0
        %1149 = vmatpush1.msra.mxu0 %v273
        %1150 = vmatprep.subr.mxu0 0.0
        %1151 = vmatpush1.msra.mxu0 %v274
        %1152 = vmatprep.subr.mxu0 0.0
        %1153 = vmatpush1.msra.mxu0 %v275
        %1154 = vmatprep.subr.mxu0 0.0
        %1155 = vmatpush1.msra.mxu0 %v276
        %1156 = vmatprep.subr.mxu0 0.0
        %1157 = vmatpush1.msra.mxu0 %v277
        %1158 = vmatprep.subr.mxu0 0.0
        %1159 = vmatpush1.msra.mxu0 %v278
        %1160 = vmatprep.subr.mxu0 0.0
        %1161 = vmatpush1.msra.mxu0 %v279
        %1162 = vmatprep.subr.mxu0 0.0
        %1163 = vmatpush1.msra.mxu0 %v280
        %1164 = vmatprep.subr.mxu0 0.0
        %1165 = vmatpush1.msra.mxu0 %v281
        %1166 = vmatprep.subr.mxu0 0.0
        %1167 = vmatpush1.msra.mxu0 %v282
        %1168 = vmatprep.subr.mxu0 0.0
        %1169 = vmatpush1.msra.mxu0 %v283
        %1170 = vmatprep.subr.mxu0 0.0
        %1171 = vmatpush1.msra.mxu0 0.0
        %1172 = vmatprep.subr.mxu0 0.0
        %1173 = vmatpush1.msra.mxu0 0.0
        %1174 = vmatprep.subr.mxu0 0.0
        %1175 = vmatpush1.msra.mxu0 0.0
        %1176 = vmatprep.subr.mxu0 0.0
        %1177 = vmatpush1.msra.mxu0 0.0
        %1178 = vmatprep.subr.mxu0 0.0
        %1179 = vmatpush1.msra.mxu0 0.0
        %1180 = vmatprep.subr.mxu0 0.0
        %1181 = vmatpush1.msra.mxu0 0.0
        %1182 = vmatprep.subr.mxu0 0.0
        %1183 = vmatpush1.msra.mxu0 0.0
        %1184 = vmatprep.subr.mxu0 0.0
        %1185 = vmatpush1.msra.mxu0 0.0
        %1186 = vmatprep.subr.mxu0 0.0
        %1187 = vmatpush1.msra.mxu0 0.0
        %1188 = vmatprep.subr.mxu0 0.0
        %1189 = vmatpush1.msra.mxu0 0.0
        %1190 = vmatprep.subr.mxu0 0.0
        %1191 = vmatpush1.msra.mxu0 0.0
        %1192 = vmatprep.subr.mxu0 0.0
        %1193 = vmatpush1.msra.mxu0 0.0
        %1194 = vmatprep.subr.mxu0 0.0
        %1195 = vmatpush1.msra.mxu0 0.0
        %1196 = vmatprep.subr.mxu0 0.0
        %1197 = vmatpush1.msra.mxu0 0.0
        %1198 = vmatprep.subr.mxu0 0.0
        %1199 = vmatpush1.msra.mxu0 0.0
        %1200 = vmatprep.subr.mxu0 0.0
        %1201 = vmatpush1.msra.mxu0 0.0
        %1202 = vmatprep.mubr.f32.mxu0 0.0
        %1203 = vmatmul.mubr.f32.gmra.mrb[0].mxu0 %v1136
        %v1204 = vpop.f32.mrb[0].mxu0
        %v1205 = vadd.f32 %v467, %v1204
        %v1206 = vpop.f32.mrb[0].mxu0
        %1207 = vdwg.mxu0
        %v1208 = vmax.f32 %v1205, 0.0
        %1209 = vmatprep.subr.mxu0 0.0
        %1210 = vmatpush1.msra.mxu0 %v285
        %1211 = vmatprep.subr.mxu0 0.0
        %1212 = vmatpush1.msra.mxu0 %v286
        %1213 = vmatprep.subr.mxu0 0.0
        %1214 = vmatpush1.msra.mxu0 %v287
        %1215 = vmatprep.subr.mxu0 0.0
        %1216 = vmatpush1.msra.mxu0 %v288
        %1217 = vmatprep.subr.mxu0 0.0
        %1218 = vmatpush1.msra.mxu0 %v289
        %1219 = vmatprep.subr.mxu0 0.0
        %1220 = vmatpush1.msra.mxu0 %v290
        %1221 = vmatprep.subr.mxu0 0.0
        %1222 = vmatpush1.msra.mxu0 %v291
        %1223 = vmatprep.subr.mxu0 0.0
        %1224 = vmatpush1.msra.mxu0 %v292
        %1225 = vmatprep.subr.mxu0 0.0
        %1226 = vmatpush1.msra.mxu0 %v293
        %1227 = vmatprep.subr.mxu0 0.0
        %1228 = vmatpush1.msra.mxu0 %v294
        %1229 = vmatprep.subr.mxu0 0.0
        %1230 = vmatpush1.msra.mxu0 %v295
        %1231 = vmatprep.subr.mxu0 0.0
        %1232 = vmatpush1.msra.mxu0 %v296
        %1233 = vmatprep.subr.mxu0 0.0
        %1234 = vmatpush1.msra.mxu0 %v297
        %1235 = vmatprep.subr.mxu0 0.0
        %1236 = vmatpush1.msra.mxu0 %v298
        %1237 = vmatprep.subr.mxu0 0.0
        %1238 = vmatpush1.msra.mxu0 %v299
        %1239 = vmatprep.subr.mxu0 0.0
        %1240 = vmatpush1.msra.mxu0 %v300
        %1241 = vmatprep.subr.mxu0 0.0
        %1242 = vmatpush1.msra.mxu0 0.0
        %1243 = vmatprep.subr.mxu0 0.0
        %1244 = vmatpush1.msra.mxu0 0.0
        %1245 = vmatprep.subr.mxu0 0.0
        %1246 = vmatpush1.msra.mxu0 0.0
        %1247 = vmatprep.subr.mxu0 0.0
        %1248 = vmatpush1.msra.mxu0 0.0
        %1249 = vmatprep.subr.mxu0 0.0
        %1250 = vmatpush1.msra.mxu0 0.0
        %1251 = vmatprep.subr.mxu0 0.0
        %1252 = vmatpush1.msra.mxu0 0.0
        %1253 = vmatprep.subr.mxu0 0.0
        %1254 = vmatpush1.msra.mxu0 0.0
        %1255 = vmatprep.subr.mxu0 0.0
        %1256 = vmatpush1.msra.mxu0 0.0
        %1257 = vmatprep.subr.mxu0 0.0
        %1258 = vmatpush1.msra.mxu0 0.0
        %1259 = vmatprep.subr.mxu0 0.0
        %1260 = vmatpush1.msra.mxu0 0.0
        %1261 = vmatprep.subr.mxu0 0.0
        %1262 = vmatpush1.msra.mxu0 0.0
        %1263 = vmatprep.subr.mxu0 0.0
        %1264 = vmatpush1.msra.mxu0 0.0
        %1265 = vmatprep.subr.mxu0 0.0
        %1266 = vmatpush1.msra.mxu0 0.0
        %1267 = vmatprep.subr.mxu0 0.0
        %1268 = vmatpush1.msra.mxu0 0.0
        %1269 = vmatprep.subr.mxu0 0.0
        %1270 = vmatpush1.msra.mxu0 0.0
        %1271 = vmatprep.subr.mxu0 0.0
        %1272 = vmatpush1.msra.mxu0 0.0
        %1273 = vmatprep.mubr.f32.mxu0 0.0
        %1274 = vmatmul.mubr.f32.gmra.mrb[0].mxu0 %v1208
        %v1275 = vpop.f32.mrb[0].mxu0
        %v1276 = vadd.f32 %v262, %v1275
        %v1277 = vpop.f32.mrb[0].mxu0
        %1278 = vdwg.mxu0
        %v1279 = vmax.f32 %v1276, 0.0
        %1280 = vmatprep.subr.mxu0 0.0
        %1281 = vmatpush1.msra.mxu0 %v302
        %1282 = vmatprep.subr.mxu0 0.0
        %1283 = vmatpush1.msra.mxu0 %v303
        %1284 = vmatprep.subr.mxu0 0.0
        %1285 = vmatpush1.msra.mxu0 %v304
        %1286 = vmatprep.subr.mxu0 0.0
        %1287 = vmatpush1.msra.mxu0 %v305
        %1288 = vmatprep.subr.mxu0 0.0
        %1289 = vmatpush1.msra.mxu0 %v306
        %1290 = vmatprep.subr.mxu0 0.0
        %1291 = vmatpush1.msra.mxu0 %v307
        %1292 = vmatprep.subr.mxu0 0.0
        %1293 = vmatpush1.msra.mxu0 %v308
        %1294 = vmatprep.subr.mxu0 0.0
        %1295 = vmatpush1.msra.mxu0 %v309
        %1296 = vmatprep.subr.mxu0 0.0
        %1297 = vmatpush1.msra.mxu0 %v310
        %1298 = vmatprep.subr.mxu0 0.0
        %1299 = vmatpush1.msra.mxu0 %v311
        %1300 = vmatprep.subr.mxu0 0.0
        %1301 = vmatpush1.msra.mxu0 %v312
        %1302 = vmatprep.subr.mxu0 0.0
        %1303 = vmatpush1.msra.mxu0 %v313
        %1304 = vmatprep.subr.mxu0 0.0
        %1305 = vmatpush1.msra.mxu0 %v314
        %1306 = vmatprep.subr.mxu0 0.0
        %1307 = vmatpush1.msra.mxu0 %v315
        %1308 = vmatprep.subr.mxu0 0.0
        %1309 = vmatpush1.msra.mxu0 %v316
        %1310 = vmatprep.subr.mxu0 0.0
        %1311 = vmatpush1.msra.mxu0 %v317
        %1312 = vmatprep.subr.mxu0 0.0
        %1313 = vmatpush1.msra.mxu0 0.0
        %1314 = vmatprep.subr.mxu0 0.0
        %1315 = vmatpush1.msra.mxu0 0.0
        %1316 = vmatprep.subr.mxu0 0.0
        %1317 = vmatpush1.msra.mxu0 0.0
        %1318 = vmatprep.subr.mxu0 0.0
        %1319 = vmatpush1.msra.mxu0 0.0
        %1320 = vmatprep.subr.mxu0 0.0
        %1321 = vmatpush1.msra.mxu0 0.0
        %1322 = vmatprep.subr.mxu0 0.0
        %1323 = vmatpush1.msra.mxu0 0.0
        %1324 = vmatprep.subr.mxu0 0.0
        %1325 = vmatpush1.msra.mxu0 0.0
        %1326 = vmatprep.subr.mxu0 0.0
        %1327 = vmatpush1.msra.mxu0 0.0
        %1328 = vmatprep.subr.mxu0 0.0
        %1329 = vmatpush1.msra.mxu0 0.0
        %1330 = vmatprep.subr.mxu0 0.0
        %1331 = vmatpush1.msra.mxu0 0.0
        %1332 = vmatprep.subr.mxu0 0.0
        %1333 = vmatpush1.msra.mxu0 0.0
        %1334 = vmatprep.subr.mxu0 0.0
        %1335 = vmatpush1.msra.mxu0 0.0
        %1336 = vmatprep.subr.mxu0 0.0
        %1337 = vmatpush1.msra.mxu0 0.0
        %1338 = vmatprep.subr.mxu0 0.0
        %1339 = vmatpush1.msra.mxu0 0.0
        %1340 = vmatprep.subr.mxu0 0.0
        %1341 = vmatpush1.msra.mxu0 0.0
        %1342 = vmatprep.subr.mxu0 0.0
        %1343 = vmatpush1.msra.mxu0 0.0
        %1344 = vmatprep.mubr.f32.mxu0 0.0
        %1345 = vmatmul.mubr.f32.gmra.mrb[0].mxu0 %v1279
        %v1346 = vpop.f32.mrb[0].mxu0
        %v1347 = vadd.f32 %v1205, %v1346
        %v1348 = vpop.f32.mrb[0].mxu0
        %1349 = vdwg.mxu0
        %v1350 = vadd.f32 %v1347, %v267
        %v1351 = vtanh.pop %v1350
        %v1352 = vsel %vm252, %v1351, 0.0
        %v1353 = vsel %vm249, %v1208, %v1352
        %s1354 = scalar_lea.vmem %s233, 8 [#allocation6]
        %1355 = vst [vmem:[%s1354] sm:$0xff] %v1353
        %1356 = vmatprep.subr.mxu0 0.0
        %1357 = vmatpush1.msra.mxu0 %v268
        %1358 = vmatprep.subr.mxu0 0.0
        %1359 = vmatpush1.msra.mxu0 %v269
        %1360 = vmatprep.subr.mxu0 0.0
        %1361 = vmatpush1.msra.mxu0 %v270
        %1362 = vmatprep.subr.mxu0 0.0
        %1363 = vmatpush1.msra.mxu0 %v271
        %1364 = vmatprep.subr.mxu0 0.0
        %1365 = vmatpush1.msra.mxu0 %v272
        %1366 = vmatprep.subr.mxu0 0.0
        %1367 = vmatpush1.msra.mxu0 %v273
        %1368 = vmatprep.subr.mxu0 0.0
        %1369 = vmatpush1.msra.mxu0 %v274
        %1370 = vmatprep.subr.mxu0 0.0
        %1371 = vmatpush1.msra.mxu0 %v275
        %1372 = vmatprep.subr.mxu0 0.0
        %1373 = vmatpush1.msra.mxu0 %v276
        %1374 = vmatprep.subr.mxu0 0.0
        %1375 = vmatpush1.msra.mxu0 %v277
        %1376 = vmatprep.subr.mxu0 0.0
        %1377 = vmatpush1.msra.mxu0 %v278
        %1378 = vmatprep.subr.mxu0 0.0
        %1379 = vmatpush1.msra.mxu0 %v279
        %1380 = vmatprep.subr.mxu0 0.0
        %1381 = vmatpush1.msra.mxu0 %v280
        %1382 = vmatprep.subr.mxu0 0.0
        %1383 = vmatpush1.msra.mxu0 %v281
        %1384 = vmatprep.subr.mxu0 0.0
        %1385 = vmatpush1.msra.mxu0 %v282
        %1386 = vmatprep.subr.mxu0 0.0
        %1387 = vmatpush1.msra.mxu0 %v283
        %1388 = vmatprep.subr.mxu0 0.0
        %1389 = vmatpush1.msra.mxu0 0.0
        %1390 = vmatprep.subr.mxu0 0.0
        %1391 = vmatpush1.msra.mxu0 0.0
        %1392 = vmatprep.subr.mxu0 0.0
        %1393 = vmatpush1.msra.mxu0 0.0
        %1394 = vmatprep.subr.mxu0 0.0
        %1395 = vmatpush1.msra.mxu0 0.0
        %1396 = vmatprep.subr.mxu0 0.0
        %1397 = vmatpush1.msra.mxu0 0.0
        %1398 = vmatprep.subr.mxu0 0.0
        %1399 = vmatpush1.msra.mxu0 0.0
        %1400 = vmatprep.subr.mxu0 0.0
        %1401 = vmatpush1.msra.mxu0 0.0
        %1402 = vmatprep.subr.mxu0 0.0
        %1403 = vmatpush1.msra.mxu0 0.0
        %1404 = vmatprep.subr.mxu0 0.0
        %1405 = vmatpush1.msra.mxu0 0.0
        %1406 = vmatprep.subr.mxu0 0.0
        %1407 = vmatpush1.msra.mxu0 0.0
        %1408 = vmatprep.subr.mxu0 0.0
        %1409 = vmatpush1.msra.mxu0 0.0
        %1410 = vmatprep.subr.mxu0 0.0
        %1411 = vmatpush1.msra.mxu0 0.0
        %1412 = vmatprep.subr.mxu0 0.0
        %1413 = vmatpush1.msra.mxu0 0.0
        %1414 = vmatprep.subr.mxu0 0.0
        %1415 = vmatpush1.msra.mxu0 0.0
        %1416 = vmatprep.subr.mxu0 0.0
        %1417 = vmatpush1.msra.mxu0 0.0
        %1418 = vmatprep.subr.mxu0 0.0
        %1419 = vmatpush1.msra.mxu0 0.0
        %1420 = vmatprep.mubr.f32.mxu0 0.0
        %1421 = vmatmul.mubr.f32.gmra.mrb[0].mxu0 %v1353
        %v1422 = vpop.f32.mrb[0].mxu0
        %v1423 = vadd.f32 %v542, %v1422
        %v1424 = vpop.f32.mrb[0].mxu0
        %1425 = vdwg.mxu0
        %v1426 = vmax.f32 %v1423, 0.0
        %1427 = vmatprep.subr.mxu0 0.0
        %1428 = vmatpush1.msra.mxu0 %v285
        %1429 = vmatprep.subr.mxu0 0.0
        %1430 = vmatpush1.msra.mxu0 %v286
        %1431 = vmatprep.subr.mxu0 0.0
        %1432 = vmatpush1.msra.mxu0 %v287
        %1433 = vmatprep.subr.mxu0 0.0
        %1434 = vmatpush1.msra.mxu0 %v288
        %1435 = vmatprep.subr.mxu0 0.0
        %1436 = vmatpush1.msra.mxu0 %v289
        %1437 = vmatprep.subr.mxu0 0.0
        %1438 = vmatpush1.msra.mxu0 %v290
        %1439 = vmatprep.subr.mxu0 0.0
        %1440 = vmatpush1.msra.mxu0 %v291
        %1441 = vmatprep.subr.mxu0 0.0
        %1442 = vmatpush1.msra.mxu0 %v292
        %1443 = vmatprep.subr.mxu0 0.0
        %1444 = vmatpush1.msra.mxu0 %v293
        %1445 = vmatprep.subr.mxu0 0.0
        %1446 = vmatpush1.msra.mxu0 %v294
        %1447 = vmatprep.subr.mxu0 0.0
        %1448 = vmatpush1.msra.mxu0 %v295
        %1449 = vmatprep.subr.mxu0 0.0
        %1450 = vmatpush1.msra.mxu0 %v296
        %1451 = vmatprep.subr.mxu0 0.0
        %1452 = vmatpush1.msra.mxu0 %v297
        %1453 = vmatprep.subr.mxu0 0.0
        %1454 = vmatpush1.msra.mxu0 %v298
        %1455 = vmatprep.subr.mxu0 0.0
        %1456 = vmatpush1.msra.mxu0 %v299
        %1457 = vmatprep.subr.mxu0 0.0
        %1458 = vmatpush1.msra.mxu0 %v300
        %1459 = vmatprep.subr.mxu0 0.0
        %1460 = vmatpush1.msra.mxu0 0.0
        %1461 = vmatprep.subr.mxu0 0.0
        %1462 = vmatpush1.msra.mxu0 0.0
        %1463 = vmatprep.subr.mxu0 0.0
        %1464 = vmatpush1.msra.mxu0 0.0
        %1465 = vmatprep.subr.mxu0 0.0
        %1466 = vmatpush1.msra.mxu0 0.0
        %1467 = vmatprep.subr.mxu0 0.0
        %1468 = vmatpush1.msra.mxu0 0.0
        %1469 = vmatprep.subr.mxu0 0.0
        %1470 = vmatpush1.msra.mxu0 0.0
        %1471 = vmatprep.subr.mxu0 0.0
        %1472 = vmatpush1.msra.mxu0 0.0
        %1473 = vmatprep.subr.mxu0 0.0
        %1474 = vmatpush1.msra.mxu0 0.0
        %1475 = vmatprep.subr.mxu0 0.0
        %1476 = vmatpush1.msra.mxu0 0.0
        %1477 = vmatprep.subr.mxu0 0.0
        %1478 = vmatpush1.msra.mxu0 0.0
        %1479 = vmatprep.subr.mxu0 0.0
        %1480 = vmatpush1.msra.mxu0 0.0
        %1481 = vmatprep.subr.mxu0 0.0
        %1482 = vmatpush1.msra.mxu0 0.0
        %1483 = vmatprep.subr.mxu0 0.0
        %1484 = vmatpush1.msra.mxu0 0.0
        %1485 = vmatprep.subr.mxu0 0.0
        %1486 = vmatpush1.msra.mxu0 0.0
        %1487 = vmatprep.subr.mxu0 0.0
        %1488 = vmatpush1.msra.mxu0 0.0
        %1489 = vmatprep.subr.mxu0 0.0
        %1490 = vmatpush1.msra.mxu0 0.0
        %1491 = vmatprep.mubr.f32.mxu0 0.0
        %1492 = vmatmul.mubr.f32.gmra.mrb[0].mxu0 %v1426
        %v1493 = vpop.f32.mrb[0].mxu0
        %v1494 = vadd.f32 %v262, %v1493
        %v1495 = vpop.f32.mrb[0].mxu0
        %1496 = vdwg.mxu0
        %v1497 = vmax.f32 %v1494, 0.0
        %1498 = vmatprep.subr.mxu0 0.0
        %1499 = vmatpush1.msra.mxu0 %v302
        %1500 = vmatprep.subr.mxu0 0.0
        %1501 = vmatpush1.msra.mxu0 %v303
        %1502 = vmatprep.subr.mxu0 0.0
        %1503 = vmatpush1.msra.mxu0 %v304
        %1504 = vmatprep.subr.mxu0 0.0
        %1505 = vmatpush1.msra.mxu0 %v305
        %1506 = vmatprep.subr.mxu0 0.0
        %1507 = vmatpush1.msra.mxu0 %v306
        %1508 = vmatprep.subr.mxu0 0.0
        %1509 = vmatpush1.msra.mxu0 %v307
        %1510 = vmatprep.subr.mxu0 0.0
        %1511 = vmatpush1.msra.mxu0 %v308
        %1512 = vmatprep.subr.mxu0 0.0
        %1513 = vmatpush1.msra.mxu0 %v309
        %1514 = vmatprep.subr.mxu0 0.0
        %1515 = vmatpush1.msra.mxu0 %v310
        %1516 = vmatprep.subr.mxu0 0.0
        %1517 = vmatpush1.msra.mxu0 %v311
        %1518 = vmatprep.subr.mxu0 0.0
        %1519 = vmatpush1.msra.mxu0 %v312
        %1520 = vmatprep.subr.mxu0 0.0
        %1521 = vmatpush1.msra.mxu0 %v313
        %1522 = vmatprep.subr.mxu0 0.0
        %1523 = vmatpush1.msra.mxu0 %v314
        %1524 = vmatprep.subr.mxu0 0.0
        %1525 = vmatpush1.msra.mxu0 %v315
        %1526 = vmatprep.subr.mxu0 0.0
        %1527 = vmatpush1.msra.mxu0 %v316
        %1528 = vmatprep.subr.mxu0 0.0
        %1529 = vmatpush1.msra.mxu0 %v317
        %1530 = vmatprep.subr.mxu0 0.0
        %1531 = vmatpush1.msra.mxu0 0.0
        %1532 = vmatprep.subr.mxu0 0.0
        %1533 = vmatpush1.msra.mxu0 0.0
        %1534 = vmatprep.subr.mxu0 0.0
        %1535 = vmatpush1.msra.mxu0 0.0
        %1536 = vmatprep.subr.mxu0 0.0
        %1537 = vmatpush1.msra.mxu0 0.0
        %1538 = vmatprep.subr.mxu0 0.0
        %1539 = vmatpush1.msra.mxu0 0.0
        %1540 = vmatprep.subr.mxu0 0.0
        %1541 = vmatpush1.msra.mxu0 0.0
        %1542 = vmatprep.subr.mxu0 0.0
        %1543 = vmatpush1.msra.mxu0 0.0
        %1544 = vmatprep.subr.mxu0 0.0
        %1545 = vmatpush1.msra.mxu0 0.0
        %1546 = vmatprep.subr.mxu0 0.0
        %1547 = vmatpush1.msra.mxu0 0.0
        %1548 = vmatprep.subr.mxu0 0.0
        %1549 = vmatpush1.msra.mxu0 0.0
        %1550 = vmatprep.subr.mxu0 0.0
        %1551 = vmatpush1.msra.mxu0 0.0
        %1552 = vmatprep.subr.mxu0 0.0
        %1553 = vmatpush1.msra.mxu0 0.0
        %1554 = vmatprep.subr.mxu0 0.0
        %1555 = vmatpush1.msra.mxu0 0.0
        %1556 = vmatprep.subr.mxu0 0.0
        %1557 = vmatpush1.msra.mxu0 0.0
        %1558 = vmatprep.subr.mxu0 0.0
        %1559 = vmatpush1.msra.mxu0 0.0
        %1560 = vmatprep.subr.mxu0 0.0
        %1561 = vmatpush1.msra.mxu0 0.0
        %1562 = vmatprep.mubr.f32.mxu0 0.0
        %1563 = vmatmul.mubr.f32.gmra.mrb[0].mxu0 %v1497
        %v1564 = vpop.f32.mrb[0].mxu0
        %v1565 = vadd.f32 %v1423, %v1564
        %v1566 = vpop.f32.mrb[0].mxu0
        %1567 = vdwg.mxu0
        %v1568 = vadd.f32 %v1565, %v267
        %v1569 = vtanh.pop %v1568
        %v1570 = vsel %vm252, %v1569, 0.0
        %v1571 = vsel %vm249, %v1426, %v1570
        %s1572 = scalar_lea.vmem %s233, 16 [#allocation6]
        %1573 = vst [vmem:[%s1572] sm:$0xff] %v1571
        %1574 = vmatprep.subr.mxu0 0.0
        %1575 = vmatpush1.msra.mxu0 %v268
        %1576 = vmatprep.subr.mxu0 0.0
        %1577 = vmatpush1.msra.mxu0 %v269
        %1578 = vmatprep.subr.mxu0 0.0
        %1579 = vmatpush1.msra.mxu0 %v270
        %1580 = vmatprep.subr.mxu0 0.0
        %1581 = vmatpush1.msra.mxu0 %v271
        %1582 = vmatprep.subr.mxu0 0.0
        %1583 = vmatpush1.msra.mxu0 %v272
        %1584 = vmatprep.subr.mxu0 0.0
        %1585 = vmatpush1.msra.mxu0 %v273
        %1586 = vmatprep.subr.mxu0 0.0
        %1587 = vmatpush1.msra.mxu0 %v274
        %1588 = vmatprep.subr.mxu0 0.0
        %1589 = vmatpush1.msra.mxu0 %v275
        %1590 = vmatprep.subr.mxu0 0.0
        %1591 = vmatpush1.msra.mxu0 %v276
        %1592 = vmatprep.subr.mxu0 0.0
        %1593 = vmatpush1.msra.mxu0 %v277
        %1594 = vmatprep.subr.mxu0 0.0
        %1595 = vmatpush1.msra.mxu0 %v278
        %1596 = vmatprep.subr.mxu0 0.0
        %1597 = vmatpush1.msra.mxu0 %v279
        %1598 = vmatprep.subr.mxu0 0.0
        %1599 = vmatpush1.msra.mxu0 %v280
        %1600 = vmatprep.subr.mxu0 0.0
        %1601 = vmatpush1.msra.mxu0 %v281
        %1602 = vmatprep.subr.mxu0 0.0
        %1603 = vmatpush1.msra.mxu0 %v282
        %1604 = vmatprep.subr.mxu0 0.0
        %1605 = vmatpush1.msra.mxu0 %v283
        %1606 = vmatprep.subr.mxu0 0.0
        %1607 = vmatpush1.msra.mxu0 0.0
        %1608 = vmatprep.subr.mxu0 0.0
        %1609 = vmatpush1.msra.mxu0 0.0
        %1610 = vmatprep.subr.mxu0 0.0
        %1611 = vmatpush1.msra.mxu0 0.0
        %1612 = vmatprep.subr.mxu0 0.0
        %1613 = vmatpush1.msra.mxu0 0.0
        %1614 = vmatprep.subr.mxu0 0.0
        %1615 = vmatpush1.msra.mxu0 0.0
        %1616 = vmatprep.subr.mxu0 0.0
        %1617 = vmatpush1.msra.mxu0 0.0
        %1618 = vmatprep.subr.mxu0 0.0
        %1619 = vmatpush1.msra.mxu0 0.0
        %1620 = vmatprep.subr.mxu0 0.0
        %1621 = vmatpush1.msra.mxu0 0.0
        %1622 = vmatprep.subr.mxu0 0.0
        %1623 = vmatpush1.msra.mxu0 0.0
        %1624 = vmatprep.subr.mxu0 0.0
        %1625 = vmatpush1.msra.mxu0 0.0
        %1626 = vmatprep.subr.mxu0 0.0
        %1627 = vmatpush1.msra.mxu0 0.0
        %1628 = vmatprep.subr.mxu0 0.0
        %1629 = vmatpush1.msra.mxu0 0.0
        %1630 = vmatprep.subr.mxu0 0.0
        %1631 = vmatpush1.msra.mxu0 0.0
        %1632 = vmatprep.subr.mxu0 0.0
        %1633 = vmatpush1.msra.mxu0 0.0
        %1634 = vmatprep.subr.mxu0 0.0
        %1635 = vmatpush1.msra.mxu0 0.0
        %1636 = vmatprep.subr.mxu0 0.0
        %1637 = vmatpush1.msra.mxu0 0.0
        %1638 = vmatprep.mubr.f32.mxu0 0.0
        %1639 = vmatmul.mubr.f32.gmra.mrb[0].mxu0 %v1571
        %v1640 = vpop.f32.mrb[0].mxu0
        %v1641 = vadd.f32 %v617, %v1640
        %v1642 = vpop.f32.mrb[0].mxu0
        %1643 = vdwg.mxu0
        %v1644 = vmax.f32 %v1641, 0.0
        %1645 = vmatprep.subr.mxu0 0.0
        %1646 = vmatpush1.msra.mxu0 %v285
        %1647 = vmatprep.subr.mxu0 0.0
        %1648 = vmatpush1.msra.mxu0 %v286
        %1649 = vmatprep.subr.mxu0 0.0
        %1650 = vmatpush1.msra.mxu0 %v287
        %1651 = vmatprep.subr.mxu0 0.0
        %1652 = vmatpush1.msra.mxu0 %v288
        %1653 = vmatprep.subr.mxu0 0.0
        %1654 = vmatpush1.msra.mxu0 %v289
        %1655 = vmatprep.subr.mxu0 0.0
        %1656 = vmatpush1.msra.mxu0 %v290
        %1657 = vmatprep.subr.mxu0 0.0
        %1658 = vmatpush1.msra.mxu0 %v291
        %1659 = vmatprep.subr.mxu0 0.0
        %1660 = vmatpush1.msra.mxu0 %v292
        %1661 = vmatprep.subr.mxu0 0.0
        %1662 = vmatpush1.msra.mxu0 %v293
        %1663 = vmatprep.subr.mxu0 0.0
        %1664 = vmatpush1.msra.mxu0 %v294
        %1665 = vmatprep.subr.mxu0 0.0
        %1666 = vmatpush1.msra.mxu0 %v295
        %1667 = vmatprep.subr.mxu0 0.0
        %1668 = vmatpush1.msra.mxu0 %v296
        %1669 = vmatprep.subr.mxu0 0.0
        %1670 = vmatpush1.msra.mxu0 %v297
        %1671 = vmatprep.subr.mxu0 0.0
        %1672 = vmatpush1.msra.mxu0 %v298
        %1673 = vmatprep.subr.mxu0 0.0
        %1674 = vmatpush1.msra.mxu0 %v299
        %1675 = vmatprep.subr.mxu0 0.0
        %1676 = vmatpush1.msra.mxu0 %v300
        %1677 = vmatprep.subr.mxu0 0.0
        %1678 = vmatpush1.msra.mxu0 0.0
        %1679 = vmatprep.subr.mxu0 0.0
        %1680 = vmatpush1.msra.mxu0 0.0
        %1681 = vmatprep.subr.mxu0 0.0
        %1682 = vmatpush1.msra.mxu0 0.0
        %1683 = vmatprep.subr.mxu0 0.0
        %1684 = vmatpush1.msra.mxu0 0.0
        %1685 = vmatprep.subr.mxu0 0.0
        %1686 = vmatpush1.msra.mxu0 0.0
        %1687 = vmatprep.subr.mxu0 0.0
        %1688 = vmatpush1.msra.mxu0 0.0
        %1689 = vmatprep.subr.mxu0 0.0
        %1690 = vmatpush1.msra.mxu0 0.0
        %1691 = vmatprep.subr.mxu0 0.0
        %1692 = vmatpush1.msra.mxu0 0.0
        %1693 = vmatprep.subr.mxu0 0.0
        %1694 = vmatpush1.msra.mxu0 0.0
        %1695 = vmatprep.subr.mxu0 0.0
        %1696 = vmatpush1.msra.mxu0 0.0
        %1697 = vmatprep.subr.mxu0 0.0
        %1698 = vmatpush1.msra.mxu0 0.0
        %1699 = vmatprep.subr.mxu0 0.0
        %1700 = vmatpush1.msra.mxu0 0.0
        %1701 = vmatprep.subr.mxu0 0.0
        %1702 = vmatpush1.msra.mxu0 0.0
        %1703 = vmatprep.subr.mxu0 0.0
        %1704 = vmatpush1.msra.mxu0 0.0
        %1705 = vmatprep.subr.mxu0 0.0
        %1706 = vmatpush1.msra.mxu0 0.0
        %1707 = vmatprep.subr.mxu0 0.0
        %1708 = vmatpush1.msra.mxu0 0.0
        %1709 = vmatprep.mubr.f32.mxu0 0.0
        %1710 = vmatmul.mubr.f32.gmra.mrb[0].mxu0 %v1644
        %v1711 = vpop.f32.mrb[0].mxu0
        %v1712 = vadd.f32 %v262, %v1711
        %v1713 = vpop.f32.mrb[0].mxu0
        %1714 = vdwg.mxu0
        %v1715 = vmax.f32 %v1712, 0.0
        %1716 = vmatprep.subr.mxu0 0.0
        %1717 = vmatpush1.msra.mxu0 %v302
        %1718 = vmatprep.subr.mxu0 0.0
        %1719 = vmatpush1.msra.mxu0 %v303
        %1720 = vmatprep.subr.mxu0 0.0
        %1721 = vmatpush1.msra.mxu0 %v304
        %1722 = vmatprep.subr.mxu0 0.0
        %1723 = vmatpush1.msra.mxu0 %v305
        %1724 = vmatprep.subr.mxu0 0.0
        %1725 = vmatpush1.msra.mxu0 %v306
        %1726 = vmatprep.subr.mxu0 0.0
        %1727 = vmatpush1.msra.mxu0 %v307
        %1728 = vmatprep.subr.mxu0 0.0
        %1729 = vmatpush1.msra.mxu0 %v308
        %1730 = vmatprep.subr.mxu0 0.0
        %1731 = vmatpush1.msra.mxu0 %v309
        %1732 = vmatprep.subr.mxu0 0.0
        %1733 = vmatpush1.msra.mxu0 %v310
        %1734 = vmatprep.subr.mxu0 0.0
        %1735 = vmatpush1.msra.mxu0 %v311
        %1736 = vmatprep.subr.mxu0 0.0
        %1737 = vmatpush1.msra.mxu0 %v312
        %1738 = vmatprep.subr.mxu0 0.0
        %1739 = vmatpush1.msra.mxu0 %v313
        %1740 = vmatprep.subr.mxu0 0.0
        %1741 = vmatpush1.msra.mxu0 %v314
        %1742 = vmatprep.subr.mxu0 0.0
        %1743 = vmatpush1.msra.mxu0 %v315
        %1744 = vmatprep.subr.mxu0 0.0
        %1745 = vmatpush1.msra.mxu0 %v316
        %1746 = vmatprep.subr.mxu0 0.0
        %1747 = vmatpush1.msra.mxu0 %v317
        %1748 = vmatprep.subr.mxu0 0.0
        %1749 = vmatpush1.msra.mxu0 0.0
        %1750 = vmatprep.subr.mxu0 0.0
        %1751 = vmatpush1.msra.mxu0 0.0
        %1752 = vmatprep.subr.mxu0 0.0
        %1753 = vmatpush1.msra.mxu0 0.0
        %1754 = vmatprep.subr.mxu0 0.0
        %1755 = vmatpush1.msra.mxu0 0.0
        %1756 = vmatprep.subr.mxu0 0.0
        %1757 = vmatpush1.msra.mxu0 0.0
        %1758 = vmatprep.subr.mxu0 0.0
        %1759 = vmatpush1.msra.mxu0 0.0
        %1760 = vmatprep.subr.mxu0 0.0
        %1761 = vmatpush1.msra.mxu0 0.0
        %1762 = vmatprep.subr.mxu0 0.0
        %1763 = vmatpush1.msra.mxu0 0.0
        %1764 = vmatprep.subr.mxu0 0.0
        %1765 = vmatpush1.msra.mxu0 0.0
        %1766 = vmatprep.subr.mxu0 0.0
        %1767 = vmatpush1.msra.mxu0 0.0
        %1768 = vmatprep.subr.mxu0 0.0
        %1769 = vmatpush1.msra.mxu0 0.0
        %1770 = vmatprep.subr.mxu0 0.0
        %1771 = vmatpush1.msra.mxu0 0.0
        %1772 = vmatprep.subr.mxu0 0.0
        %1773 = vmatpush1.msra.mxu0 0.0
        %1774 = vmatprep.subr.mxu0 0.0
        %1775 = vmatpush1.msra.mxu0 0.0
        %1776 = vmatprep.subr.mxu0 0.0
        %1777 = vmatpush1.msra.mxu0 0.0
        %1778 = vmatprep.subr.mxu0 0.0
        %1779 = vmatpush1.msra.mxu0 0.0
        %1780 = vmatprep.mubr.f32.mxu0 0.0
        %1781 = vmatmul.mubr.f32.gmra.mrb[0].mxu0 %v1715
        %v1782 = vpop.f32.mrb[0].mxu0
        %v1783 = vadd.f32 %v1641, %v1782
        %v1784 = vpop.f32.mrb[0].mxu0
        %1785 = vdwg.mxu0
        %v1786 = vadd.f32 %v1783, %v267
        %v1787 = vtanh.pop %v1786
        %v1788 = vsel %vm252, %v1787, 0.0
        %v1789 = vsel %vm249, %v1644, %v1788
        %s1790 = scalar_lea.vmem %s233, 24 [#allocation6]
        %1791 = vst [vmem:[%s1790] sm:$0xff] %v1789
        %1792 = vmatprep.subr.mxu0 0.0
        %1793 = vmatpush1.msra.mxu0 %v268
        %1794 = vmatprep.subr.mxu0 0.0
        %1795 = vmatpush1.msra.mxu0 %v269
        %1796 = vmatprep.subr.mxu0 0.0
        %1797 = vmatpush1.msra.mxu0 %v270
        %1798 = vmatprep.subr.mxu0 0.0
        %1799 = vmatpush1.msra.mxu0 %v271
        %1800 = vmatprep.subr.mxu0 0.0
        %1801 = vmatpush1.msra.mxu0 %v272
        %1802 = vmatprep.subr.mxu0 0.0
        %1803 = vmatpush1.msra.mxu0 %v273
        %1804 = vmatprep.subr.mxu0 0.0
        %1805 = vmatpush1.msra.mxu0 %v274
        %1806 = vmatprep.subr.mxu0 0.0
        %1807 = vmatpush1.msra.mxu0 %v275
        %1808 = vmatprep.subr.mxu0 0.0
        %1809 = vmatpush1.msra.mxu0 %v276
        %1810 = vmatprep.subr.mxu0 0.0
        %1811 = vmatpush1.msra.mxu0 %v277
        %1812 = vmatprep.subr.mxu0 0.0
        %1813 = vmatpush1.msra.mxu0 %v278
        %1814 = vmatprep.subr.mxu0 0.0
        %1815 = vmatpush1.msra.mxu0 %v279
        %1816 = vmatprep.subr.mxu0 0.0
        %1817 = vmatpush1.msra.mxu0 %v280
        %1818 = vmatprep.subr.mxu0 0.0
        %1819 = vmatpush1.msra.mxu0 %v281
        %1820 = vmatprep.subr.mxu0 0.0
        %1821 = vmatpush1.msra.mxu0 %v282
        %1822 = vmatprep.subr.mxu0 0.0
        %1823 = vmatpush1.msra.mxu0 %v283
        %1824 = vmatprep.subr.mxu0 0.0
        %1825 = vmatpush1.msra.mxu0 0.0
        %1826 = vmatprep.subr.mxu0 0.0
        %1827 = vmatpush1.msra.mxu0 0.0
        %1828 = vmatprep.subr.mxu0 0.0
        %1829 = vmatpush1.msra.mxu0 0.0
        %1830 = vmatprep.subr.mxu0 0.0
        %1831 = vmatpush1.msra.mxu0 0.0
        %1832 = vmatprep.subr.mxu0 0.0
        %1833 = vmatpush1.msra.mxu0 0.0
        %1834 = vmatprep.subr.mxu0 0.0
        %1835 = vmatpush1.msra.mxu0 0.0
        %1836 = vmatprep.subr.mxu0 0.0
        %1837 = vmatpush1.msra.mxu0 0.0
        %1838 = vmatprep.subr.mxu0 0.0
        %1839 = vmatpush1.msra.mxu0 0.0
        %1840 = vmatprep.subr.mxu0 0.0
        %1841 = vmatpush1.msra.mxu0 0.0
        %1842 = vmatprep.subr.mxu0 0.0
        %1843 = vmatpush1.msra.mxu0 0.0
        %1844 = vmatprep.subr.mxu0 0.0
        %1845 = vmatpush1.msra.mxu0 0.0
        %1846 = vmatprep.subr.mxu0 0.0
        %1847 = vmatpush1.msra.mxu0 0.0
        %1848 = vmatprep.subr.mxu0 0.0
        %1849 = vmatpush1.msra.mxu0 0.0
        %1850 = vmatprep.subr.mxu0 0.0
        %1851 = vmatpush1.msra.mxu0 0.0
        %1852 = vmatprep.subr.mxu0 0.0
        %1853 = vmatpush1.msra.mxu0 0.0
        %1854 = vmatprep.subr.mxu0 0.0
        %1855 = vmatpush1.msra.mxu0 0.0
        %1856 = vmatprep.mubr.f32.mxu0 0.0
        %1857 = vmatmul.mubr.f32.gmra.mrb[0].mxu0 %v1789
        %v1858 = vpop.f32.mrb[0].mxu0
        %v1859 = vadd.f32 %v692, %v1858
        %v1860 = vpop.f32.mrb[0].mxu0
        %1861 = vdwg.mxu0
        %v1862 = vmax.f32 %v1859, 0.0
        %1863 = vmatprep.subr.mxu0 0.0
        %1864 = vmatpush1.msra.mxu0 %v285
        %1865 = vmatprep.subr.mxu0 0.0
        %1866 = vmatpush1.msra.mxu0 %v286
        %1867 = vmatprep.subr.mxu0 0.0
        %1868 = vmatpush1.msra.mxu0 %v287
        %1869 = vmatprep.subr.mxu0 0.0
        %1870 = vmatpush1.msra.mxu0 %v288
        %1871 = vmatprep.subr.mxu0 0.0
        %1872 = vmatpush1.msra.mxu0 %v289
        %1873 = vmatprep.subr.mxu0 0.0
        %1874 = vmatpush1.msra.mxu0 %v290
        %1875 = vmatprep.subr.mxu0 0.0
        %1876 = vmatpush1.msra.mxu0 %v291
        %1877 = vmatprep.subr.mxu0 0.0
        %1878 = vmatpush1.msra.mxu0 %v292
        %1879 = vmatprep.subr.mxu0 0.0
        %1880 = vmatpush1.msra.mxu0 %v293
        %1881 = vmatprep.subr.mxu0 0.0
        %1882 = vmatpush1.msra.mxu0 %v294
        %1883 = vmatprep.subr.mxu0 0.0
        %1884 = vmatpush1.msra.mxu0 %v295
        %1885 = vmatprep.subr.mxu0 0.0
        %1886 = vmatpush1.msra.mxu0 %v296
        %1887 = vmatprep.subr.mxu0 0.0
        %1888 = vmatpush1.msra.mxu0 %v297
        %1889 = vmatprep.subr.mxu0 0.0
        %1890 = vmatpush1.msra.mxu0 %v298
        %1891 = vmatprep.subr.mxu0 0.0
        %1892 = vmatpush1.msra.mxu0 %v299
        %1893 = vmatprep.subr.mxu0 0.0
        %1894 = vmatpush1.msra.mxu0 %v300
        %1895 = vmatprep.subr.mxu0 0.0
        %1896 = vmatpush1.msra.mxu0 0.0
        %1897 = vmatprep.subr.mxu0 0.0
        %1898 = vmatpush1.msra.mxu0 0.0
        %1899 = vmatprep.subr.mxu0 0.0
        %1900 = vmatpush1.msra.mxu0 0.0
        %1901 = vmatprep.subr.mxu0 0.0
        %1902 = vmatpush1.msra.mxu0 0.0
        %1903 = vmatprep.subr.mxu0 0.0
        %1904 = vmatpush1.msra.mxu0 0.0
        %1905 = vmatprep.subr.mxu0 0.0
        %1906 = vmatpush1.msra.mxu0 0.0
        %1907 = vmatprep.subr.mxu0 0.0
        %1908 = vmatpush1.msra.mxu0 0.0
        %1909 = vmatprep.subr.mxu0 0.0
        %1910 = vmatpush1.msra.mxu0 0.0
        %1911 = vmatprep.subr.mxu0 0.0
        %1912 = vmatpush1.msra.mxu0 0.0
        %1913 = vmatprep.subr.mxu0 0.0
        %1914 = vmatpush1.msra.mxu0 0.0
        %1915 = vmatprep.subr.mxu0 0.0
        %1916 = vmatpush1.msra.mxu0 0.0
        %1917 = vmatprep.subr.mxu0 0.0
        %1918 = vmatpush1.msra.mxu0 0.0
        %1919 = vmatprep.subr.mxu0 0.0
        %1920 = vmatpush1.msra.mxu0 0.0
        %1921 = vmatprep.subr.mxu0 0.0
        %1922 = vmatpush1.msra.mxu0 0.0
        %1923 = vmatprep.subr.mxu0 0.0
        %1924 = vmatpush1.msra.mxu0 0.0
        %1925 = vmatprep.subr.mxu0 0.0
        %1926 = vmatpush1.msra.mxu0 0.0
        %1927 = vmatprep.mubr.f32.mxu0 0.0
        %1928 = vmatmul.mubr.f32.gmra.mrb[0].mxu0 %v1862
        %v1929 = vpop.f32.mrb[0].mxu0
        %v1930 = vadd.f32 %v262, %v1929
        %v1931 = vpop.f32.mrb[0].mxu0
        %1932 = vdwg.mxu0
        %v1933 = vmax.f32 %v1930, 0.0
        %1934 = vmatprep.subr.mxu0 0.0
        %1935 = vmatpush1.msra.mxu0 %v302
        %1936 = vmatprep.subr.mxu0 0.0
        %1937 = vmatpush1.msra.mxu0 %v303
        %1938 = vmatprep.subr.mxu0 0.0
        %1939 = vmatpush1.msra.mxu0 %v304
        %1940 = vmatprep.subr.mxu0 0.0
        %1941 = vmatpush1.msra.mxu0 %v305
        %1942 = vmatprep.subr.mxu0 0.0
        %1943 = vmatpush1.msra.mxu0 %v306
        %1944 = vmatprep.subr.mxu0 0.0
        %1945 = vmatpush1.msra.mxu0 %v307
        %1946 = vmatprep.subr.mxu0 0.0
        %1947 = vmatpush1.msra.mxu0 %v308
        %1948 = vmatprep.subr.mxu0 0.0
        %1949 = vmatpush1.msra.mxu0 %v309
        %1950 = vmatprep.subr.mxu0 0.0
        %1951 = vmatpush1.msra.mxu0 %v310
        %1952 = vmatprep.subr.mxu0 0.0
        %1953 = vmatpush1.msra.mxu0 %v311
        %1954 = vmatprep.subr.mxu0 0.0
        %1955 = vmatpush1.msra.mxu0 %v312
        %1956 = vmatprep.subr.mxu0 0.0
        %1957 = vmatpush1.msra.mxu0 %v313
        %1958 = vmatprep.subr.mxu0 0.0
        %1959 = vmatpush1.msra.mxu0 %v314
        %1960 = vmatprep.subr.mxu0 0.0
        %1961 = vmatpush1.msra.mxu0 %v315
        %1962 = vmatprep.subr.mxu0 0.0
        %1963 = vmatpush1.msra.mxu0 %v316
        %1964 = vmatprep.subr.mxu0 0.0
        %1965 = vmatpush1.msra.mxu0 %v317
        %1966 = vmatprep.subr.mxu0 0.0
        %1967 = vmatpush1.msra.mxu0 0.0
        %1968 = vmatprep.subr.mxu0 0.0
        %1969 = vmatpush1.msra.mxu0 0.0
        %1970 = vmatprep.subr.mxu0 0.0
        %1971 = vmatpush1.msra.mxu0 0.0
        %1972 = vmatprep.subr.mxu0 0.0
        %1973 = vmatpush1.msra.mxu0 0.0
        %1974 = vmatprep.subr.mxu0 0.0
        %1975 = vmatpush1.msra.mxu0 0.0
        %1976 = vmatprep.subr.mxu0 0.0
        %1977 = vmatpush1.msra.mxu0 0.0
        %1978 = vmatprep.subr.mxu0 0.0
        %1979 = vmatpush1.msra.mxu0 0.0
        %1980 = vmatprep.subr.mxu0 0.0
        %1981 = vmatpush1.msra.mxu0 0.0
        %1982 = vmatprep.subr.mxu0 0.0
        %1983 = vmatpush1.msra.mxu0 0.0
        %1984 = vmatprep.subr.mxu0 0.0
        %1985 = vmatpush1.msra.mxu0 0.0
        %1986 = vmatprep.subr.mxu0 0.0
        %1987 = vmatpush1.msra.mxu0 0.0
        %1988 = vmatprep.subr.mxu0 0.0
        %1989 = vmatpush1.msra.mxu0 0.0
        %1990 = vmatprep.subr.mxu0 0.0
        %1991 = vmatpush1.msra.mxu0 0.0
        %1992 = vmatprep.subr.mxu0 0.0
        %1993 = vmatpush1.msra.mxu0 0.0
        %1994 = vmatprep.subr.mxu0 0.0
        %1995 = vmatpush1.msra.mxu0 0.0
        %1996 = vmatprep.subr.mxu0 0.0
        %1997 = vmatpush1.msra.mxu0 0.0
        %1998 = vmatprep.mubr.f32.mxu0 0.0
        %1999 = vmatmul.mubr.f32.gmra.mrb[0].mxu0 %v1933
        %v2000 = vpop.f32.mrb[0].mxu0
        %v2001 = vadd.f32 %v1859, %v2000
        %v2002 = vpop.f32.mrb[0].mxu0
        %2003 = vdwg.mxu0
        %v2004 = vadd.f32 %v2001, %v267
        %v2005 = vtanh.pop %v2004
        %v2006 = vsel %vm252, %v2005, 0.0
        %v2007 = vsel %vm249, %v1862, %v2006
        %s2008 = scalar_lea.vmem %s233, 32 [#allocation6]
        %2009 = vst [vmem:[%s2008] sm:$0xff] %v2007
        %2010 = vmatprep.subr.mxu0 0.0
        %2011 = vmatpush1.msra.mxu0 %v268
        %2012 = vmatprep.subr.mxu0 0.0
        %2013 = vmatpush1.msra.mxu0 %v269
        %2014 = vmatprep.subr.mxu0 0.0
        %2015 = vmatpush1.msra.mxu0 %v270
        %2016 = vmatprep.subr.mxu0 0.0
        %2017 = vmatpush1.msra.mxu0 %v271
        %2018 = vmatprep.subr.mxu0 0.0
        %2019 = vmatpush1.msra.mxu0 %v272
        %2020 = vmatprep.subr.mxu0 0.0
        %2021 = vmatpush1.msra.mxu0 %v273
        %2022 = vmatprep.subr.mxu0 0.0
        %2023 = vmatpush1.msra.mxu0 %v274
        %2024 = vmatprep.subr.mxu0 0.0
        %2025 = vmatpush1.msra.mxu0 %v275
        %2026 = vmatprep.subr.mxu0 0.0
        %2027 = vmatpush1.msra.mxu0 %v276
        %2028 = vmatprep.subr.mxu0 0.0
        %2029 = vmatpush1.msra.mxu0 %v277
        %2030 = vmatprep.subr.mxu0 0.0
        %2031 = vmatpush1.msra.mxu0 %v278
        %2032 = vmatprep.subr.mxu0 0.0
        %2033 = vmatpush1.msra.mxu0 %v279
        %2034 = vmatprep.subr.mxu0 0.0
        %2035 = vmatpush1.msra.mxu0 %v280
        %2036 = vmatprep.subr.mxu0 0.0
        %2037 = vmatpush1.msra.mxu0 %v281
        %2038 = vmatprep.subr.mxu0 0.0
        %2039 = vmatpush1.msra.mxu0 %v282
        %2040 = vmatprep.subr.mxu0 0.0
        %2041 = vmatpush1.msra.mxu0 %v283
        %2042 = vmatprep.subr.mxu0 0.0
        %2043 = vmatpush1.msra.mxu0 0.0
        %2044 = vmatprep.subr.mxu0 0.0
        %2045 = vmatpush1.msra.mxu0 0.0
        %2046 = vmatprep.subr.mxu0 0.0
        %2047 = vmatpush1.msra.mxu0 0.0
        %2048 = vmatprep.subr.mxu0 0.0
        %2049 = vmatpush1.msra.mxu0 0.0
        %2050 = vmatprep.subr.mxu0 0.0
        %2051 = vmatpush1.msra.mxu0 0.0
        %2052 = vmatprep.subr.mxu0 0.0
        %2053 = vmatpush1.msra.mxu0 0.0
        %2054 = vmatprep.subr.mxu0 0.0
        %2055 = vmatpush1.msra.mxu0 0.0
        %2056 = vmatprep.subr.mxu0 0.0
        %2057 = vmatpush1.msra.mxu0 0.0
        %2058 = vmatprep.subr.mxu0 0.0
        %2059 = vmatpush1.msra.mxu0 0.0
        %2060 = vmatprep.subr.mxu0 0.0
        %2061 = vmatpush1.msra.mxu0 0.0
        %2062 = vmatprep.subr.mxu0 0.0
        %2063 = vmatpush1.msra.mxu0 0.0
        %2064 = vmatprep.subr.mxu0 0.0
        %2065 = vmatpush1.msra.mxu0 0.0
        %2066 = vmatprep.subr.mxu0 0.0
        %2067 = vmatpush1.msra.mxu0 0.0
        %2068 = vmatprep.subr.mxu0 0.0
        %2069 = vmatpush1.msra.mxu0 0.0
        %2070 = vmatprep.subr.mxu0 0.0
        %2071 = vmatpush1.msra.mxu0 0.0
        %2072 = vmatprep.subr.mxu0 0.0
        %2073 = vmatpush1.msra.mxu0 0.0
        %2074 = vmatprep.mubr.f32.mxu0 0.0
        %2075 = vmatmul.mubr.f32.gmra.mrb[0].mxu0 %v2007
        %v2076 = vpop.f32.mrb[0].mxu0
        %v2077 = vadd.f32 %v767, %v2076
        %v2078 = vpop.f32.mrb[0].mxu0
        %2079 = vdwg.mxu0
        %v2080 = vmax.f32 %v2077, 0.0
        %2081 = vmatprep.subr.mxu0 0.0
        %2082 = vmatpush1.msra.mxu0 %v285
        %2083 = vmatprep.subr.mxu0 0.0
        %2084 = vmatpush1.msra.mxu0 %v286
        %2085 = vmatprep.subr.mxu0 0.0
        %2086 = vmatpush1.msra.mxu0 %v287
        %2087 = vmatprep.subr.mxu0 0.0
        %2088 = vmatpush1.msra.mxu0 %v288
        %2089 = vmatprep.subr.mxu0 0.0
        %2090 = vmatpush1.msra.mxu0 %v289
        %2091 = vmatprep.subr.mxu0 0.0
        %2092 = vmatpush1.msra.mxu0 %v290
        %2093 = vmatprep.subr.mxu0 0.0
        %2094 = vmatpush1.msra.mxu0 %v291
        %2095 = vmatprep.subr.mxu0 0.0
        %2096 = vmatpush1.msra.mxu0 %v292
        %2097 = vmatprep.subr.mxu0 0.0
        %2098 = vmatpush1.msra.mxu0 %v293
        %2099 = vmatprep.subr.mxu0 0.0
        %2100 = vmatpush1.msra.mxu0 %v294
        %2101 = vmatprep.subr.mxu0 0.0
        %2102 = vmatpush1.msra.mxu0 %v295
        %2103 = vmatprep.subr.mxu0 0.0
        %2104 = vmatpush1.msra.mxu0 %v296
        %2105 = vmatprep.subr.mxu0 0.0
        %2106 = vmatpush1.msra.mxu0 %v297
        %2107 = vmatprep.subr.mxu0 0.0
        %2108 = vmatpush1.msra.mxu0 %v298
        %2109 = vmatprep.subr.mxu0 0.0
        %2110 = vmatpush1.msra.mxu0 %v299
        %2111 = vmatprep.subr.mxu0 0.0
        %2112 = vmatpush1.msra.mxu0 %v300
        %2113 = vmatprep.subr.mxu0 0.0
        %2114 = vmatpush1.msra.mxu0 0.0
        %2115 = vmatprep.subr.mxu0 0.0
        %2116 = vmatpush1.msra.mxu0 0.0
        %2117 = vmatprep.subr.mxu0 0.0
        %2118 = vmatpush1.msra.mxu0 0.0
        %2119 = vmatprep.subr.mxu0 0.0
        %2120 = vmatpush1.msra.mxu0 0.0
        %2121 = vmatprep.subr.mxu0 0.0
        %2122 = vmatpush1.msra.mxu0 0.0
        %2123 = vmatprep.subr.mxu0 0.0
        %2124 = vmatpush1.msra.mxu0 0.0
        %2125 = vmatprep.subr.mxu0 0.0
        %2126 = vmatpush1.msra.mxu0 0.0
        %2127 = vmatprep.subr.mxu0 0.0
        %2128 = vmatpush1.msra.mxu0 0.0
        %2129 = vmatprep.subr.mxu0 0.0
        %2130 = vmatpush1.msra.mxu0 0.0
        %2131 = vmatprep.subr.mxu0 0.0
        %2132 = vmatpush1.msra.mxu0 0.0
        %2133 = vmatprep.subr.mxu0 0.0
        %2134 = vmatpush1.msra.mxu0 0.0
        %2135 = vmatprep.subr.mxu0 0.0
        %2136 = vmatpush1.msra.mxu0 0.0
        %2137 = vmatprep.subr.mxu0 0.0
        %2138 = vmatpush1.msra.mxu0 0.0
        %2139 = vmatprep.subr.mxu0 0.0
        %2140 = vmatpush1.msra.mxu0 0.0
        %2141 = vmatprep.subr.mxu0 0.0
        %2142 = vmatpush1.msra.mxu0 0.0
        %2143 = vmatprep.subr.mxu0 0.0
        %2144 = vmatpush1.msra.mxu0 0.0
        %2145 = vmatprep.mubr.f32.mxu0 0.0
        %2146 = vmatmul.mubr.f32.gmra.mrb[0].mxu0 %v2080
        %v2147 = vpop.f32.mrb[0].mxu0
        %v2148 = vadd.f32 %v262, %v2147
        %v2149 = vpop.f32.mrb[0].mxu0
        %2150 = vdwg.mxu0
        %v2151 = vmax.f32 %v2148, 0.0
        %2152 = vmatprep.subr.mxu0 0.0
        %2153 = vmatpush1.msra.mxu0 %v302
        %2154 = vmatprep.subr.mxu0 0.0
        %2155 = vmatpush1.msra.mxu0 %v303
        %2156 = vmatprep.subr.mxu0 0.0
        %2157 = vmatpush1.msra.mxu0 %v304
        %2158 = vmatprep.subr.mxu0 0.0
        %2159 = vmatpush1.msra.mxu0 %v305
        %2160 = vmatprep.subr.mxu0 0.0
        %2161 = vmatpush1.msra.mxu0 %v306
        %2162 = vmatprep.subr.mxu0 0.0
        %2163 = vmatpush1.msra.mxu0 %v307
        %2164 = vmatprep.subr.mxu0 0.0
        %2165 = vmatpush1.msra.mxu0 %v308
        %2166 = vmatprep.subr.mxu0 0.0
        %2167 = vmatpush1.msra.mxu0 %v309
        %2168 = vmatprep.subr.mxu0 0.0
        %2169 = vmatpush1.msra.mxu0 %v310
        %2170 = vmatprep.subr.mxu0 0.0
        %2171 = vmatpush1.msra.mxu0 %v311
        %2172 = vmatprep.subr.mxu0 0.0
        %2173 = vmatpush1.msra.mxu0 %v312
        %2174 = vmatprep.subr.mxu0 0.0
        %2175 = vmatpush1.msra.mxu0 %v313
        %2176 = vmatprep.subr.mxu0 0.0
        %2177 = vmatpush1.msra.mxu0 %v314
        %2178 = vmatprep.subr.mxu0 0.0
        %2179 = vmatpush1.msra.mxu0 %v315
        %2180 = vmatprep.subr.mxu0 0.0
        %2181 = vmatpush1.msra.mxu0 %v316
        %2182 = vmatprep.subr.mxu0 0.0
        %2183 = vmatpush1.msra.mxu0 %v317
        %2184 = vmatprep.subr.mxu0 0.0
        %2185 = vmatpush1.msra.mxu0 0.0
        %2186 = vmatprep.subr.mxu0 0.0
        %2187 = vmatpush1.msra.mxu0 0.0
        %2188 = vmatprep.subr.mxu0 0.0
        %2189 = vmatpush1.msra.mxu0 0.0
        %2190 = vmatprep.subr.mxu0 0.0
        %2191 = vmatpush1.msra.mxu0 0.0
        %2192 = vmatprep.subr.mxu0 0.0
        %2193 = vmatpush1.msra.mxu0 0.0
        %2194 = vmatprep.subr.mxu0 0.0
        %2195 = vmatpush1.msra.mxu0 0.0
        %2196 = vmatprep.subr.mxu0 0.0
        %2197 = vmatpush1.msra.mxu0 0.0
        %2198 = vmatprep.subr.mxu0 0.0
        %2199 = vmatpush1.msra.mxu0 0.0
        %2200 = vmatprep.subr.mxu0 0.0
        %2201 = vmatpush1.msra.mxu0 0.0
        %2202 = vmatprep.subr.mxu0 0.0
        %2203 = vmatpush1.msra.mxu0 0.0
        %2204 = vmatprep.subr.mxu0 0.0
        %2205 = vmatpush1.msra.mxu0 0.0
        %2206 = vmatprep.subr.mxu0 0.0
        %2207 = vmatpush1.msra.mxu0 0.0
        %2208 = vmatprep.subr.mxu0 0.0
        %2209 = vmatpush1.msra.mxu0 0.0
        %2210 = vmatprep.subr.mxu0 0.0
        %2211 = vmatpush1.msra.mxu0 0.0
        %2212 = vmatprep.subr.mxu0 0.0
        %2213 = vmatpush1.msra.mxu0 0.0
        %2214 = vmatprep.subr.mxu0 0.0
        %2215 = vmatpush1.msra.mxu0 0.0
        %2216 = vmatprep.mubr.f32.mxu0 0.0
        %2217 = vmatmul.mubr.f32.gmra.mrb[0].mxu0 %v2151
        %v2218 = vpop.f32.mrb[0].mxu0
        %v2219 = vadd.f32 %v2077, %v2218
        %v2220 = vpop.f32.mrb[0].mxu0
        %2221 = vdwg.mxu0
        %v2222 = vadd.f32 %v2219, %v267
        %v2223 = vtanh.pop %v2222
        %v2224 = vsel %vm252, %v2223, 0.0
        %v2225 = vsel %vm249, %v2080, %v2224
        %s2226 = scalar_lea.vmem %s233, 40 [#allocation6]
        %2227 = vst [vmem:[%s2226] sm:$0xff] %v2225
        %2228 = vmatprep.subr.mxu0 0.0
        %2229 = vmatpush1.msra.mxu0 %v268
        %2230 = vmatprep.subr.mxu0 0.0
        %2231 = vmatpush1.msra.mxu0 %v269
        %2232 = vmatprep.subr.mxu0 0.0
        %2233 = vmatpush1.msra.mxu0 %v270
        %2234 = vmatprep.subr.mxu0 0.0
        %2235 = vmatpush1.msra.mxu0 %v271
        %2236 = vmatprep.subr.mxu0 0.0
        %2237 = vmatpush1.msra.mxu0 %v272
        %2238 = vmatprep.subr.mxu0 0.0
        %2239 = vmatpush1.msra.mxu0 %v273
        %2240 = vmatprep.subr.mxu0 0.0
        %2241 = vmatpush1.msra.mxu0 %v274
        %2242 = vmatprep.subr.mxu0 0.0
        %2243 = vmatpush1.msra.mxu0 %v275
        %2244 = vmatprep.subr.mxu0 0.0
        %2245 = vmatpush1.msra.mxu0 %v276
        %2246 = vmatprep.subr.mxu0 0.0
        %2247 = vmatpush1.msra.mxu0 %v277
        %2248 = vmatprep.subr.mxu0 0.0
        %2249 = vmatpush1.msra.mxu0 %v278
        %2250 = vmatprep.subr.mxu0 0.0
        %2251 = vmatpush1.msra.mxu0 %v279
        %2252 = vmatprep.subr.mxu0 0.0
        %2253 = vmatpush1.msra.mxu0 %v280
        %2254 = vmatprep.subr.mxu0 0.0
        %2255 = vmatpush1.msra.mxu0 %v281
        %2256 = vmatprep.subr.mxu0 0.0
        %2257 = vmatpush1.msra.mxu0 %v282
        %2258 = vmatprep.subr.mxu0 0.0
        %2259 = vmatpush1.msra.mxu0 %v283
        %2260 = vmatprep.subr.mxu0 0.0
        %2261 = vmatpush1.msra.mxu0 0.0
        %2262 = vmatprep.subr.mxu0 0.0
        %2263 = vmatpush1.msra.mxu0 0.0
        %2264 = vmatprep.subr.mxu0 0.0
        %2265 = vmatpush1.msra.mxu0 0.0
        %2266 = vmatprep.subr.mxu0 0.0
        %2267 = vmatpush1.msra.mxu0 0.0
        %2268 = vmatprep.subr.mxu0 0.0
        %2269 = vmatpush1.msra.mxu0 0.0
        %2270 = vmatprep.subr.mxu0 0.0
        %2271 = vmatpush1.msra.mxu0 0.0
        %2272 = vmatprep.subr.mxu0 0.0
        %2273 = vmatpush1.msra.mxu0 0.0
        %2274 = vmatprep.subr.mxu0 0.0
        %2275 = vmatpush1.msra.mxu0 0.0
        %2276 = vmatprep.subr.mxu0 0.0
        %2277 = vmatpush1.msra.mxu0 0.0
        %2278 = vmatprep.subr.mxu0 0.0
        %2279 = vmatpush1.msra.mxu0 0.0
        %2280 = vmatprep.subr.mxu0 0.0
        %2281 = vmatpush1.msra.mxu0 0.0
        %2282 = vmatprep.subr.mxu0 0.0
        %2283 = vmatpush1.msra.mxu0 0.0
        %2284 = vmatprep.subr.mxu0 0.0
        %2285 = vmatpush1.msra.mxu0 0.0
        %2286 = vmatprep.subr.mxu0 0.0
        %2287 = vmatpush1.msra.mxu0 0.0
        %2288 = vmatprep.subr.mxu0 0.0
        %2289 = vmatpush1.msra.mxu0 0.0
        %2290 = vmatprep.subr.mxu0 0.0
        %2291 = vmatpush1.msra.mxu0 0.0
        %2292 = vmatprep.mubr.f32.mxu0 0.0
        %2293 = vmatmul.mubr.f32.gmra.mrb[0].mxu0 %v2225
        %v2294 = vpop.f32.mrb[0].mxu0
        %v2295 = vadd.f32 %v842, %v2294
        %v2296 = vpop.f32.mrb[0].mxu0
        %2297 = vdwg.mxu0
        %v2298 = vmax.f32 %v2295, 0.0
        %2299 = vmatprep.subr.mxu0 0.0
        %2300 = vmatpush1.msra.mxu0 %v285
        %2301 = vmatprep.subr.mxu0 0.0
        %2302 = vmatpush1.msra.mxu0 %v286
        %2303 = vmatprep.subr.mxu0 0.0
        %2304 = vmatpush1.msra.mxu0 %v287
        %2305 = vmatprep.subr.mxu0 0.0
        %2306 = vmatpush1.msra.mxu0 %v288
        %2307 = vmatprep.subr.mxu0 0.0
        %2308 = vmatpush1.msra.mxu0 %v289
        %2309 = vmatprep.subr.mxu0 0.0
        %2310 = vmatpush1.msra.mxu0 %v290
        %2311 = vmatprep.subr.mxu0 0.0
        %2312 = vmatpush1.msra.mxu0 %v291
        %2313 = vmatprep.subr.mxu0 0.0
        %2314 = vmatpush1.msra.mxu0 %v292
        %2315 = vmatprep.subr.mxu0 0.0
        %2316 = vmatpush1.msra.mxu0 %v293
        %2317 = vmatprep.subr.mxu0 0.0
        %2318 = vmatpush1.msra.mxu0 %v294
        %2319 = vmatprep.subr.mxu0 0.0
        %2320 = vmatpush1.msra.mxu0 %v295
        %2321 = vmatprep.subr.mxu0 0.0
        %2322 = vmatpush1.msra.mxu0 %v296
        %2323 = vmatprep.subr.mxu0 0.0
        %2324 = vmatpush1.msra.mxu0 %v297
        %2325 = vmatprep.subr.mxu0 0.0
        %2326 = vmatpush1.msra.mxu0 %v298
        %2327 = vmatprep.subr.mxu0 0.0
        %2328 = vmatpush1.msra.mxu0 %v299
        %2329 = vmatprep.subr.mxu0 0.0
        %2330 = vmatpush1.msra.mxu0 %v300
        %2331 = vmatprep.subr.mxu0 0.0
        %2332 = vmatpush1.msra.mxu0 0.0
        %2333 = vmatprep.subr.mxu0 0.0
        %2334 = vmatpush1.msra.mxu0 0.0
        %2335 = vmatprep.subr.mxu0 0.0
        %2336 = vmatpush1.msra.mxu0 0.0
        %2337 = vmatprep.subr.mxu0 0.0
        %2338 = vmatpush1.msra.mxu0 0.0
        %2339 = vmatprep.subr.mxu0 0.0
        %2340 = vmatpush1.msra.mxu0 0.0
        %2341 = vmatprep.subr.mxu0 0.0
        %2342 = vmatpush1.msra.mxu0 0.0
        %2343 = vmatprep.subr.mxu0 0.0
        %2344 = vmatpush1.msra.mxu0 0.0
        %2345 = vmatprep.subr.mxu0 0.0
        %2346 = vmatpush1.msra.mxu0 0.0
        %2347 = vmatprep.subr.mxu0 0.0
        %2348 = vmatpush1.msra.mxu0 0.0
        %2349 = vmatprep.subr.mxu0 0.0
        %2350 = vmatpush1.msra.mxu0 0.0
        %2351 = vmatprep.subr.mxu0 0.0
        %2352 = vmatpush1.msra.mxu0 0.0
        %2353 = vmatprep.subr.mxu0 0.0
        %2354 = vmatpush1.msra.mxu0 0.0
        %2355 = vmatprep.subr.mxu0 0.0
        %2356 = vmatpush1.msra.mxu0 0.0
        %2357 = vmatprep.subr.mxu0 0.0
        %2358 = vmatpush1.msra.mxu0 0.0
        %2359 = vmatprep.subr.mxu0 0.0
        %2360 = vmatpush1.msra.mxu0 0.0
        %2361 = vmatprep.subr.mxu0 0.0
        %2362 = vmatpush1.msra.mxu0 0.0
        %2363 = vmatprep.mubr.f32.mxu0 0.0
        %2364 = vmatmul.mubr.f32.gmra.mrb[0].mxu0 %v2298
        %v2365 = vpop.f32.mrb[0].mxu0
        %v2366 = vadd.f32 %v262, %v2365
        %v2367 = vpop.f32.mrb[0].mxu0
        %2368 = vdwg.mxu0
        %v2369 = vmax.f32 %v2366, 0.0
        %2370 = vmatprep.subr.mxu0 0.0
        %2371 = vmatpush1.msra.mxu0 %v302
        %2372 = vmatprep.subr.mxu0 0.0
        %2373 = vmatpush1.msra.mxu0 %v303
        %2374 = vmatprep.subr.mxu0 0.0
        %2375 = vmatpush1.msra.mxu0 %v304
        %2376 = vmatprep.subr.mxu0 0.0
        %2377 = vmatpush1.msra.mxu0 %v305
        %2378 = vmatprep.subr.mxu0 0.0
        %2379 = vmatpush1.msra.mxu0 %v306
        %2380 = vmatprep.subr.mxu0 0.0
        %2381 = vmatpush1.msra.mxu0 %v307
        %2382 = vmatprep.subr.mxu0 0.0
        %2383 = vmatpush1.msra.mxu0 %v308
        %2384 = vmatprep.subr.mxu0 0.0
        %2385 = vmatpush1.msra.mxu0 %v309
        %2386 = vmatprep.subr.mxu0 0.0
        %2387 = vmatpush1.msra.mxu0 %v310
        %2388 = vmatprep.subr.mxu0 0.0
        %2389 = vmatpush1.msra.mxu0 %v311
        %2390 = vmatprep.subr.mxu0 0.0
        %2391 = vmatpush1.msra.mxu0 %v312
        %2392 = vmatprep.subr.mxu0 0.0
        %2393 = vmatpush1.msra.mxu0 %v313
        %2394 = vmatprep.subr.mxu0 0.0
        %2395 = vmatpush1.msra.mxu0 %v314
        %2396 = vmatprep.subr.mxu0 0.0
        %2397 = vmatpush1.msra.mxu0 %v315
        %2398 = vmatprep.subr.mxu0 0.0
        %2399 = vmatpush1.msra.mxu0 %v316
        %2400 = vmatprep.subr.mxu0 0.0
        %2401 = vmatpush1.msra.mxu0 %v317
        %2402 = vmatprep.subr.mxu0 0.0
        %2403 = vmatpush1.msra.mxu0 0.0
        %2404 = vmatprep.subr.mxu0 0.0
        %2405 = vmatpush1.msra.mxu0 0.0
        %2406 = vmatprep.subr.mxu0 0.0
        %2407 = vmatpush1.msra.mxu0 0.0
        %2408 = vmatprep.subr.mxu0 0.0
        %2409 = vmatpush1.msra.mxu0 0.0
        %2410 = vmatprep.subr.mxu0 0.0
        %2411 = vmatpush1.msra.mxu0 0.0
        %2412 = vmatprep.subr.mxu0 0.0
        %2413 = vmatpush1.msra.mxu0 0.0
        %2414 = vmatprep.subr.mxu0 0.0
        %2415 = vmatpush1.msra.mxu0 0.0
        %2416 = vmatprep.subr.mxu0 0.0
        %2417 = vmatpush1.msra.mxu0 0.0
        %2418 = vmatprep.subr.mxu0 0.0
        %2419 = vmatpush1.msra.mxu0 0.0
        %2420 = vmatprep.subr.mxu0 0.0
        %2421 = vmatpush1.msra.mxu0 0.0
        %2422 = vmatprep.subr.mxu0 0.0
        %2423 = vmatpush1.msra.mxu0 0.0
        %2424 = vmatprep.subr.mxu0 0.0
        %2425 = vmatpush1.msra.mxu0 0.0
        %2426 = vmatprep.subr.mxu0 0.0
        %2427 = vmatpush1.msra.mxu0 0.0
        %2428 = vmatprep.subr.mxu0 0.0
        %2429 = vmatpush1.msra.mxu0 0.0
        %2430 = vmatprep.subr.mxu0 0.0
        %2431 = vmatpush1.msra.mxu0 0.0
        %2432 = vmatprep.subr.mxu0 0.0
        %2433 = vmatpush1.msra.mxu0 0.0
        %2434 = vmatprep.mubr.f32.mxu0 0.0
        %2435 = vmatmul.mubr.f32.gmra.mrb[0].mxu0 %v2369
        %v2436 = vpop.f32.mrb[0].mxu0
        %v2437 = vadd.f32 %v2295, %v2436
        %v2438 = vpop.f32.mrb[0].mxu0
        %2439 = vdwg.mxu0
        %v2440 = vadd.f32 %v2437, %v267
        %v2441 = vtanh.pop %v2440
        %v2442 = vsel %vm252, %v2441, 0.0
        %v2443 = vsel %vm249, %v2298, %v2442
        %s2444 = scalar_lea.vmem %s233, 48 [#allocation6]
        %2445 = vst [vmem:[%s2444] sm:$0xff] %v2443
        %2446 = vmatprep.subr.mxu0 0.0
        %2447 = vmatpush1.msra.mxu0 %v268
        %2448 = vmatprep.subr.mxu0 0.0
        %2449 = vmatpush1.msra.mxu0 %v269
        %2450 = vmatprep.subr.mxu0 0.0
        %2451 = vmatpush1.msra.mxu0 %v270
        %2452 = vmatprep.subr.mxu0 0.0
        %2453 = vmatpush1.msra.mxu0 %v271
        %2454 = vmatprep.subr.mxu0 0.0
        %2455 = vmatpush1.msra.mxu0 %v272
        %2456 = vmatprep.subr.mxu0 0.0
        %2457 = vmatpush1.msra.mxu0 %v273
        %2458 = vmatprep.subr.mxu0 0.0
        %2459 = vmatpush1.msra.mxu0 %v274
        %2460 = vmatprep.subr.mxu0 0.0
        %2461 = vmatpush1.msra.mxu0 %v275
        %2462 = vmatprep.subr.mxu0 0.0
        %2463 = vmatpush1.msra.mxu0 %v276
        %2464 = vmatprep.subr.mxu0 0.0
        %2465 = vmatpush1.msra.mxu0 %v277
        %2466 = vmatprep.subr.mxu0 0.0
        %2467 = vmatpush1.msra.mxu0 %v278
        %2468 = vmatprep.subr.mxu0 0.0
        %2469 = vmatpush1.msra.mxu0 %v279
        %2470 = vmatprep.subr.mxu0 0.0
        %2471 = vmatpush1.msra.mxu0 %v280
        %2472 = vmatprep.subr.mxu0 0.0
        %2473 = vmatpush1.msra.mxu0 %v281
        %2474 = vmatprep.subr.mxu0 0.0
        %2475 = vmatpush1.msra.mxu0 %v282
        %2476 = vmatprep.subr.mxu0 0.0
        %2477 = vmatpush1.msra.mxu0 %v283
        %2478 = vmatprep.subr.mxu0 0.0
        %2479 = vmatpush1.msra.mxu0 0.0
        %2480 = vmatprep.subr.mxu0 0.0
        %2481 = vmatpush1.msra.mxu0 0.0
        %2482 = vmatprep.subr.mxu0 0.0
        %2483 = vmatpush1.msra.mxu0 0.0
        %2484 = vmatprep.subr.mxu0 0.0
        %2485 = vmatpush1.msra.mxu0 0.0
        %2486 = vmatprep.subr.mxu0 0.0
        %2487 = vmatpush1.msra.mxu0 0.0
        %2488 = vmatprep.subr.mxu0 0.0
        %2489 = vmatpush1.msra.mxu0 0.0
        %2490 = vmatprep.subr.mxu0 0.0
        %2491 = vmatpush1.msra.mxu0 0.0
        %2492 = vmatprep.subr.mxu0 0.0
        %2493 = vmatpush1.msra.mxu0 0.0
        %2494 = vmatprep.subr.mxu0 0.0
        %2495 = vmatpush1.msra.mxu0 0.0
        %2496 = vmatprep.subr.mxu0 0.0
        %2497 = vmatpush1.msra.mxu0 0.0
        %2498 = vmatprep.subr.mxu0 0.0
        %2499 = vmatpush1.msra.mxu0 0.0
        %2500 = vmatprep.subr.mxu0 0.0
        %2501 = vmatpush1.msra.mxu0 0.0
        %2502 = vmatprep.subr.mxu0 0.0
        %2503 = vmatpush1.msra.mxu0 0.0
        %2504 = vmatprep.subr.mxu0 0.0
        %2505 = vmatpush1.msra.mxu0 0.0
        %2506 = vmatprep.subr.mxu0 0.0
        %2507 = vmatpush1.msra.mxu0 0.0
        %2508 = vmatprep.subr.mxu0 0.0
        %2509 = vmatpush1.msra.mxu0 0.0
        %2510 = vmatprep.mubr.f32.mxu0 0.0
        %2511 = vmatmul.mubr.f32.gmra.mrb[0].mxu0 %v2443
        %v2512 = vpop.f32.mrb[0].mxu0
        %v2513 = vadd.f32 %v917, %v2512
        %v2514 = vpop.f32.mrb[0].mxu0
        %2515 = vdwg.mxu0
        %v2516 = vmax.f32 %v2513, 0.0
        %2517 = vmatprep.subr.mxu0 0.0
        %2518 = vmatpush1.msra.mxu0 %v285
        %2519 = vmatprep.subr.mxu0 0.0
        %2520 = vmatpush1.msra.mxu0 %v286
        %2521 = vmatprep.subr.mxu0 0.0
        %2522 = vmatpush1.msra.mxu0 %v287
        %2523 = vmatprep.subr.mxu0 0.0
        %2524 = vmatpush1.msra.mxu0 %v288
        %2525 = vmatprep.subr.mxu0 0.0
        %2526 = vmatpush1.msra.mxu0 %v289
        %2527 = vmatprep.subr.mxu0 0.0
        %2528 = vmatpush1.msra.mxu0 %v290
        %2529 = vmatprep.subr.mxu0 0.0
        %2530 = vmatpush1.msra.mxu0 %v291
        %2531 = vmatprep.subr.mxu0 0.0
        %2532 = vmatpush1.msra.mxu0 %v292
        %2533 = vmatprep.subr.mxu0 0.0
        %2534 = vmatpush1.msra.mxu0 %v293
        %2535 = vmatprep.subr.mxu0 0.0
        %2536 = vmatpush1.msra.mxu0 %v294
        %2537 = vmatprep.subr.mxu0 0.0
        %2538 = vmatpush1.msra.mxu0 %v295
        %2539 = vmatprep.subr.mxu0 0.0
        %2540 = vmatpush1.msra.mxu0 %v296
        %2541 = vmatprep.subr.mxu0 0.0
        %2542 = vmatpush1.msra.mxu0 %v297
        %2543 = vmatprep.subr.mxu0 0.0
        %2544 = vmatpush1.msra.mxu0 %v298
        %2545 = vmatprep.subr.mxu0 0.0
        %2546 = vmatpush1.msra.mxu0 %v299
        %2547 = vmatprep.subr.mxu0 0.0
        %2548 = vmatpush1.msra.mxu0 %v300
        %2549 = vmatprep.subr.mxu0 0.0
        %2550 = vmatpush1.msra.mxu0 0.0
        %2551 = vmatprep.subr.mxu0 0.0
        %2552 = vmatpush1.msra.mxu0 0.0
        %2553 = vmatprep.subr.mxu0 0.0
        %2554 = vmatpush1.msra.mxu0 0.0
        %2555 = vmatprep.subr.mxu0 0.0
        %2556 = vmatpush1.msra.mxu0 0.0
        %2557 = vmatprep.subr.mxu0 0.0
        %2558 = vmatpush1.msra.mxu0 0.0
        %2559 = vmatprep.subr.mxu0 0.0
        %2560 = vmatpush1.msra.mxu0 0.0
        %2561 = vmatprep.subr.mxu0 0.0
        %2562 = vmatpush1.msra.mxu0 0.0
        %2563 = vmatprep.subr.mxu0 0.0
        %2564 = vmatpush1.msra.mxu0 0.0
        %2565 = vmatprep.subr.mxu0 0.0
        %2566 = vmatpush1.msra.mxu0 0.0
        %2567 = vmatprep.subr.mxu0 0.0
        %2568 = vmatpush1.msra.mxu0 0.0
        %2569 = vmatprep.subr.mxu0 0.0
        %2570 = vmatpush1.msra.mxu0 0.0
        %2571 = vmatprep.subr.mxu0 0.0
        %2572 = vmatpush1.msra.mxu0 0.0
        %2573 = vmatprep.subr.mxu0 0.0
        %2574 = vmatpush1.msra.mxu0 0.0
        %2575 = vmatprep.subr.mxu0 0.0
        %2576 = vmatpush1.msra.mxu0 0.0
        %2577 = vmatprep.subr.mxu0 0.0
        %2578 = vmatpush1.msra.mxu0 0.0
        %2579 = vmatprep.subr.mxu0 0.0
        %2580 = vmatpush1.msra.mxu0 0.0
        %2581 = vmatprep.mubr.f32.mxu0 0.0
        %2582 = vmatmul.mubr.f32.gmra.mrb[0].mxu0 %v2516
        %v2583 = vpop.f32.mrb[0].mxu0
        %v2584 = vadd.f32 %v262, %v2583
        %v2585 = vpop.f32.mrb[0].mxu0
        %2586 = vdwg.mxu0
        %v2587 = vmax.f32 %v2584, 0.0
        %2588 = vmatprep.subr.mxu0 0.0
        %2589 = vmatpush1.msra.mxu0 %v302
        %2590 = vmatprep.subr.mxu0 0.0
        %2591 = vmatpush1.msra.mxu0 %v303
        %2592 = vmatprep.subr.mxu0 0.0
        %2593 = vmatpush1.msra.mxu0 %v304
        %2594 = vmatprep.subr.mxu0 0.0
        %2595 = vmatpush1.msra.mxu0 %v305
        %2596 = vmatprep.subr.mxu0 0.0
        %2597 = vmatpush1.msra.mxu0 %v306
        %2598 = vmatprep.subr.mxu0 0.0
        %2599 = vmatpush1.msra.mxu0 %v307
        %2600 = vmatprep.subr.mxu0 0.0
        %2601 = vmatpush1.msra.mxu0 %v308
        %2602 = vmatprep.subr.mxu0 0.0
        %2603 = vmatpush1.msra.mxu0 %v309
        %2604 = vmatprep.subr.mxu0 0.0
        %2605 = vmatpush1.msra.mxu0 %v310
        %2606 = vmatprep.subr.mxu0 0.0
        %2607 = vmatpush1.msra.mxu0 %v311
        %2608 = vmatprep.subr.mxu0 0.0
        %2609 = vmatpush1.msra.mxu0 %v312
        %2610 = vmatprep.subr.mxu0 0.0
        %2611 = vmatpush1.msra.mxu0 %v313
        %2612 = vmatprep.subr.mxu0 0.0
        %2613 = vmatpush1.msra.mxu0 %v314
        %2614 = vmatprep.subr.mxu0 0.0
        %2615 = vmatpush1.msra.mxu0 %v315
        %2616 = vmatprep.subr.mxu0 0.0
        %2617 = vmatpush1.msra.mxu0 %v316
        %2618 = vmatprep.subr.mxu0 0.0
        %2619 = vmatpush1.msra.mxu0 %v317
        %2620 = vmatprep.subr.mxu0 0.0
        %2621 = vmatpush1.msra.mxu0 0.0
        %2622 = vmatprep.subr.mxu0 0.0
        %2623 = vmatpush1.msra.mxu0 0.0
        %2624 = vmatprep.subr.mxu0 0.0
        %2625 = vmatpush1.msra.mxu0 0.0
        %2626 = vmatprep.subr.mxu0 0.0
        %2627 = vmatpush1.msra.mxu0 0.0
        %2628 = vmatprep.subr.mxu0 0.0
        %2629 = vmatpush1.msra.mxu0 0.0
        %2630 = vmatprep.subr.mxu0 0.0
        %2631 = vmatpush1.msra.mxu0 0.0
        %2632 = vmatprep.subr.mxu0 0.0
        %2633 = vmatpush1.msra.mxu0 0.0
        %2634 = vmatprep.subr.mxu0 0.0
        %2635 = vmatpush1.msra.mxu0 0.0
        %2636 = vmatprep.subr.mxu0 0.0
        %2637 = vmatpush1.msra.mxu0 0.0
        %2638 = vmatprep.subr.mxu0 0.0
        %2639 = vmatpush1.msra.mxu0 0.0
        %2640 = vmatprep.subr.mxu0 0.0
        %2641 = vmatpush1.msra.mxu0 0.0
        %2642 = vmatprep.subr.mxu0 0.0
        %2643 = vmatpush1.msra.mxu0 0.0
        %2644 = vmatprep.subr.mxu0 0.0
        %2645 = vmatpush1.msra.mxu0 0.0
        %2646 = vmatprep.subr.mxu0 0.0
        %2647 = vmatpush1.msra.mxu0 0.0
        %2648 = vmatprep.subr.mxu0 0.0
        %2649 = vmatpush1.msra.mxu0 0.0
        %2650 = vmatprep.subr.mxu0 0.0
        %2651 = vmatpush1.msra.mxu0 0.0
        %2652 = vmatprep.mubr.f32.mxu0 0.0
        %2653 = vmatmul.mubr.f32.gmra.mrb[0].mxu0 %v2587
        %v2654 = vpop.f32.mrb[0].mxu0
        %v2655 = vadd.f32 %v2513, %v2654
        %v2656 = vpop.f32.mrb[0].mxu0
        %2657 = vdwg.mxu0
        %v2658 = vadd.f32 %v2655, %v267
        %v2659 = vtanh.pop %v2658
        %v2660 = vsel %vm252, %v2659, 0.0
        %v2661 = vsel %vm249, %v2516, %v2660
        %s2662 = scalar_lea.vmem %s233, 56 [#allocation6]
        %2663 = vst [vmem:[%s2662] sm:$0xff] %v2661
        %2664 = vst [vmem:[#allocation2] sm:$0xff] %v2661
        %s2665 = sand.u32 %s138, 1
        %s2666 = scalar_lea.sflag [#allocation5], %s2665
        %s2667 = sand.u32 %s138, 1
        %s2668 = smul.addr %s2667, 64
        %s2669 = scalar_lea.vmem [#allocation6], %s2668
        // Predicated region
        $region49: #{tpu_custom_call.1} parent=39 // pred_check
          %p2670 = pneg %p148
        $region50: #{tpu_custom_call.1} parent=39 // pred_check_branch
          %2672 = sbr.rel (%p2670) target = $region52
        $region51: #{tpu_custom_call.1} parent=39 // pred_region
          %s2673 = smul.u32 8, %s20
          %s2675 = ssub.s32 1024, 1024
          %2676 = vsyncadd %s2666, %s2675
          %s2677 = smul.addr %s2673, 128
          %s2678 = scalar_lea.hbm %s5, %s2677
          %s2679 = sshll.u32 %s2669, 4
          %s2680 = int_to_ptr.vmem [resolvable:$true] %s2679
          %2685 = dma.vmem_to_hbm [thread:$0]  %s2680, 1024, %s2678, %s2666, 128, 128, 8
        $region52: #{tpu_custom_call.1} parent=39 // pred_fallthru
          _
      $region40: #{tpu_custom_call.1} parent=5 // pred_fallthru
        _
      %p2686 = scmp.le.s32.totalorder 2, %s15
      // Predicated region
      $region53: #{tpu_custom_call.1} parent=5 // pred_check
        %p2687 = pneg %p2686
      $region54: #{tpu_custom_call.1} parent=5 // pred_check_branch
        %2689 = sbr.rel (%p2687) target = $region56
      $region55: #{tpu_custom_call.1} parent=5 // pred_region
        %s2690 = ssub.s32 %s15, 2
        // Predicated region
        $region57: #{tpu_custom_call.1} parent=55 // pred_check
          %p2691 = pneg %p154
        $region58: #{tpu_custom_call.1} parent=55 // pred_check_branch
          %2693 = sbr.rel (%p2691) target = $region60
        $region59: #{tpu_custom_call.1} parent=55 // pred_region
          %s2694 = sand.u32 %s139, 1
          %s2695 = scalar_lea.sflag [#allocation5], %s2694
          %s2696 = sand.u32 %s139, 1
          %s2697 = smul.addr %s2696, 64
          %s2698 = scalar_lea.vmem [#allocation6], %s2697
          %2699 = dma.done %s2695, 1024
        $region60: #{tpu_custom_call.1} parent=55 // pred_fallthru
          _
      $region56: #{tpu_custom_call.1} parent=5 // pred_fallthru
        _
    $region6: #{tpu_custom_call.1} parent=1 // loop_footer
      %s19 = sadd.s32 1, %s15
    $region7: #{tpu_custom_call.1} parent=1 // loop_footer_branch
      %14 = sbr.rel target = $region3
    $region8: #{tpu_custom_call.1} parent=1 // loop_exit
      _
    %2700 = vsyncpa [#allocation4], 1
    %s2701 = scalar_lea.sflag [#allocation4], 1
    %2702 = vsyncpa %s2701, 1
    %2703 = vsyncpa [#allocation5], 1
    %s2704 = scalar_lea.sflag [#allocation5], 1
    %2705 = vsyncpa %s2704, 1

</llo_original>
